<compile_context>
chip_gen: v5e
topology: v5e:2x2
jax: 0.10.0
libtpu: 0.0.40
codegen_flags: <defaults>
</compile_context>

<pallas_src>
import functools

import numpy as np

import jax
import jax.numpy as jnp
from jax.experimental import pallas as pl
from jax.experimental.pallas import tpu as pltpu


# ----------------------------------------------------------------------------
# config-string parsing (identical semantics to the PyTorch helpers)
# ----------------------------------------------------------------------------
def parse_channel_string(s):
    channel_config = {}
    for ss in s.split(','):
        res, in_channels = ss.split(':')
        channel_config[int(res)] = int(in_channels)
    return channel_config


def parse_layer_string(s):
    layers = []
    for ss in s.split(','):
        if 'x' in ss:
            res, num = ss.split('x')
            layers += [(int(res), None) for _ in range(int(num))]
        elif 'u' in ss:
            res, mixin = [int(a) for a in ss.split('u')]
            layers.append((res, mixin))
        elif 'd' in ss:
            res, down_rate = [int(a) for a in ss.split('d')]
            layers.append((res, down_rate))
        elif 't' in ss:
            res1, res2 = [int(a) for a in ss.split('t')]
            layers.append(((res1, res2), None))
        else:
            layers.append((int(ss), None))
    return layers


# ----------------------------------------------------------------------------
# in-kernel helpers (operate on (C, S) values, S = H*W on the lane axis)
# ----------------------------------------------------------------------------
_SQRT_HALF = 0.7071067811865476


def _gelu(x):
    # exact (erf) GELU, matching torch.nn.functional.gelu default
    return 0.5 * x * (1.0 + jax.lax.erf(x * _SQRT_HALF))


def _shift_lanes(v, d):
    """out[:, s] = v[:, s + d], zero-filled where s + d is out of [0, S)."""
    if d == 0:
        return v
    c, s = v.shape
    if d > 0:
        return jnp.concatenate([v[:, d:], jnp.zeros((c, d), v.dtype)], axis=1)
    return jnp.concatenate([jnp.zeros((c, -d), v.dtype), v[:, :s + d]], axis=1)


def _conv1x1(v, w, b=None):
    out = jnp.dot(w, v, preferred_element_type=jnp.float32)
    return out if b is None else out + b


def _conv3x3(v, w, b, dxmask, H, W):
    """3x3 'same' conv on a flattened (Cin, H*W) tile as ONE MXU matmul.

    v:      (Cin, H*W) f32 value
    w:      (Cout, 9*Cin) value; tap t = ky*3 + kx occupies cols [t*Cin, (t+1)*Cin)
    b:      (Cout, 1) value
    dxmask: (2, H*W) value; row 0 keeps columns valid for dx=-1, row 1 for dx=+1.
            (dy out-of-range is handled by the zero-fill in _shift_lanes.)
    """
    taps = []
    for ky in range(3):
        for kx in range(3):
            dy, dx = ky - 1, kx - 1
            sh = _shift_lanes(v, dy * W + dx)
            if dx == -1:
                sh = sh * dxmask[0:1]
            elif dx == 1:
                sh = sh * dxmask[1:2]
            taps.append(sh)
    stacked = jnp.concatenate(taps, axis=0)          # (9*Cin, H*W)
    return jnp.dot(w, stacked, preferred_element_type=jnp.float32) + b


# ----------------------------------------------------------------------------
# the single fused decoder kernel
# ----------------------------------------------------------------------------
def _decoder_kernel(*refs, plan):
    """refs = (x_ref, *extra_refs, o_ref); `plan` is a static op sequence with
    integer indices into extra_refs."""
    x_ref = refs[0]
    o_ref = refs[-1]
    ext = refs[1:-1]

    x = x_ref[0]                                     # (C, S) f32
    for kind, p in plan:
        if kind == 'upsample':
            # nearest-neighbour upsample via one-hot duplication matrix on MXU
            x = jnp.dot(x, ext[p['u']][...], preferred_element_type=jnp.float32)
        elif kind == 'chconv':
            x = _conv1x1(x, ext[p['w']][...])
        elif kind == 'resblock':
            H, W, k = p['H'], p['W'], p['k']
            h = _conv1x1(_gelu(x), ext[p['w1']][...], ext[p['b1']][...])
            if k == 3:
                mask = ext[p['mask']][...]
                h = _conv3x3(_gelu(h), ext[p['w2']][...], ext[p['b2']][...],
                             mask, H, W)
                h = _conv3x3(_gelu(h), ext[p['w3']][...], ext[p['b3']][...],
                             mask, H, W)
            else:
                h = _conv1x1(_gelu(h), ext[p['w2']][...], ext[p['b2']][...])
                h = _conv1x1(_gelu(h), ext[p['w3']][...], ext[p['b3']][...])
            h = _conv1x1(_gelu(h), ext[p['w4']][...], ext[p['b4']][...])
            x = x + h
        else:  # 'lastconv'
            H, W = p['H'], p['W']
            h = _conv3x3(x, ext[p['w']][...], ext[p['b']][...],
                         ext[p['mask']][...], H, W)
            x = jax.nn.sigmoid(h)
    o_ref[0] = x.astype(o_ref.dtype)


# ----------------------------------------------------------------------------
# glue constants (built once at trace time; tiny at these resolutions)
# ----------------------------------------------------------------------------
def _upsample_matrix(h, w, r):
    # one-hot duplication matrix U: (h*w, h*r*w*r); nearest upsample = x @ U
    yo = np.arange(h * r) // r
    xo = np.arange(w * r) // r
    src = (yo[:, None] * w + xo[None, :]).reshape(-1)
    U = np.zeros((h * w, h * r * w * r), np.float32)
    U[src, np.arange(h * r * w * r)] = 1.0
    return jnp.asarray(U)


def _edge_mask(h, w):
    col = np.tile(np.arange(w), h)
    m = np.stack([(col >= 1), (col <= w - 2)]).astype(np.float32)
    return jnp.asarray(m)


# ----------------------------------------------------------------------------
# wrapper: build the static plan + flat extras list, then ONE pallas_call
# ----------------------------------------------------------------------------
def decoder_forward(x_nchw, blocks, last_conv):
    n, c, h, w = x_nchw.shape
    x = x_nchw.reshape(n, c, h * w)    # flattened NCHW: H*W on the lane axis

    extras = []

    def add(a):
        extras.append(a)
        return len(extras) - 1

    mask_cache = {}

    def mask_idx(hh, ww):
        if (hh, ww) not in mask_cache:
            mask_cache[(hh, ww)] = add(_edge_mask(hh, ww))
        return mask_cache[(hh, ww)]

    plan = []
    for kind, p in blocks:
        if kind == 'upsample':
            r = p
            plan.append(('upsample', {'u': add(_upsample_matrix(h, w, r))}))
            h, w = h * r, w * r
        elif kind == 'chconv':
            plan.append(('chconv', {'w': add(p['w'])}))
        else:  # resblock
            k = p['k']
            entry = {'H': h, 'W': w, 'k': k,
                     'w1': add(p['w1']), 'b1': add(p['b1']),
                     'w2': add(p['w2']), 'b2': add(p['b2']),
                     'w3': add(p['w3']), 'b3': add(p['b3']),
                     'w4': add(p['w4']), 'b4': add(p['b4']),
                     'mask': mask_idx(h, w) if k == 3 else -1}
            plan.append(('resblock', entry))
    plan.append(('lastconv', {'H': h, 'W': w, 'mask': mask_idx(h, w),
                              'w': add(last_conv['w']), 'b': add(last_conv['b'])}))

    c_out = last_conv['w'].shape[0]    # 3
    s_out = h * w

    def _rep_spec(a):
        nd = a.ndim
        return pl.BlockSpec(a.shape, lambda i, _nd=nd: (0,) * _nd)

    in_specs = [pl.BlockSpec((1,) + x.shape[1:], lambda i: (i, 0, 0))]
    in_specs += [_rep_spec(a) for a in extras]

    out = pl.pallas_call(
        functools.partial(_decoder_kernel, plan=tuple(plan)),
        out_shape=jax.ShapeDtypeStruct((n, c_out, s_out), jnp.float32),
        grid=(n,),
        in_specs=in_specs,
        out_specs=pl.BlockSpec((1, c_out, s_out), lambda i: (i, 0, 0)),
        compiler_params=pltpu.CompilerParams(
            dimension_semantics=("parallel",)),
    )(x, *extras)
    return out.reshape(n, c_out, h, w)


# ----------------------------------------------------------------------------
# deterministic parameter construction (matches nn.Conv2d shapes; biases are
# zeroed as in get_conv(zero_bias=True); last_conv keeps a random bias).
# Weights are pre-transformed ONCE into kernel-ready layout:
#   kxk conv -> (Cout, k*k*Cin) with tap t = ky*k + kx in cols [t*Cin, (t+1)*Cin)
# ----------------------------------------------------------------------------
def _init_conv_raw(key, cout, cin, k, *, zero_bias=True, with_bias=True):
    wkey, bkey = jax.random.split(key)
    bound = 1.0 / ((cin * k * k) ** 0.5)
    w = jax.random.uniform(wkey, (cout, cin, k, k), jnp.float32, -bound, bound)
    b = None
    if with_bias:
        b = (jnp.zeros((cout,), jnp.float32) if zero_bias else
             jax.random.uniform(bkey, (cout,), jnp.float32, -bound, bound))
    return w, b


def _to_mat(w4d):        # (Cout, Cin, K, K) -> (Cout, K*K*Cin)
    cout, cin, k, _ = w4d.shape
    return jnp.transpose(w4d, (0, 2, 3, 1)).reshape(cout, k * k * cin)


def _to_bias(b):         # (Cout,) -> (Cout, 1)
    return b.reshape(-1, 1)


def build_decoder_params(key, input_res, block_config_str, channel_config_str):
    block_config = parse_layer_string(block_config_str)
    channel_config = parse_channel_string(channel_config_str)
    blocks = []
    for (res, up_rate) in block_config:
        key, sub = jax.random.split(key)
        if isinstance(res, tuple):
            r1, r2 = res
            w, _ = _init_conv_raw(sub, channel_config[r2], channel_config[r1],
                                  1, with_bias=False)
            blocks.append(('chconv', {'w': _to_mat(w)}))
            continue
        if up_rate is not None:
            blocks.append(('upsample', up_rate))
            continue
        cin = channel_config[res]
        mid = int(0.5 * cin)
        k = 3 if res > 1 else 1          # use_3x3 = res > 1
        k1, k2, k3, k4 = jax.random.split(sub, 4)
        w1, b1 = _init_conv_raw(k1, mid, cin, 1)
        w2, b2 = _init_conv_raw(k2, mid, mid, k)
        w3, b3 = _init_conv_raw(k3, mid, mid, k)
        w4, b4 = _init_conv_raw(k4, cin, mid, 1)
        blocks.append(('resblock', {
            'k': k,
            'w1': _to_mat(w1), 'b1': _to_bias(b1),
            'w2': _to_mat(w2), 'b2': _to_bias(b2),
            'w3': _to_mat(w3), 'b3': _to_bias(b3),
            'w4': _to_mat(w4), 'b4': _to_bias(b4),
        }))
    key, sub = jax.random.split(key)
    wl, bl = _init_conv_raw(sub, 3, channel_config[input_res], 3,
                            zero_bias=False)
    last_conv = {'w': _to_mat(wl), 'b': _to_bias(bl)}
    return blocks, last_conv


# ----------------------------------------------------------------------------
# pure-JAX (XLA conv) reference for a correctness cross-check
# ----------------------------------------------------------------------------
def _mat_to_4d(w, k):
    cout = w.shape[0]
    cin = w.shape[1] // (k * k)
    return jnp.transpose(w.reshape(cout, k, k, cin), (0, 3, 1, 2))


def _ref_conv(x, w4d, b):
    k = w4d.shape[-1]
    pad = k // 2
    out = jax.lax.conv_general_dilated(
        x, w4d, (1, 1), [(pad, pad), (pad, pad)],
        dimension_numbers=('NCHW', 'OIHW', 'NCHW'),
        precision=jax.lax.Precision.HIGHEST)
    if b is not None:
        out = out + b.reshape(1, -1, 1, 1)
    return out


def reference_decoder_forward(x, blocks, last_conv):
    for kind, p in blocks:
        if kind == 'upsample':
            x = jnp.repeat(jnp.repeat(x, p, axis=2), p, axis=3)
        elif kind == 'chconv':
            x = _ref_conv(x, _mat_to_4d(p['w'], 1), None)
        else:
            k = p['k']
            h = _ref_conv(_gelu(x), _mat_to_4d(p['w1'], 1), p['b1'][:, 0])
            h = _ref_conv(_gelu(h), _mat_to_4d(p['w2'], k), p['b2'][:, 0])
            h = _ref_conv(_gelu(h), _mat_to_4d(p['w3'], k), p['b3'][:, 0])
            h = _ref_conv(_gelu(h), _mat_to_4d(p['w4'], 1), p['b4'][:, 0])
            x = x + h
    x = _ref_conv(x, _mat_to_4d(last_conv['w'], 3), last_conv['b'][:, 0])
    return jax.nn.sigmoid(x)


# ----------------------------------------------------------------------------
if __name__ == "__main__":
    key = jax.random.PRNGKey(0)
    pkey, xkey = jax.random.split(key)

    # Small decoder: 4x4 -> 8x8 -> 16x16, with ResBlocks, channel-change 1x1
    # convs ("t" blocks) and nearest upsamples ("u" blocks).
    input_res = 16
    block_config_str = "4x1,4t8,8u2,8x1,8t16,16u2,16x1"
    channel_config_str = "4:16,8:16,16:16"

    blocks, last_conv = build_decoder_params(
        pkey, input_res, block_config_str, channel_config_str)

    # Decoder input: NCHW, resolution 4, channels = channel_config[4] = 16.
    x = jax.random.normal(xkey, (2, 16, 4, 4), jnp.float32)

    fwd = jax.jit(lambda inp: decoder_forward(inp, blocks, last_conv))
    out = jax.block_until_ready(fwd(x))

    assert out.shape == (2, 3, 16, 16), out.shape
    assert bool(jnp.all(jnp.isfinite(out)))
    assert bool(jnp.all((out >= 0.0) & (out <= 1.0)))  # sigmoid output range

    # cross-check against a plain-JAX (XLA conv) implementation
    ref = reference_decoder_forward(x, blocks, last_conv)
    err = float(jnp.max(jnp.abs(out - ref)))
    assert err < 5e-3, f"max abs error vs reference: {err}"

    print("KERNEL_OK")
</pallas_src>

<mosaic_0001>
module attributes {stable_mosaic.version = 11 : i64} {
  func.func @_decoder_kernel(%arg0: i32, %arg1: memref<1x16x16xf32, #tpu.memory_space<vmem>>, %arg2: memref<8x16xf32, #tpu.memory_space<vmem>>, %arg3: memref<8x1xf32, #tpu.memory_space<vmem>>, %arg4: memref<8x72xf32, #tpu.memory_space<vmem>>, %arg5: memref<8x1xf32, #tpu.memory_space<vmem>>, %arg6: memref<8x72xf32, #tpu.memory_space<vmem>>, %arg7: memref<8x1xf32, #tpu.memory_space<vmem>>, %arg8: memref<16x8xf32, #tpu.memory_space<vmem>>, %arg9: memref<16x1xf32, #tpu.memory_space<vmem>>, %arg10: memref<2x16xf32, #tpu.memory_space<vmem>>, %arg11: memref<16x16xf32, #tpu.memory_space<vmem>>, %arg12: memref<16x64xf32, #tpu.memory_space<vmem>>, %arg13: memref<8x16xf32, #tpu.memory_space<vmem>>, %arg14: memref<8x1xf32, #tpu.memory_space<vmem>>, %arg15: memref<8x72xf32, #tpu.memory_space<vmem>>, %arg16: memref<8x1xf32, #tpu.memory_space<vmem>>, %arg17: memref<8x72xf32, #tpu.memory_space<vmem>>, %arg18: memref<8x1xf32, #tpu.memory_space<vmem>>, %arg19: memref<16x8xf32, #tpu.memory_space<vmem>>, %arg20: memref<16x1xf32, #tpu.memory_space<vmem>>, %arg21: memref<2x64xf32, #tpu.memory_space<vmem>>, %arg22: memref<16x16xf32, #tpu.memory_space<vmem>>, %arg23: memref<64x256xf32, #tpu.memory_space<vmem>>, %arg24: memref<8x16xf32, #tpu.memory_space<vmem>>, %arg25: memref<8x1xf32, #tpu.memory_space<vmem>>, %arg26: memref<8x72xf32, #tpu.memory_space<vmem>>, %arg27: memref<8x1xf32, #tpu.memory_space<vmem>>, %arg28: memref<8x72xf32, #tpu.memory_space<vmem>>, %arg29: memref<8x1xf32, #tpu.memory_space<vmem>>, %arg30: memref<16x8xf32, #tpu.memory_space<vmem>>, %arg31: memref<16x1xf32, #tpu.memory_space<vmem>>, %arg32: memref<2x256xf32, #tpu.memory_space<vmem>>, %arg33: memref<3x144xf32, #tpu.memory_space<vmem>>, %arg34: memref<3x1xf32, #tpu.memory_space<vmem>>, %arg35: memref<1x3x256xf32, #tpu.memory_space<vmem>>) attributes {dimension_semantics = [#tpu.dimension_semantics<parallel>], iteration_bounds = array<i64: 2>, scalar_prefetch = 0 : i64, scratch_operands = 0 : i64, tpu.core_type = #tpu.core_type<tc>, window_params = [{transform_indices = @transform_0, window_bounds = array<i64: 1, 16, 16>}, {pipeline_mode = #tpu.pipeline_mode<synchronous>, transform_indices = @transform_1, window_bounds = array<i64: 8, 16>}, {pipeline_mode = #tpu.pipeline_mode<synchronous>, transform_indices = @transform_2, window_bounds = array<i64: 8, 1>}, {pipeline_mode = #tpu.pipeline_mode<synchronous>, transform_indices = @transform_3, window_bounds = array<i64: 8, 72>}, {pipeline_mode = #tpu.pipeline_mode<synchronous>, transform_indices = @transform_4, window_bounds = array<i64: 8, 1>}, {pipeline_mode = #tpu.pipeline_mode<synchronous>, transform_indices = @transform_5, window_bounds = array<i64: 8, 72>}, {pipeline_mode = #tpu.pipeline_mode<synchronous>, transform_indices = @transform_6, window_bounds = array<i64: 8, 1>}, {pipeline_mode = #tpu.pipeline_mode<synchronous>, transform_indices = @transform_7, window_bounds = array<i64: 16, 8>}, {pipeline_mode = #tpu.pipeline_mode<synchronous>, transform_indices = @transform_8, window_bounds = array<i64: 16, 1>}, {pipeline_mode = #tpu.pipeline_mode<synchronous>, transform_indices = @transform_9, window_bounds = array<i64: 2, 16>}, {pipeline_mode = #tpu.pipeline_mode<synchronous>, transform_indices = @transform_10, window_bounds = array<i64: 16, 16>}, {pipeline_mode = #tpu.pipeline_mode<synchronous>, transform_indices = @transform_11, window_bounds = array<i64: 16, 64>}, {pipeline_mode = #tpu.pipeline_mode<synchronous>, transform_indices = @transform_12, window_bounds = array<i64: 8, 16>}, {pipeline_mode = #tpu.pipeline_mode<synchronous>, transform_indices = @transform_13, window_bounds = array<i64: 8, 1>}, {pipeline_mode = #tpu.pipeline_mode<synchronous>, transform_indices = @transform_14, window_bounds = array<i64: 8, 72>}, {pipeline_mode = #tpu.pipeline_mode<synchronous>, transform_indices = @transform_15, window_bounds = array<i64: 8, 1>}, {pipeline_mode = #tpu.pipeline_mode<synchronous>, transform_indices = @transform_16, window_bounds = array<i64: 8, 72>}, {pipeline_mode = #tpu.pipeline_mode<synchronous>, transform_indices = @transform_17, window_bounds = array<i64: 8, 1>}, {pipeline_mode = #tpu.pipeline_mode<synchronous>, transform_indices = @transform_18, window_bounds = array<i64: 16, 8>}, {pipeline_mode = #tpu.pipeline_mode<synchronous>, transform_indices = @transform_19, window_bounds = array<i64: 16, 1>}, {pipeline_mode = #tpu.pipeline_mode<synchronous>, transform_indices = @transform_20, window_bounds = array<i64: 2, 64>}, {pipeline_mode = #tpu.pipeline_mode<synchronous>, transform_indices = @transform_21, window_bounds = array<i64: 16, 16>}, {pipeline_mode = #tpu.pipeline_mode<synchronous>, transform_indices = @transform_22, window_bounds = array<i64: 64, 256>}, {pipeline_mode = #tpu.pipeline_mode<synchronous>, transform_indices = @transform_23, window_bounds = array<i64: 8, 16>}, {pipeline_mode = #tpu.pipeline_mode<synchronous>, transform_indices = @transform_24, window_bounds = array<i64: 8, 1>}, {pipeline_mode = #tpu.pipeline_mode<synchronous>, transform_indices = @transform_25, window_bounds = array<i64: 8, 72>}, {pipeline_mode = #tpu.pipeline_mode<synchronous>, transform_indices = @transform_26, window_bounds = array<i64: 8, 1>}, {pipeline_mode = #tpu.pipeline_mode<synchronous>, transform_indices = @transform_27, window_bounds = array<i64: 8, 72>}, {pipeline_mode = #tpu.pipeline_mode<synchronous>, transform_indices = @transform_28, window_bounds = array<i64: 8, 1>}, {pipeline_mode = #tpu.pipeline_mode<synchronous>, transform_indices = @transform_29, window_bounds = array<i64: 16, 8>}, {pipeline_mode = #tpu.pipeline_mode<synchronous>, transform_indices = @transform_30, window_bounds = array<i64: 16, 1>}, {pipeline_mode = #tpu.pipeline_mode<synchronous>, transform_indices = @transform_31, window_bounds = array<i64: 2, 256>}, {pipeline_mode = #tpu.pipeline_mode<synchronous>, transform_indices = @transform_32, window_bounds = array<i64: 3, 144>}, {pipeline_mode = #tpu.pipeline_mode<synchronous>, transform_indices = @transform_33, window_bounds = array<i64: 3, 1>}, {transform_indices = @transform_34, window_bounds = array<i64: 1, 3, 256>}]} {
    %c0 = arith.constant 0 : index
    %c0_0 = arith.constant 0 : index
    %c0_1 = arith.constant 0 : index
    %0 = vector.load %arg1[%c0, %c0_0, %c0_1] : memref<1x16x16xf32, #tpu.memory_space<vmem>>, vector<1x16x16xf32>
    %1 = vector.shape_cast %0 : vector<1x16x16xf32> to vector<16x16xf32>
    %cst = arith.constant 5.000000e-01 : f32
    %2 = vector.broadcast %cst : f32 to vector<16x16xf32>
    %3 = arith.mulf %2, %1 : vector<16x16xf32>
    %cst_2 = arith.constant 0.707106769 : f32
    %4 = vector.broadcast %cst_2 : f32 to vector<16x16xf32>
    %5 = arith.mulf %1, %4 : vector<16x16xf32>
    %6 = math.erf %5 : vector<16x16xf32>
    %cst_3 = arith.constant 1.000000e+00 : f32
    %7 = vector.broadcast %cst_3 : f32 to vector<16x16xf32>
    %8 = arith.addf %7, %6 : vector<16x16xf32>
    %9 = arith.mulf %3, %8 : vector<16x16xf32>
    %c0_4 = arith.constant 0 : index
    %c0_5 = arith.constant 0 : index
    %10 = vector.load %arg2[%c0_4, %c0_5] : memref<8x16xf32, #tpu.memory_space<vmem>>, vector<8x16xf32>
    %c0_6 = arith.constant 0 : index
    %c0_7 = arith.constant 0 : index
    %11 = vector.load %arg3[%c0_6, %c0_7] : memref<8x1xf32, #tpu.memory_space<vmem>>, vector<8x1xf32>
    %cst_8 = arith.constant dense<0.000000e+00> : vector<8x16xf32>
    %12 = tpu.matmul %10, %9, %cst_8 {dimension_numbers = #tpu.dot_dimension_numbers<[1], [0], [0], [1], [0, 0, 1, 1], [], []>} : vector<8x16xf32>, vector<16x16xf32>, vector<8x16xf32> -> vector<8x16xf32>
    %13 = vector.broadcast %11 : vector<8x1xf32> to vector<8x16xf32>
    %14 = arith.addf %12, %13 : vector<8x16xf32>
    %c0_9 = arith.constant 0 : index
    %c0_10 = arith.constant 0 : index
    %15 = vector.load %arg10[%c0_9, %c0_10] : memref<2x16xf32, #tpu.memory_space<vmem>>, vector<2x16xf32>
    %cst_11 = arith.constant 5.000000e-01 : f32
    %16 = vector.broadcast %cst_11 : f32 to vector<8x16xf32>
    %17 = arith.mulf %16, %14 : vector<8x16xf32>
    %cst_12 = arith.constant 0.707106769 : f32
    %18 = vector.broadcast %cst_12 : f32 to vector<8x16xf32>
    %19 = arith.mulf %14, %18 : vector<8x16xf32>
    %20 = math.erf %19 : vector<8x16xf32>
    %cst_13 = arith.constant 1.000000e+00 : f32
    %21 = vector.broadcast %cst_13 : f32 to vector<8x16xf32>
    %22 = arith.addf %21, %20 : vector<8x16xf32>
    %23 = arith.mulf %17, %22 : vector<8x16xf32>
    %c0_14 = arith.constant 0 : index
    %c0_15 = arith.constant 0 : index
    %24 = vector.load %arg4[%c0_14, %c0_15] : memref<8x72xf32, #tpu.memory_space<vmem>>, vector<8x72xf32>
    %c0_16 = arith.constant 0 : index
    %c0_17 = arith.constant 0 : index
    %25 = vector.load %arg5[%c0_16, %c0_17] : memref<8x1xf32, #tpu.memory_space<vmem>>, vector<8x1xf32>
    %cst_18 = arith.constant 0.000000e+00 : f32
    %26 = vector.broadcast %cst_18 : f32 to vector<8x5xf32>
    %27 = vector.extract_strided_slice %23 {offsets = [0, 0], sizes = [8, 11], strides = [1, 1]} : vector<8x16xf32> to vector<8x11xf32>
    %28 = tpu.concatenate %26, %27 in 1 : vector<8x5xf32>, vector<8x11xf32> -> vector<8x16xf32>
    %29 = vector.extract_strided_slice %15 {offsets = [0, 0], sizes = [1, 16], strides = [1, 1]} : vector<2x16xf32> to vector<1x16xf32>
    %30 = vector.broadcast %29 : vector<1x16xf32> to vector<8x16xf32>
    %31 = arith.mulf %28, %30 : vector<8x16xf32>
    %cst_19 = arith.constant 0.000000e+00 : f32
    %32 = vector.broadcast %cst_19 : f32 to vector<8x4xf32>
    %33 = vector.extract_strided_slice %23 {offsets = [0, 0], sizes = [8, 12], strides = [1, 1]} : vector<8x16xf32> to vector<8x12xf32>
    %34 = tpu.concatenate %32, %33 in 1 : vector<8x4xf32>, vector<8x12xf32> -> vector<8x16xf32>
    %cst_20 = arith.constant 0.000000e+00 : f32
    %35 = vector.broadcast %cst_20 : f32 to vector<8x3xf32>
    %36 = vector.extract_strided_slice %23 {offsets = [0, 0], sizes = [8, 13], strides = [1, 1]} : vector<8x16xf32> to vector<8x13xf32>
    %37 = tpu.concatenate %35, %36 in 1 : vector<8x3xf32>, vector<8x13xf32> -> vector<8x16xf32>
    %38 = vector.extract_strided_slice %15 {offsets = [1, 0], sizes = [1, 16], strides = [1, 1]} : vector<2x16xf32> to vector<1x16xf32>
    %39 = vector.broadcast %38 : vector<1x16xf32> to vector<8x16xf32>
    %40 = arith.mulf %37, %39 : vector<8x16xf32>
    %cst_21 = arith.constant 0.000000e+00 : f32
    %41 = vector.broadcast %cst_21 : f32 to vector<8x1xf32>
    %42 = vector.extract_strided_slice %23 {offsets = [0, 0], sizes = [8, 15], strides = [1, 1]} : vector<8x16xf32> to vector<8x15xf32>
    %43 = tpu.concatenate %41, %42 in 1 : vector<8x1xf32>, vector<8x15xf32> -> vector<8x16xf32>
    %44 = vector.extract_strided_slice %15 {offsets = [0, 0], sizes = [1, 16], strides = [1, 1]} : vector<2x16xf32> to vector<1x16xf32>
    %45 = vector.broadcast %44 : vector<1x16xf32> to vector<8x16xf32>
    %46 = arith.mulf %43, %45 : vector<8x16xf32>
    %47 = vector.extract_strided_slice %23 {offsets = [0, 1], sizes = [8, 15], strides = [1, 1]} : vector<8x16xf32> to vector<8x15xf32>
    %cst_22 = arith.constant 0.000000e+00 : f32
    %48 = vector.broadcast %cst_22 : f32 to vector<8x1xf32>
    %49 = tpu.concatenate %47, %48 in 1 : vector<8x15xf32>, vector<8x1xf32> -> vector<8x16xf32>
    %50 = vector.extract_strided_slice %15 {offsets = [1, 0], sizes = [1, 16], strides = [1, 1]} : vector<2x16xf32> to vector<1x16xf32>
    %51 = vector.broadcast %50 : vector<1x16xf32> to vector<8x16xf32>
    %52 = arith.mulf %49, %51 : vector<8x16xf32>
    %53 = vector.extract_strided_slice %23 {offsets = [0, 3], sizes = [8, 13], strides = [1, 1]} : vector<8x16xf32> to vector<8x13xf32>
    %cst_23 = arith.constant 0.000000e+00 : f32
    %54 = vector.broadcast %cst_23 : f32 to vector<8x3xf32>
    %55 = tpu.concatenate %53, %54 in 1 : vector<8x13xf32>, vector<8x3xf32> -> vector<8x16xf32>
    %56 = vector.extract_strided_slice %15 {offsets = [0, 0], sizes = [1, 16], strides = [1, 1]} : vector<2x16xf32> to vector<1x16xf32>
    %57 = vector.broadcast %56 : vector<1x16xf32> to vector<8x16xf32>
    %58 = arith.mulf %55, %57 : vector<8x16xf32>
    %59 = vector.extract_strided_slice %23 {offsets = [0, 4], sizes = [8, 12], strides = [1, 1]} : vector<8x16xf32> to vector<8x12xf32>
    %cst_24 = arith.constant 0.000000e+00 : f32
    %60 = vector.broadcast %cst_24 : f32 to vector<8x4xf32>
    %61 = tpu.concatenate %59, %60 in 1 : vector<8x12xf32>, vector<8x4xf32> -> vector<8x16xf32>
    %62 = vector.extract_strided_slice %23 {offsets = [0, 5], sizes = [8, 11], strides = [1, 1]} : vector<8x16xf32> to vector<8x11xf32>
    %cst_25 = arith.constant 0.000000e+00 : f32
    %63 = vector.broadcast %cst_25 : f32 to vector<8x5xf32>
    %64 = tpu.concatenate %62, %63 in 1 : vector<8x11xf32>, vector<8x5xf32> -> vector<8x16xf32>
    %65 = vector.extract_strided_slice %15 {offsets = [1, 0], sizes = [1, 16], strides = [1, 1]} : vector<2x16xf32> to vector<1x16xf32>
    %66 = vector.broadcast %65 : vector<1x16xf32> to vector<8x16xf32>
    %67 = arith.mulf %64, %66 : vector<8x16xf32>
    %68 = tpu.concatenate %31, %34, %40, %46, %23, %52, %58, %61, %67 in 0 : vector<8x16xf32>, vector<8x16xf32>, vector<8x16xf32>, vector<8x16xf32>, vector<8x16xf32>, vector<8x16xf32>, vector<8x16xf32>, vector<8x16xf32>, vector<8x16xf32> -> vector<72x16xf32>
    %cst_26 = arith.constant dense<0.000000e+00> : vector<8x16xf32>
    %69 = tpu.matmul %24, %68, %cst_26 {dimension_numbers = #tpu.dot_dimension_numbers<[1], [0], [0], [1], [0, 0, 1, 1], [], []>} : vector<8x72xf32>, vector<72x16xf32>, vector<8x16xf32> -> vector<8x16xf32>
    %70 = vector.broadcast %25 : vector<8x1xf32> to vector<8x16xf32>
    %71 = arith.addf %69, %70 : vector<8x16xf32>
    %cst_27 = arith.constant 5.000000e-01 : f32
    %72 = vector.broadcast %cst_27 : f32 to vector<8x16xf32>
    %73 = arith.mulf %72, %71 : vector<8x16xf32>
    %cst_28 = arith.constant 0.707106769 : f32
    %74 = vector.broadcast %cst_28 : f32 to vector<8x16xf32>
    %75 = arith.mulf %71, %74 : vector<8x16xf32>
    %76 = math.erf %75 : vector<8x16xf32>
    %cst_29 = arith.constant 1.000000e+00 : f32
    %77 = vector.broadcast %cst_29 : f32 to vector<8x16xf32>
    %78 = arith.addf %77, %76 : vector<8x16xf32>
    %79 = arith.mulf %73, %78 : vector<8x16xf32>
    %c0_30 = arith.constant 0 : index
    %c0_31 = arith.constant 0 : index
    %80 = vector.load %arg6[%c0_30, %c0_31] : memref<8x72xf32, #tpu.memory_space<vmem>>, vector<8x72xf32>
    %c0_32 = arith.constant 0 : index
    %c0_33 = arith.constant 0 : index
    %81 = vector.load %arg7[%c0_32, %c0_33] : memref<8x1xf32, #tpu.memory_space<vmem>>, vector<8x1xf32>
    %cst_34 = arith.constant 0.000000e+00 : f32
    %82 = vector.broadcast %cst_34 : f32 to vector<8x5xf32>
    %83 = vector.extract_strided_slice %79 {offsets = [0, 0], sizes = [8, 11], strides = [1, 1]} : vector<8x16xf32> to vector<8x11xf32>
    %84 = tpu.concatenate %82, %83 in 1 : vector<8x5xf32>, vector<8x11xf32> -> vector<8x16xf32>
    %85 = vector.extract_strided_slice %15 {offsets = [0, 0], sizes = [1, 16], strides = [1, 1]} : vector<2x16xf32> to vector<1x16xf32>
    %86 = vector.broadcast %85 : vector<1x16xf32> to vector<8x16xf32>
    %87 = arith.mulf %84, %86 : vector<8x16xf32>
    %cst_35 = arith.constant 0.000000e+00 : f32
    %88 = vector.broadcast %cst_35 : f32 to vector<8x4xf32>
    %89 = vector.extract_strided_slice %79 {offsets = [0, 0], sizes = [8, 12], strides = [1, 1]} : vector<8x16xf32> to vector<8x12xf32>
    %90 = tpu.concatenate %88, %89 in 1 : vector<8x4xf32>, vector<8x12xf32> -> vector<8x16xf32>
    %cst_36 = arith.constant 0.000000e+00 : f32
    %91 = vector.broadcast %cst_36 : f32 to vector<8x3xf32>
    %92 = vector.extract_strided_slice %79 {offsets = [0, 0], sizes = [8, 13], strides = [1, 1]} : vector<8x16xf32> to vector<8x13xf32>
    %93 = tpu.concatenate %91, %92 in 1 : vector<8x3xf32>, vector<8x13xf32> -> vector<8x16xf32>
    %94 = vector.extract_strided_slice %15 {offsets = [1, 0], sizes = [1, 16], strides = [1, 1]} : vector<2x16xf32> to vector<1x16xf32>
    %95 = vector.broadcast %94 : vector<1x16xf32> to vector<8x16xf32>
    %96 = arith.mulf %93, %95 : vector<8x16xf32>
    %cst_37 = arith.constant 0.000000e+00 : f32
    %97 = vector.broadcast %cst_37 : f32 to vector<8x1xf32>
    %98 = vector.extract_strided_slice %79 {offsets = [0, 0], sizes = [8, 15], strides = [1, 1]} : vector<8x16xf32> to vector<8x15xf32>
    %99 = tpu.concatenate %97, %98 in 1 : vector<8x1xf32>, vector<8x15xf32> -> vector<8x16xf32>
    %100 = vector.extract_strided_slice %15 {offsets = [0, 0], sizes = [1, 16], strides = [1, 1]} : vector<2x16xf32> to vector<1x16xf32>
    %101 = vector.broadcast %100 : vector<1x16xf32> to vector<8x16xf32>
    %102 = arith.mulf %99, %101 : vector<8x16xf32>
    %103 = vector.extract_strided_slice %79 {offsets = [0, 1], sizes = [8, 15], strides = [1, 1]} : vector<8x16xf32> to vector<8x15xf32>
    %cst_38 = arith.constant 0.000000e+00 : f32
    %104 = vector.broadcast %cst_38 : f32 to vector<8x1xf32>
    %105 = tpu.concatenate %103, %104 in 1 : vector<8x15xf32>, vector<8x1xf32> -> vector<8x16xf32>
    %106 = vector.extract_strided_slice %15 {offsets = [1, 0], sizes = [1, 16], strides = [1, 1]} : vector<2x16xf32> to vector<1x16xf32>
    %107 = vector.broadcast %106 : vector<1x16xf32> to vector<8x16xf32>
    %108 = arith.mulf %105, %107 : vector<8x16xf32>
    %109 = vector.extract_strided_slice %79 {offsets = [0, 3], sizes = [8, 13], strides = [1, 1]} : vector<8x16xf32> to vector<8x13xf32>
    %cst_39 = arith.constant 0.000000e+00 : f32
    %110 = vector.broadcast %cst_39 : f32 to vector<8x3xf32>
    %111 = tpu.concatenate %109, %110 in 1 : vector<8x13xf32>, vector<8x3xf32> -> vector<8x16xf32>
    %112 = vector.extract_strided_slice %15 {offsets = [0, 0], sizes = [1, 16], strides = [1, 1]} : vector<2x16xf32> to vector<1x16xf32>
    %113 = vector.broadcast %112 : vector<1x16xf32> to vector<8x16xf32>
    %114 = arith.mulf %111, %113 : vector<8x16xf32>
    %115 = vector.extract_strided_slice %79 {offsets = [0, 4], sizes = [8, 12], strides = [1, 1]} : vector<8x16xf32> to vector<8x12xf32>
    %cst_40 = arith.constant 0.000000e+00 : f32
    %116 = vector.broadcast %cst_40 : f32 to vector<8x4xf32>
    %117 = tpu.concatenate %115, %116 in 1 : vector<8x12xf32>, vector<8x4xf32> -> vector<8x16xf32>
    %118 = vector.extract_strided_slice %79 {offsets = [0, 5], sizes = [8, 11], strides = [1, 1]} : vector<8x16xf32> to vector<8x11xf32>
    %cst_41 = arith.constant 0.000000e+00 : f32
    %119 = vector.broadcast %cst_41 : f32 to vector<8x5xf32>
    %120 = tpu.concatenate %118, %119 in 1 : vector<8x11xf32>, vector<8x5xf32> -> vector<8x16xf32>
    %121 = vector.extract_strided_slice %15 {offsets = [1, 0], sizes = [1, 16], strides = [1, 1]} : vector<2x16xf32> to vector<1x16xf32>
    %122 = vector.broadcast %121 : vector<1x16xf32> to vector<8x16xf32>
    %123 = arith.mulf %120, %122 : vector<8x16xf32>
    %124 = tpu.concatenate %87, %90, %96, %102, %79, %108, %114, %117, %123 in 0 : vector<8x16xf32>, vector<8x16xf32>, vector<8x16xf32>, vector<8x16xf32>, vector<8x16xf32>, vector<8x16xf32>, vector<8x16xf32>, vector<8x16xf32>, vector<8x16xf32> -> vector<72x16xf32>
    %cst_42 = arith.constant dense<0.000000e+00> : vector<8x16xf32>
    %125 = tpu.matmul %80, %124, %cst_42 {dimension_numbers = #tpu.dot_dimension_numbers<[1], [0], [0], [1], [0, 0, 1, 1], [], []>} : vector<8x72xf32>, vector<72x16xf32>, vector<8x16xf32> -> vector<8x16xf32>
    %126 = vector.broadcast %81 : vector<8x1xf32> to vector<8x16xf32>
    %127 = arith.addf %125, %126 : vector<8x16xf32>
    %cst_43 = arith.constant 5.000000e-01 : f32
    %128 = vector.broadcast %cst_43 : f32 to vector<8x16xf32>
    %129 = arith.mulf %128, %127 : vector<8x16xf32>
    %cst_44 = arith.constant 0.707106769 : f32
    %130 = vector.broadcast %cst_44 : f32 to vector<8x16xf32>
    %131 = arith.mulf %127, %130 : vector<8x16xf32>
    %132 = math.erf %131 : vector<8x16xf32>
    %cst_45 = arith.constant 1.000000e+00 : f32
    %133 = vector.broadcast %cst_45 : f32 to vector<8x16xf32>
    %134 = arith.addf %133, %132 : vector<8x16xf32>
    %135 = arith.mulf %129, %134 : vector<8x16xf32>
    %c0_46 = arith.constant 0 : index
    %c0_47 = arith.constant 0 : index
    %136 = vector.load %arg8[%c0_46, %c0_47] : memref<16x8xf32, #tpu.memory_space<vmem>>, vector<16x8xf32>
    %c0_48 = arith.constant 0 : index
    %c0_49 = arith.constant 0 : index
    %137 = vector.load %arg9[%c0_48, %c0_49] : memref<16x1xf32, #tpu.memory_space<vmem>>, vector<16x1xf32>
    %cst_50 = arith.constant dense<0.000000e+00> : vector<16x16xf32>
    %138 = tpu.matmul %136, %135, %cst_50 {dimension_numbers = #tpu.dot_dimension_numbers<[1], [0], [0], [1], [0, 0, 1, 1], [], []>} : vector<16x8xf32>, vector<8x16xf32>, vector<16x16xf32> -> vector<16x16xf32>
    %139 = vector.broadcast %137 : vector<16x1xf32> to vector<16x16xf32>
    %140 = arith.addf %138, %139 : vector<16x16xf32>
    %141 = arith.addf %1, %140 : vector<16x16xf32>
    %c0_51 = arith.constant 0 : index
    %c0_52 = arith.constant 0 : index
    %142 = vector.load %arg11[%c0_51, %c0_52] : memref<16x16xf32, #tpu.memory_space<vmem>>, vector<16x16xf32>
    %cst_53 = arith.constant dense<0.000000e+00> : vector<16x16xf32>
    %143 = tpu.matmul %142, %141, %cst_53 {dimension_numbers = #tpu.dot_dimension_numbers<[1], [0], [0], [1], [0, 0, 1, 1], [], []>} : vector<16x16xf32>, vector<16x16xf32>, vector<16x16xf32> -> vector<16x16xf32>
    %c0_54 = arith.constant 0 : index
    %c0_55 = arith.constant 0 : index
    %144 = vector.load %arg12[%c0_54, %c0_55] : memref<16x64xf32, #tpu.memory_space<vmem>>, vector<16x64xf32>
    %cst_56 = arith.constant dense<0.000000e+00> : vector<16x64xf32>
    %145 = tpu.matmul %143, %144, %cst_56 {dimension_numbers = #tpu.dot_dimension_numbers<[1], [0], [0], [1], [0, 0, 1, 1], [], []>} : vector<16x16xf32>, vector<16x64xf32>, vector<16x64xf32> -> vector<16x64xf32>
    %cst_57 = arith.constant 5.000000e-01 : f32
    %146 = vector.broadcast %cst_57 : f32 to vector<16x64xf32>
    %147 = arith.mulf %146, %145 : vector<16x64xf32>
    %cst_58 = arith.constant 0.707106769 : f32
    %148 = vector.broadcast %cst_58 : f32 to vector<16x64xf32>
    %149 = arith.mulf %145, %148 : vector<16x64xf32>
    %150 = math.erf %149 : vector<16x64xf32>
    %cst_59 = arith.constant 1.000000e+00 : f32
    %151 = vector.broadcast %cst_59 : f32 to vector<16x64xf32>
    %152 = arith.addf %151, %150 : vector<16x64xf32>
    %153 = arith.mulf %147, %152 : vector<16x64xf32>
    %c0_60 = arith.constant 0 : index
    %c0_61 = arith.constant 0 : index
    %154 = vector.load %arg13[%c0_60, %c0_61] : memref<8x16xf32, #tpu.memory_space<vmem>>, vector<8x16xf32>
    %c0_62 = arith.constant 0 : index
    %c0_63 = arith.constant 0 : index
    %155 = vector.load %arg14[%c0_62, %c0_63] : memref<8x1xf32, #tpu.memory_space<vmem>>, vector<8x1xf32>
    %cst_64 = arith.constant dense<0.000000e+00> : vector<8x64xf32>
    %156 = tpu.matmul %154, %153, %cst_64 {dimension_numbers = #tpu.dot_dimension_numbers<[1], [0], [0], [1], [0, 0, 1, 1], [], []>} : vector<8x16xf32>, vector<16x64xf32>, vector<8x64xf32> -> vector<8x64xf32>
    %157 = vector.broadcast %155 : vector<8x1xf32> to vector<8x64xf32>
    %158 = arith.addf %156, %157 : vector<8x64xf32>
    %c0_65 = arith.constant 0 : index
    %c0_66 = arith.constant 0 : index
    %159 = vector.load %arg21[%c0_65, %c0_66] : memref<2x64xf32, #tpu.memory_space<vmem>>, vector<2x64xf32>
    %cst_67 = arith.constant 5.000000e-01 : f32
    %160 = vector.broadcast %cst_67 : f32 to vector<8x64xf32>
    %161 = arith.mulf %160, %158 : vector<8x64xf32>
    %cst_68 = arith.constant 0.707106769 : f32
    %162 = vector.broadcast %cst_68 : f32 to vector<8x64xf32>
    %163 = arith.mulf %158, %162 : vector<8x64xf32>
    %164 = math.erf %163 : vector<8x64xf32>
    %cst_69 = arith.constant 1.000000e+00 : f32
    %165 = vector.broadcast %cst_69 : f32 to vector<8x64xf32>
    %166 = arith.addf %165, %164 : vector<8x64xf32>
    %167 = arith.mulf %161, %166 : vector<8x64xf32>
    %c0_70 = arith.constant 0 : index
    %c0_71 = arith.constant 0 : index
    %168 = vector.load %arg15[%c0_70, %c0_71] : memref<8x72xf32, #tpu.memory_space<vmem>>, vector<8x72xf32>
    %c0_72 = arith.constant 0 : index
    %c0_73 = arith.constant 0 : index
    %169 = vector.load %arg16[%c0_72, %c0_73] : memref<8x1xf32, #tpu.memory_space<vmem>>, vector<8x1xf32>
    %cst_74 = arith.constant 0.000000e+00 : f32
    %170 = vector.broadcast %cst_74 : f32 to vector<8x9xf32>
    %171 = vector.extract_strided_slice %167 {offsets = [0, 0], sizes = [8, 55], strides = [1, 1]} : vector<8x64xf32> to vector<8x55xf32>
    %172 = tpu.concatenate %170, %171 in 1 : vector<8x9xf32>, vector<8x55xf32> -> vector<8x64xf32>
    %173 = vector.extract_strided_slice %159 {offsets = [0, 0], sizes = [1, 64], strides = [1, 1]} : vector<2x64xf32> to vector<1x64xf32>
    %174 = vector.broadcast %173 : vector<1x64xf32> to vector<8x64xf32>
    %175 = arith.mulf %172, %174 : vector<8x64xf32>
    %cst_75 = arith.constant 0.000000e+00 : f32
    %176 = vector.broadcast %cst_75 : f32 to vector<8x8xf32>
    %177 = vector.extract_strided_slice %167 {offsets = [0, 0], sizes = [8, 56], strides = [1, 1]} : vector<8x64xf32> to vector<8x56xf32>
    %178 = tpu.concatenate %176, %177 in 1 : vector<8x8xf32>, vector<8x56xf32> -> vector<8x64xf32>
    %cst_76 = arith.constant 0.000000e+00 : f32
    %179 = vector.broadcast %cst_76 : f32 to vector<8x7xf32>
    %180 = vector.extract_strided_slice %167 {offsets = [0, 0], sizes = [8, 57], strides = [1, 1]} : vector<8x64xf32> to vector<8x57xf32>
    %181 = tpu.concatenate %179, %180 in 1 : vector<8x7xf32>, vector<8x57xf32> -> vector<8x64xf32>
    %182 = vector.extract_strided_slice %159 {offsets = [1, 0], sizes = [1, 64], strides = [1, 1]} : vector<2x64xf32> to vector<1x64xf32>
    %183 = vector.broadcast %182 : vector<1x64xf32> to vector<8x64xf32>
    %184 = arith.mulf %181, %183 : vector<8x64xf32>
    %cst_77 = arith.constant 0.000000e+00 : f32
    %185 = vector.broadcast %cst_77 : f32 to vector<8x1xf32>
    %186 = vector.extract_strided_slice %167 {offsets = [0, 0], sizes = [8, 63], strides = [1, 1]} : vector<8x64xf32> to vector<8x63xf32>
    %187 = tpu.concatenate %185, %186 in 1 : vector<8x1xf32>, vector<8x63xf32> -> vector<8x64xf32>
    %188 = vector.extract_strided_slice %159 {offsets = [0, 0], sizes = [1, 64], strides = [1, 1]} : vector<2x64xf32> to vector<1x64xf32>
    %189 = vector.broadcast %188 : vector<1x64xf32> to vector<8x64xf32>
    %190 = arith.mulf %187, %189 : vector<8x64xf32>
    %191 = vector.extract_strided_slice %167 {offsets = [0, 1], sizes = [8, 63], strides = [1, 1]} : vector<8x64xf32> to vector<8x63xf32>
    %cst_78 = arith.constant 0.000000e+00 : f32
    %192 = vector.broadcast %cst_78 : f32 to vector<8x1xf32>
    %193 = tpu.concatenate %191, %192 in 1 : vector<8x63xf32>, vector<8x1xf32> -> vector<8x64xf32>
    %194 = vector.extract_strided_slice %159 {offsets = [1, 0], sizes = [1, 64], strides = [1, 1]} : vector<2x64xf32> to vector<1x64xf32>
    %195 = vector.broadcast %194 : vector<1x64xf32> to vector<8x64xf32>
    %196 = arith.mulf %193, %195 : vector<8x64xf32>
    %197 = vector.extract_strided_slice %167 {offsets = [0, 7], sizes = [8, 57], strides = [1, 1]} : vector<8x64xf32> to vector<8x57xf32>
    %cst_79 = arith.constant 0.000000e+00 : f32
    %198 = vector.broadcast %cst_79 : f32 to vector<8x7xf32>
    %199 = tpu.concatenate %197, %198 in 1 : vector<8x57xf32>, vector<8x7xf32> -> vector<8x64xf32>
    %200 = vector.extract_strided_slice %159 {offsets = [0, 0], sizes = [1, 64], strides = [1, 1]} : vector<2x64xf32> to vector<1x64xf32>
    %201 = vector.broadcast %200 : vector<1x64xf32> to vector<8x64xf32>
    %202 = arith.mulf %199, %201 : vector<8x64xf32>
    %203 = vector.extract_strided_slice %167 {offsets = [0, 8], sizes = [8, 56], strides = [1, 1]} : vector<8x64xf32> to vector<8x56xf32>
    %cst_80 = arith.constant 0.000000e+00 : f32
    %204 = vector.broadcast %cst_80 : f32 to vector<8x8xf32>
    %205 = tpu.concatenate %203, %204 in 1 : vector<8x56xf32>, vector<8x8xf32> -> vector<8x64xf32>
    %206 = vector.extract_strided_slice %167 {offsets = [0, 9], sizes = [8, 55], strides = [1, 1]} : vector<8x64xf32> to vector<8x55xf32>
    %cst_81 = arith.constant 0.000000e+00 : f32
    %207 = vector.broadcast %cst_81 : f32 to vector<8x9xf32>
    %208 = tpu.concatenate %206, %207 in 1 : vector<8x55xf32>, vector<8x9xf32> -> vector<8x64xf32>
    %209 = vector.extract_strided_slice %159 {offsets = [1, 0], sizes = [1, 64], strides = [1, 1]} : vector<2x64xf32> to vector<1x64xf32>
    %210 = vector.broadcast %209 : vector<1x64xf32> to vector<8x64xf32>
    %211 = arith.mulf %208, %210 : vector<8x64xf32>
    %212 = tpu.concatenate %175, %178, %184, %190, %167, %196, %202, %205, %211 in 0 : vector<8x64xf32>, vector<8x64xf32>, vector<8x64xf32>, vector<8x64xf32>, vector<8x64xf32>, vector<8x64xf32>, vector<8x64xf32>, vector<8x64xf32>, vector<8x64xf32> -> vector<72x64xf32>
    %cst_82 = arith.constant dense<0.000000e+00> : vector<8x64xf32>
    %213 = tpu.matmul %168, %212, %cst_82 {dimension_numbers = #tpu.dot_dimension_numbers<[1], [0], [0], [1], [0, 0, 1, 1], [], []>} : vector<8x72xf32>, vector<72x64xf32>, vector<8x64xf32> -> vector<8x64xf32>
    %214 = vector.broadcast %169 : vector<8x1xf32> to vector<8x64xf32>
    %215 = arith.addf %213, %214 : vector<8x64xf32>
    %cst_83 = arith.constant 5.000000e-01 : f32
    %216 = vector.broadcast %cst_83 : f32 to vector<8x64xf32>
    %217 = arith.mulf %216, %215 : vector<8x64xf32>
    %cst_84 = arith.constant 0.707106769 : f32
    %218 = vector.broadcast %cst_84 : f32 to vector<8x64xf32>
    %219 = arith.mulf %215, %218 : vector<8x64xf32>
    %220 = math.erf %219 : vector<8x64xf32>
    %cst_85 = arith.constant 1.000000e+00 : f32
    %221 = vector.broadcast %cst_85 : f32 to vector<8x64xf32>
    %222 = arith.addf %221, %220 : vector<8x64xf32>
    %223 = arith.mulf %217, %222 : vector<8x64xf32>
    %c0_86 = arith.constant 0 : index
    %c0_87 = arith.constant 0 : index
    %224 = vector.load %arg17[%c0_86, %c0_87] : memref<8x72xf32, #tpu.memory_space<vmem>>, vector<8x72xf32>
    %c0_88 = arith.constant 0 : index
    %c0_89 = arith.constant 0 : index
    %225 = vector.load %arg18[%c0_88, %c0_89] : memref<8x1xf32, #tpu.memory_space<vmem>>, vector<8x1xf32>
    %cst_90 = arith.constant 0.000000e+00 : f32
    %226 = vector.broadcast %cst_90 : f32 to vector<8x9xf32>
    %227 = vector.extract_strided_slice %223 {offsets = [0, 0], sizes = [8, 55], strides = [1, 1]} : vector<8x64xf32> to vector<8x55xf32>
    %228 = tpu.concatenate %226, %227 in 1 : vector<8x9xf32>, vector<8x55xf32> -> vector<8x64xf32>
    %229 = vector.extract_strided_slice %159 {offsets = [0, 0], sizes = [1, 64], strides = [1, 1]} : vector<2x64xf32> to vector<1x64xf32>
    %230 = vector.broadcast %229 : vector<1x64xf32> to vector<8x64xf32>
    %231 = arith.mulf %228, %230 : vector<8x64xf32>
    %cst_91 = arith.constant 0.000000e+00 : f32
    %232 = vector.broadcast %cst_91 : f32 to vector<8x8xf32>
    %233 = vector.extract_strided_slice %223 {offsets = [0, 0], sizes = [8, 56], strides = [1, 1]} : vector<8x64xf32> to vector<8x56xf32>
    %234 = tpu.concatenate %232, %233 in 1 : vector<8x8xf32>, vector<8x56xf32> -> vector<8x64xf32>
    %cst_92 = arith.constant 0.000000e+00 : f32
    %235 = vector.broadcast %cst_92 : f32 to vector<8x7xf32>
    %236 = vector.extract_strided_slice %223 {offsets = [0, 0], sizes = [8, 57], strides = [1, 1]} : vector<8x64xf32> to vector<8x57xf32>
    %237 = tpu.concatenate %235, %236 in 1 : vector<8x7xf32>, vector<8x57xf32> -> vector<8x64xf32>
    %238 = vector.extract_strided_slice %159 {offsets = [1, 0], sizes = [1, 64], strides = [1, 1]} : vector<2x64xf32> to vector<1x64xf32>
    %239 = vector.broadcast %238 : vector<1x64xf32> to vector<8x64xf32>
    %240 = arith.mulf %237, %239 : vector<8x64xf32>
    %cst_93 = arith.constant 0.000000e+00 : f32
    %241 = vector.broadcast %cst_93 : f32 to vector<8x1xf32>
    %242 = vector.extract_strided_slice %223 {offsets = [0, 0], sizes = [8, 63], strides = [1, 1]} : vector<8x64xf32> to vector<8x63xf32>
    %243 = tpu.concatenate %241, %242 in 1 : vector<8x1xf32>, vector<8x63xf32> -> vector<8x64xf32>
    %244 = vector.extract_strided_slice %159 {offsets = [0, 0], sizes = [1, 64], strides = [1, 1]} : vector<2x64xf32> to vector<1x64xf32>
    %245 = vector.broadcast %244 : vector<1x64xf32> to vector<8x64xf32>
    %246 = arith.mulf %243, %245 : vector<8x64xf32>
    %247 = vector.extract_strided_slice %223 {offsets = [0, 1], sizes = [8, 63], strides = [1, 1]} : vector<8x64xf32> to vector<8x63xf32>
    %cst_94 = arith.constant 0.000000e+00 : f32
    %248 = vector.broadcast %cst_94 : f32 to vector<8x1xf32>
    %249 = tpu.concatenate %247, %248 in 1 : vector<8x63xf32>, vector<8x1xf32> -> vector<8x64xf32>
    %250 = vector.extract_strided_slice %159 {offsets = [1, 0], sizes = [1, 64], strides = [1, 1]} : vector<2x64xf32> to vector<1x64xf32>
    %251 = vector.broadcast %250 : vector<1x64xf32> to vector<8x64xf32>
    %252 = arith.mulf %249, %251 : vector<8x64xf32>
    %253 = vector.extract_strided_slice %223 {offsets = [0, 7], sizes = [8, 57], strides = [1, 1]} : vector<8x64xf32> to vector<8x57xf32>
    %cst_95 = arith.constant 0.000000e+00 : f32
    %254 = vector.broadcast %cst_95 : f32 to vector<8x7xf32>
    %255 = tpu.concatenate %253, %254 in 1 : vector<8x57xf32>, vector<8x7xf32> -> vector<8x64xf32>
    %256 = vector.extract_strided_slice %159 {offsets = [0, 0], sizes = [1, 64], strides = [1, 1]} : vector<2x64xf32> to vector<1x64xf32>
    %257 = vector.broadcast %256 : vector<1x64xf32> to vector<8x64xf32>
    %258 = arith.mulf %255, %257 : vector<8x64xf32>
    %259 = vector.extract_strided_slice %223 {offsets = [0, 8], sizes = [8, 56], strides = [1, 1]} : vector<8x64xf32> to vector<8x56xf32>
    %cst_96 = arith.constant 0.000000e+00 : f32
    %260 = vector.broadcast %cst_96 : f32 to vector<8x8xf32>
    %261 = tpu.concatenate %259, %260 in 1 : vector<8x56xf32>, vector<8x8xf32> -> vector<8x64xf32>
    %262 = vector.extract_strided_slice %223 {offsets = [0, 9], sizes = [8, 55], strides = [1, 1]} : vector<8x64xf32> to vector<8x55xf32>
    %cst_97 = arith.constant 0.000000e+00 : f32
    %263 = vector.broadcast %cst_97 : f32 to vector<8x9xf32>
    %264 = tpu.concatenate %262, %263 in 1 : vector<8x55xf32>, vector<8x9xf32> -> vector<8x64xf32>
    %265 = vector.extract_strided_slice %159 {offsets = [1, 0], sizes = [1, 64], strides = [1, 1]} : vector<2x64xf32> to vector<1x64xf32>
    %266 = vector.broadcast %265 : vector<1x64xf32> to vector<8x64xf32>
    %267 = arith.mulf %264, %266 : vector<8x64xf32>
    %268 = tpu.concatenate %231, %234, %240, %246, %223, %252, %258, %261, %267 in 0 : vector<8x64xf32>, vector<8x64xf32>, vector<8x64xf32>, vector<8x64xf32>, vector<8x64xf32>, vector<8x64xf32>, vector<8x64xf32>, vector<8x64xf32>, vector<8x64xf32> -> vector<72x64xf32>
    %cst_98 = arith.constant dense<0.000000e+00> : vector<8x64xf32>
    %269 = tpu.matmul %224, %268, %cst_98 {dimension_numbers = #tpu.dot_dimension_numbers<[1], [0], [0], [1], [0, 0, 1, 1], [], []>} : vector<8x72xf32>, vector<72x64xf32>, vector<8x64xf32> -> vector<8x64xf32>
    %270 = vector.broadcast %225 : vector<8x1xf32> to vector<8x64xf32>
    %271 = arith.addf %269, %270 : vector<8x64xf32>
    %cst_99 = arith.constant 5.000000e-01 : f32
    %272 = vector.broadcast %cst_99 : f32 to vector<8x64xf32>
    %273 = arith.mulf %272, %271 : vector<8x64xf32>
    %cst_100 = arith.constant 0.707106769 : f32
    %274 = vector.broadcast %cst_100 : f32 to vector<8x64xf32>
    %275 = arith.mulf %271, %274 : vector<8x64xf32>
    %276 = math.erf %275 : vector<8x64xf32>
    %cst_101 = arith.constant 1.000000e+00 : f32
    %277 = vector.broadcast %cst_101 : f32 to vector<8x64xf32>
    %278 = arith.addf %277, %276 : vector<8x64xf32>
    %279 = arith.mulf %273, %278 : vector<8x64xf32>
    %c0_102 = arith.constant 0 : index
    %c0_103 = arith.constant 0 : index
    %280 = vector.load %arg19[%c0_102, %c0_103] : memref<16x8xf32, #tpu.memory_space<vmem>>, vector<16x8xf32>
    %c0_104 = arith.constant 0 : index
    %c0_105 = arith.constant 0 : index
    %281 = vector.load %arg20[%c0_104, %c0_105] : memref<16x1xf32, #tpu.memory_space<vmem>>, vector<16x1xf32>
    %cst_106 = arith.constant dense<0.000000e+00> : vector<16x64xf32>
    %282 = tpu.matmul %280, %279, %cst_106 {dimension_numbers = #tpu.dot_dimension_numbers<[1], [0], [0], [1], [0, 0, 1, 1], [], []>} : vector<16x8xf32>, vector<8x64xf32>, vector<16x64xf32> -> vector<16x64xf32>
    %283 = vector.broadcast %281 : vector<16x1xf32> to vector<16x64xf32>
    %284 = arith.addf %282, %283 : vector<16x64xf32>
    %285 = arith.addf %145, %284 : vector<16x64xf32>
    %c0_107 = arith.constant 0 : index
    %c0_108 = arith.constant 0 : index
    %286 = vector.load %arg22[%c0_107, %c0_108] : memref<16x16xf32, #tpu.memory_space<vmem>>, vector<16x16xf32>
    %cst_109 = arith.constant dense<0.000000e+00> : vector<16x64xf32>
    %287 = tpu.matmul %286, %285, %cst_109 {dimension_numbers = #tpu.dot_dimension_numbers<[1], [0], [0], [1], [0, 0, 1, 1], [], []>} : vector<16x16xf32>, vector<16x64xf32>, vector<16x64xf32> -> vector<16x64xf32>
    %c0_110 = arith.constant 0 : index
    %c0_111 = arith.constant 0 : index
    %288 = vector.load %arg23[%c0_110, %c0_111] : memref<64x256xf32, #tpu.memory_space<vmem>>, vector<64x256xf32>
    %cst_112 = arith.constant dense<0.000000e+00> : vector<16x256xf32>
    %289 = tpu.matmul %287, %288, %cst_112 {dimension_numbers = #tpu.dot_dimension_numbers<[1], [0], [0], [1], [0, 0, 1, 1], [], []>} : vector<16x64xf32>, vector<64x256xf32>, vector<16x256xf32> -> vector<16x256xf32>
    %cst_113 = arith.constant 5.000000e-01 : f32
    %290 = vector.broadcast %cst_113 : f32 to vector<16x256xf32>
    %291 = arith.mulf %290, %289 : vector<16x256xf32>
    %cst_114 = arith.constant 0.707106769 : f32
    %292 = vector.broadcast %cst_114 : f32 to vector<16x256xf32>
    %293 = arith.mulf %289, %292 : vector<16x256xf32>
    %294 = math.erf %293 : vector<16x256xf32>
    %cst_115 = arith.constant 1.000000e+00 : f32
    %295 = vector.broadcast %cst_115 : f32 to vector<16x256xf32>
    %296 = arith.addf %295, %294 : vector<16x256xf32>
    %297 = arith.mulf %291, %296 : vector<16x256xf32>
    %c0_116 = arith.constant 0 : index
    %c0_117 = arith.constant 0 : index
    %298 = vector.load %arg24[%c0_116, %c0_117] : memref<8x16xf32, #tpu.memory_space<vmem>>, vector<8x16xf32>
    %c0_118 = arith.constant 0 : index
    %c0_119 = arith.constant 0 : index
    %299 = vector.load %arg25[%c0_118, %c0_119] : memref<8x1xf32, #tpu.memory_space<vmem>>, vector<8x1xf32>
    %cst_120 = arith.constant dense<0.000000e+00> : vector<8x256xf32>
    %300 = tpu.matmul %298, %297, %cst_120 {dimension_numbers = #tpu.dot_dimension_numbers<[1], [0], [0], [1], [0, 0, 1, 1], [], []>} : vector<8x16xf32>, vector<16x256xf32>, vector<8x256xf32> -> vector<8x256xf32>
    %301 = vector.broadcast %299 : vector<8x1xf32> to vector<8x256xf32>
    %302 = arith.addf %300, %301 : vector<8x256xf32>
    %c0_121 = arith.constant 0 : index
    %c0_122 = arith.constant 0 : index
    %303 = vector.load %arg32[%c0_121, %c0_122] : memref<2x256xf32, #tpu.memory_space<vmem>>, vector<2x256xf32>
    %cst_123 = arith.constant 5.000000e-01 : f32
    %304 = vector.broadcast %cst_123 : f32 to vector<8x256xf32>
    %305 = arith.mulf %304, %302 : vector<8x256xf32>
    %cst_124 = arith.constant 0.707106769 : f32
    %306 = vector.broadcast %cst_124 : f32 to vector<8x256xf32>
    %307 = arith.mulf %302, %306 : vector<8x256xf32>
    %308 = math.erf %307 : vector<8x256xf32>
    %cst_125 = arith.constant 1.000000e+00 : f32
    %309 = vector.broadcast %cst_125 : f32 to vector<8x256xf32>
    %310 = arith.addf %309, %308 : vector<8x256xf32>
    %311 = arith.mulf %305, %310 : vector<8x256xf32>
    %c0_126 = arith.constant 0 : index
    %c0_127 = arith.constant 0 : index
    %312 = vector.load %arg26[%c0_126, %c0_127] : memref<8x72xf32, #tpu.memory_space<vmem>>, vector<8x72xf32>
    %c0_128 = arith.constant 0 : index
    %c0_129 = arith.constant 0 : index
    %313 = vector.load %arg27[%c0_128, %c0_129] : memref<8x1xf32, #tpu.memory_space<vmem>>, vector<8x1xf32>
    %cst_130 = arith.constant 0.000000e+00 : f32
    %314 = vector.broadcast %cst_130 : f32 to vector<8x17xf32>
    %315 = vector.extract_strided_slice %311 {offsets = [0, 0], sizes = [8, 239], strides = [1, 1]} : vector<8x256xf32> to vector<8x239xf32>
    %316 = tpu.concatenate %314, %315 in 1 : vector<8x17xf32>, vector<8x239xf32> -> vector<8x256xf32>
    %317 = vector.extract_strided_slice %303 {offsets = [0, 0], sizes = [1, 256], strides = [1, 1]} : vector<2x256xf32> to vector<1x256xf32>
    %318 = vector.broadcast %317 : vector<1x256xf32> to vector<8x256xf32>
    %319 = arith.mulf %316, %318 : vector<8x256xf32>
    %cst_131 = arith.constant 0.000000e+00 : f32
    %320 = vector.broadcast %cst_131 : f32 to vector<8x16xf32>
    %321 = vector.extract_strided_slice %311 {offsets = [0, 0], sizes = [8, 240], strides = [1, 1]} : vector<8x256xf32> to vector<8x240xf32>
    %322 = tpu.concatenate %320, %321 in 1 : vector<8x16xf32>, vector<8x240xf32> -> vector<8x256xf32>
    %cst_132 = arith.constant 0.000000e+00 : f32
    %323 = vector.broadcast %cst_132 : f32 to vector<8x15xf32>
    %324 = vector.extract_strided_slice %311 {offsets = [0, 0], sizes = [8, 241], strides = [1, 1]} : vector<8x256xf32> to vector<8x241xf32>
    %325 = tpu.concatenate %323, %324 in 1 : vector<8x15xf32>, vector<8x241xf32> -> vector<8x256xf32>
    %326 = vector.extract_strided_slice %303 {offsets = [1, 0], sizes = [1, 256], strides = [1, 1]} : vector<2x256xf32> to vector<1x256xf32>
    %327 = vector.broadcast %326 : vector<1x256xf32> to vector<8x256xf32>
    %328 = arith.mulf %325, %327 : vector<8x256xf32>
    %cst_133 = arith.constant 0.000000e+00 : f32
    %329 = vector.broadcast %cst_133 : f32 to vector<8x1xf32>
    %330 = vector.extract_strided_slice %311 {offsets = [0, 0], sizes = [8, 255], strides = [1, 1]} : vector<8x256xf32> to vector<8x255xf32>
    %331 = tpu.concatenate %329, %330 in 1 : vector<8x1xf32>, vector<8x255xf32> -> vector<8x256xf32>
    %332 = vector.extract_strided_slice %303 {offsets = [0, 0], sizes = [1, 256], strides = [1, 1]} : vector<2x256xf32> to vector<1x256xf32>
    %333 = vector.broadcast %332 : vector<1x256xf32> to vector<8x256xf32>
    %334 = arith.mulf %331, %333 : vector<8x256xf32>
    %335 = vector.extract_strided_slice %311 {offsets = [0, 1], sizes = [8, 255], strides = [1, 1]} : vector<8x256xf32> to vector<8x255xf32>
    %cst_134 = arith.constant 0.000000e+00 : f32
    %336 = vector.broadcast %cst_134 : f32 to vector<8x1xf32>
    %337 = tpu.concatenate %335, %336 in 1 : vector<8x255xf32>, vector<8x1xf32> -> vector<8x256xf32>
    %338 = vector.extract_strided_slice %303 {offsets = [1, 0], sizes = [1, 256], strides = [1, 1]} : vector<2x256xf32> to vector<1x256xf32>
    %339 = vector.broadcast %338 : vector<1x256xf32> to vector<8x256xf32>
    %340 = arith.mulf %337, %339 : vector<8x256xf32>
    %341 = vector.extract_strided_slice %311 {offsets = [0, 15], sizes = [8, 241], strides = [1, 1]} : vector<8x256xf32> to vector<8x241xf32>
    %cst_135 = arith.constant 0.000000e+00 : f32
    %342 = vector.broadcast %cst_135 : f32 to vector<8x15xf32>
    %343 = tpu.concatenate %341, %342 in 1 : vector<8x241xf32>, vector<8x15xf32> -> vector<8x256xf32>
    %344 = vector.extract_strided_slice %303 {offsets = [0, 0], sizes = [1, 256], strides = [1, 1]} : vector<2x256xf32> to vector<1x256xf32>
    %345 = vector.broadcast %344 : vector<1x256xf32> to vector<8x256xf32>
    %346 = arith.mulf %343, %345 : vector<8x256xf32>
    %347 = vector.extract_strided_slice %311 {offsets = [0, 16], sizes = [8, 240], strides = [1, 1]} : vector<8x256xf32> to vector<8x240xf32>
    %cst_136 = arith.constant 0.000000e+00 : f32
    %348 = vector.broadcast %cst_136 : f32 to vector<8x16xf32>
    %349 = tpu.concatenate %347, %348 in 1 : vector<8x240xf32>, vector<8x16xf32> -> vector<8x256xf32>
    %350 = vector.extract_strided_slice %311 {offsets = [0, 17], sizes = [8, 239], strides = [1, 1]} : vector<8x256xf32> to vector<8x239xf32>
    %cst_137 = arith.constant 0.000000e+00 : f32
    %351 = vector.broadcast %cst_137 : f32 to vector<8x17xf32>
    %352 = tpu.concatenate %350, %351 in 1 : vector<8x239xf32>, vector<8x17xf32> -> vector<8x256xf32>
    %353 = vector.extract_strided_slice %303 {offsets = [1, 0], sizes = [1, 256], strides = [1, 1]} : vector<2x256xf32> to vector<1x256xf32>
    %354 = vector.broadcast %353 : vector<1x256xf32> to vector<8x256xf32>
    %355 = arith.mulf %352, %354 : vector<8x256xf32>
    %356 = tpu.concatenate %319, %322, %328, %334, %311, %340, %346, %349, %355 in 0 : vector<8x256xf32>, vector<8x256xf32>, vector<8x256xf32>, vector<8x256xf32>, vector<8x256xf32>, vector<8x256xf32>, vector<8x256xf32>, vector<8x256xf32>, vector<8x256xf32> -> vector<72x256xf32>
    %cst_138 = arith.constant dense<0.000000e+00> : vector<8x256xf32>
    %357 = tpu.matmul %312, %356, %cst_138 {dimension_numbers = #tpu.dot_dimension_numbers<[1], [0], [0], [1], [0, 0, 1, 1], [], []>} : vector<8x72xf32>, vector<72x256xf32>, vector<8x256xf32> -> vector<8x256xf32>
    %358 = vector.broadcast %313 : vector<8x1xf32> to vector<8x256xf32>
    %359 = arith.addf %357, %358 : vector<8x256xf32>
    %cst_139 = arith.constant 5.000000e-01 : f32
    %360 = vector.broadcast %cst_139 : f32 to vector<8x256xf32>
    %361 = arith.mulf %360, %359 : vector<8x256xf32>
    %cst_140 = arith.constant 0.707106769 : f32
    %362 = vector.broadcast %cst_140 : f32 to vector<8x256xf32>
    %363 = arith.mulf %359, %362 : vector<8x256xf32>
    %364 = math.erf %363 : vector<8x256xf32>
    %cst_141 = arith.constant 1.000000e+00 : f32
    %365 = vector.broadcast %cst_141 : f32 to vector<8x256xf32>
    %366 = arith.addf %365, %364 : vector<8x256xf32>
    %367 = arith.mulf %361, %366 : vector<8x256xf32>
    %c0_142 = arith.constant 0 : index
    %c0_143 = arith.constant 0 : index
    %368 = vector.load %arg28[%c0_142, %c0_143] : memref<8x72xf32, #tpu.memory_space<vmem>>, vector<8x72xf32>
    %c0_144 = arith.constant 0 : index
    %c0_145 = arith.constant 0 : index
    %369 = vector.load %arg29[%c0_144, %c0_145] : memref<8x1xf32, #tpu.memory_space<vmem>>, vector<8x1xf32>
    %cst_146 = arith.constant 0.000000e+00 : f32
    %370 = vector.broadcast %cst_146 : f32 to vector<8x17xf32>
    %371 = vector.extract_strided_slice %367 {offsets = [0, 0], sizes = [8, 239], strides = [1, 1]} : vector<8x256xf32> to vector<8x239xf32>
    %372 = tpu.concatenate %370, %371 in 1 : vector<8x17xf32>, vector<8x239xf32> -> vector<8x256xf32>
    %373 = vector.extract_strided_slice %303 {offsets = [0, 0], sizes = [1, 256], strides = [1, 1]} : vector<2x256xf32> to vector<1x256xf32>
    %374 = vector.broadcast %373 : vector<1x256xf32> to vector<8x256xf32>
    %375 = arith.mulf %372, %374 : vector<8x256xf32>
    %cst_147 = arith.constant 0.000000e+00 : f32
    %376 = vector.broadcast %cst_147 : f32 to vector<8x16xf32>
    %377 = vector.extract_strided_slice %367 {offsets = [0, 0], sizes = [8, 240], strides = [1, 1]} : vector<8x256xf32> to vector<8x240xf32>
    %378 = tpu.concatenate %376, %377 in 1 : vector<8x16xf32>, vector<8x240xf32> -> vector<8x256xf32>
    %cst_148 = arith.constant 0.000000e+00 : f32
    %379 = vector.broadcast %cst_148 : f32 to vector<8x15xf32>
    %380 = vector.extract_strided_slice %367 {offsets = [0, 0], sizes = [8, 241], strides = [1, 1]} : vector<8x256xf32> to vector<8x241xf32>
    %381 = tpu.concatenate %379, %380 in 1 : vector<8x15xf32>, vector<8x241xf32> -> vector<8x256xf32>
    %382 = vector.extract_strided_slice %303 {offsets = [1, 0], sizes = [1, 256], strides = [1, 1]} : vector<2x256xf32> to vector<1x256xf32>
    %383 = vector.broadcast %382 : vector<1x256xf32> to vector<8x256xf32>
    %384 = arith.mulf %381, %383 : vector<8x256xf32>
    %cst_149 = arith.constant 0.000000e+00 : f32
    %385 = vector.broadcast %cst_149 : f32 to vector<8x1xf32>
    %386 = vector.extract_strided_slice %367 {offsets = [0, 0], sizes = [8, 255], strides = [1, 1]} : vector<8x256xf32> to vector<8x255xf32>
    %387 = tpu.concatenate %385, %386 in 1 : vector<8x1xf32>, vector<8x255xf32> -> vector<8x256xf32>
    %388 = vector.extract_strided_slice %303 {offsets = [0, 0], sizes = [1, 256], strides = [1, 1]} : vector<2x256xf32> to vector<1x256xf32>
    %389 = vector.broadcast %388 : vector<1x256xf32> to vector<8x256xf32>
    %390 = arith.mulf %387, %389 : vector<8x256xf32>
    %391 = vector.extract_strided_slice %367 {offsets = [0, 1], sizes = [8, 255], strides = [1, 1]} : vector<8x256xf32> to vector<8x255xf32>
    %cst_150 = arith.constant 0.000000e+00 : f32
    %392 = vector.broadcast %cst_150 : f32 to vector<8x1xf32>
    %393 = tpu.concatenate %391, %392 in 1 : vector<8x255xf32>, vector<8x1xf32> -> vector<8x256xf32>
    %394 = vector.extract_strided_slice %303 {offsets = [1, 0], sizes = [1, 256], strides = [1, 1]} : vector<2x256xf32> to vector<1x256xf32>
    %395 = vector.broadcast %394 : vector<1x256xf32> to vector<8x256xf32>
    %396 = arith.mulf %393, %395 : vector<8x256xf32>
    %397 = vector.extract_strided_slice %367 {offsets = [0, 15], sizes = [8, 241], strides = [1, 1]} : vector<8x256xf32> to vector<8x241xf32>
    %cst_151 = arith.constant 0.000000e+00 : f32
    %398 = vector.broadcast %cst_151 : f32 to vector<8x15xf32>
    %399 = tpu.concatenate %397, %398 in 1 : vector<8x241xf32>, vector<8x15xf32> -> vector<8x256xf32>
    %400 = vector.extract_strided_slice %303 {offsets = [0, 0], sizes = [1, 256], strides = [1, 1]} : vector<2x256xf32> to vector<1x256xf32>
    %401 = vector.broadcast %400 : vector<1x256xf32> to vector<8x256xf32>
    %402 = arith.mulf %399, %401 : vector<8x256xf32>
    %403 = vector.extract_strided_slice %367 {offsets = [0, 16], sizes = [8, 240], strides = [1, 1]} : vector<8x256xf32> to vector<8x240xf32>
    %cst_152 = arith.constant 0.000000e+00 : f32
    %404 = vector.broadcast %cst_152 : f32 to vector<8x16xf32>
    %405 = tpu.concatenate %403, %404 in 1 : vector<8x240xf32>, vector<8x16xf32> -> vector<8x256xf32>
    %406 = vector.extract_strided_slice %367 {offsets = [0, 17], sizes = [8, 239], strides = [1, 1]} : vector<8x256xf32> to vector<8x239xf32>
    %cst_153 = arith.constant 0.000000e+00 : f32
    %407 = vector.broadcast %cst_153 : f32 to vector<8x17xf32>
    %408 = tpu.concatenate %406, %407 in 1 : vector<8x239xf32>, vector<8x17xf32> -> vector<8x256xf32>
    %409 = vector.extract_strided_slice %303 {offsets = [1, 0], sizes = [1, 256], strides = [1, 1]} : vector<2x256xf32> to vector<1x256xf32>
    %410 = vector.broadcast %409 : vector<1x256xf32> to vector<8x256xf32>
    %411 = arith.mulf %408, %410 : vector<8x256xf32>
    %412 = tpu.concatenate %375, %378, %384, %390, %367, %396, %402, %405, %411 in 0 : vector<8x256xf32>, vector<8x256xf32>, vector<8x256xf32>, vector<8x256xf32>, vector<8x256xf32>, vector<8x256xf32>, vector<8x256xf32>, vector<8x256xf32>, vector<8x256xf32> -> vector<72x256xf32>
    %cst_154 = arith.constant dense<0.000000e+00> : vector<8x256xf32>
    %413 = tpu.matmul %368, %412, %cst_154 {dimension_numbers = #tpu.dot_dimension_numbers<[1], [0], [0], [1], [0, 0, 1, 1], [], []>} : vector<8x72xf32>, vector<72x256xf32>, vector<8x256xf32> -> vector<8x256xf32>
    %414 = vector.broadcast %369 : vector<8x1xf32> to vector<8x256xf32>
    %415 = arith.addf %413, %414 : vector<8x256xf32>
    %cst_155 = arith.constant 5.000000e-01 : f32
    %416 = vector.broadcast %cst_155 : f32 to vector<8x256xf32>
    %417 = arith.mulf %416, %415 : vector<8x256xf32>
    %cst_156 = arith.constant 0.707106769 : f32
    %418 = vector.broadcast %cst_156 : f32 to vector<8x256xf32>
    %419 = arith.mulf %415, %418 : vector<8x256xf32>
    %420 = math.erf %419 : vector<8x256xf32>
    %cst_157 = arith.constant 1.000000e+00 : f32
    %421 = vector.broadcast %cst_157 : f32 to vector<8x256xf32>
    %422 = arith.addf %421, %420 : vector<8x256xf32>
    %423 = arith.mulf %417, %422 : vector<8x256xf32>
    %c0_158 = arith.constant 0 : index
    %c0_159 = arith.constant 0 : index
    %424 = vector.load %arg30[%c0_158, %c0_159] : memref<16x8xf32, #tpu.memory_space<vmem>>, vector<16x8xf32>
    %c0_160 = arith.constant 0 : index
    %c0_161 = arith.constant 0 : index
    %425 = vector.load %arg31[%c0_160, %c0_161] : memref<16x1xf32, #tpu.memory_space<vmem>>, vector<16x1xf32>
    %cst_162 = arith.constant dense<0.000000e+00> : vector<16x256xf32>
    %426 = tpu.matmul %424, %423, %cst_162 {dimension_numbers = #tpu.dot_dimension_numbers<[1], [0], [0], [1], [0, 0, 1, 1], [], []>} : vector<16x8xf32>, vector<8x256xf32>, vector<16x256xf32> -> vector<16x256xf32>
    %427 = vector.broadcast %425 : vector<16x1xf32> to vector<16x256xf32>
    %428 = arith.addf %426, %427 : vector<16x256xf32>
    %429 = arith.addf %289, %428 : vector<16x256xf32>
    %c0_163 = arith.constant 0 : index
    %c0_164 = arith.constant 0 : index
    %430 = vector.load %arg33[%c0_163, %c0_164] : memref<3x144xf32, #tpu.memory_space<vmem>>, vector<3x144xf32>
    %c0_165 = arith.constant 0 : index
    %c0_166 = arith.constant 0 : index
    %431 = vector.load %arg34[%c0_165, %c0_166] : memref<3x1xf32, #tpu.memory_space<vmem>>, vector<3x1xf32>
    %c0_167 = arith.constant 0 : index
    %c0_168 = arith.constant 0 : index
    %432 = vector.load %arg32[%c0_167, %c0_168] : memref<2x256xf32, #tpu.memory_space<vmem>>, vector<2x256xf32>
    %cst_169 = arith.constant 0.000000e+00 : f32
    %433 = vector.broadcast %cst_169 : f32 to vector<16x17xf32>
    %434 = vector.extract_strided_slice %429 {offsets = [0, 0], sizes = [16, 239], strides = [1, 1]} : vector<16x256xf32> to vector<16x239xf32>
    %435 = tpu.concatenate %433, %434 in 1 : vector<16x17xf32>, vector<16x239xf32> -> vector<16x256xf32>
    %436 = vector.extract_strided_slice %432 {offsets = [0, 0], sizes = [1, 256], strides = [1, 1]} : vector<2x256xf32> to vector<1x256xf32>
    %437 = vector.broadcast %436 : vector<1x256xf32> to vector<16x256xf32>
    %438 = arith.mulf %435, %437 : vector<16x256xf32>
    %cst_170 = arith.constant 0.000000e+00 : f32
    %439 = vector.broadcast %cst_170 : f32 to vector<16x16xf32>
    %440 = vector.extract_strided_slice %429 {offsets = [0, 0], sizes = [16, 240], strides = [1, 1]} : vector<16x256xf32> to vector<16x240xf32>
    %441 = tpu.concatenate %439, %440 in 1 : vector<16x16xf32>, vector<16x240xf32> -> vector<16x256xf32>
    %cst_171 = arith.constant 0.000000e+00 : f32
    %442 = vector.broadcast %cst_171 : f32 to vector<16x15xf32>
    %443 = vector.extract_strided_slice %429 {offsets = [0, 0], sizes = [16, 241], strides = [1, 1]} : vector<16x256xf32> to vector<16x241xf32>
    %444 = tpu.concatenate %442, %443 in 1 : vector<16x15xf32>, vector<16x241xf32> -> vector<16x256xf32>
    %445 = vector.extract_strided_slice %432 {offsets = [1, 0], sizes = [1, 256], strides = [1, 1]} : vector<2x256xf32> to vector<1x256xf32>
    %446 = vector.broadcast %445 : vector<1x256xf32> to vector<16x256xf32>
    %447 = arith.mulf %444, %446 : vector<16x256xf32>
    %cst_172 = arith.constant 0.000000e+00 : f32
    %448 = vector.broadcast %cst_172 : f32 to vector<16x1xf32>
    %449 = vector.extract_strided_slice %429 {offsets = [0, 0], sizes = [16, 255], strides = [1, 1]} : vector<16x256xf32> to vector<16x255xf32>
    %450 = tpu.concatenate %448, %449 in 1 : vector<16x1xf32>, vector<16x255xf32> -> vector<16x256xf32>
    %451 = vector.extract_strided_slice %432 {offsets = [0, 0], sizes = [1, 256], strides = [1, 1]} : vector<2x256xf32> to vector<1x256xf32>
    %452 = vector.broadcast %451 : vector<1x256xf32> to vector<16x256xf32>
    %453 = arith.mulf %450, %452 : vector<16x256xf32>
    %454 = vector.extract_strided_slice %429 {offsets = [0, 1], sizes = [16, 255], strides = [1, 1]} : vector<16x256xf32> to vector<16x255xf32>
    %cst_173 = arith.constant 0.000000e+00 : f32
    %455 = vector.broadcast %cst_173 : f32 to vector<16x1xf32>
    %456 = tpu.concatenate %454, %455 in 1 : vector<16x255xf32>, vector<16x1xf32> -> vector<16x256xf32>
    %457 = vector.extract_strided_slice %432 {offsets = [1, 0], sizes = [1, 256], strides = [1, 1]} : vector<2x256xf32> to vector<1x256xf32>
    %458 = vector.broadcast %457 : vector<1x256xf32> to vector<16x256xf32>
    %459 = arith.mulf %456, %458 : vector<16x256xf32>
    %460 = vector.extract_strided_slice %429 {offsets = [0, 15], sizes = [16, 241], strides = [1, 1]} : vector<16x256xf32> to vector<16x241xf32>
    %cst_174 = arith.constant 0.000000e+00 : f32
    %461 = vector.broadcast %cst_174 : f32 to vector<16x15xf32>
    %462 = tpu.concatenate %460, %461 in 1 : vector<16x241xf32>, vector<16x15xf32> -> vector<16x256xf32>
    %463 = vector.extract_strided_slice %432 {offsets = [0, 0], sizes = [1, 256], strides = [1, 1]} : vector<2x256xf32> to vector<1x256xf32>
    %464 = vector.broadcast %463 : vector<1x256xf32> to vector<16x256xf32>
    %465 = arith.mulf %462, %464 : vector<16x256xf32>
    %466 = vector.extract_strided_slice %429 {offsets = [0, 16], sizes = [16, 240], strides = [1, 1]} : vector<16x256xf32> to vector<16x240xf32>
    %cst_175 = arith.constant 0.000000e+00 : f32
    %467 = vector.broadcast %cst_175 : f32 to vector<16x16xf32>
    %468 = tpu.concatenate %466, %467 in 1 : vector<16x240xf32>, vector<16x16xf32> -> vector<16x256xf32>
    %469 = vector.extract_strided_slice %429 {offsets = [0, 17], sizes = [16, 239], strides = [1, 1]} : vector<16x256xf32> to vector<16x239xf32>
    %cst_176 = arith.constant 0.000000e+00 : f32
    %470 = vector.broadcast %cst_176 : f32 to vector<16x17xf32>
    %471 = tpu.concatenate %469, %470 in 1 : vector<16x239xf32>, vector<16x17xf32> -> vector<16x256xf32>
    %472 = vector.extract_strided_slice %432 {offsets = [1, 0], sizes = [1, 256], strides = [1, 1]} : vector<2x256xf32> to vector<1x256xf32>
    %473 = vector.broadcast %472 : vector<1x256xf32> to vector<16x256xf32>
    %474 = arith.mulf %471, %473 : vector<16x256xf32>
    %475 = tpu.concatenate %438, %441, %447, %453, %429, %459, %465, %468, %474 in 0 : vector<16x256xf32>, vector<16x256xf32>, vector<16x256xf32>, vector<16x256xf32>, vector<16x256xf32>, vector<16x256xf32>, vector<16x256xf32>, vector<16x256xf32>, vector<16x256xf32> -> vector<144x256xf32>
    %cst_177 = arith.constant dense<0.000000e+00> : vector<3x256xf32>
    %476 = tpu.matmul %430, %475, %cst_177 {dimension_numbers = #tpu.dot_dimension_numbers<[1], [0], [0], [1], [0, 0, 1, 1], [], []>} : vector<3x144xf32>, vector<144x256xf32>, vector<3x256xf32> -> vector<3x256xf32>
    %477 = vector.broadcast %431 : vector<3x1xf32> to vector<3x256xf32>
    %478 = arith.addf %476, %477 : vector<3x256xf32>
    %479 = arith.negf %478 : vector<3x256xf32>
    %480 = math.exp %479 : vector<3x256xf32>
    %cst_178 = arith.constant 1.000000e+00 : f32
    %481 = vector.broadcast %cst_178 : f32 to vector<3x256xf32>
    %482 = arith.addf %481, %480 : vector<3x256xf32>
    %483 = arith.divf %481, %482 : vector<3x256xf32>
    %c0_179 = arith.constant 0 : index
    %c0_180 = arith.constant 0 : index
    %c0_181 = arith.constant 0 : index
    %484 = vector.load %arg35[%c0_179, %c0_180, %c0_181] : memref<1x3x256xf32, #tpu.memory_space<vmem>>, vector<1x3x256xf32>
    %485 = vector.shape_cast %484 : vector<1x3x256xf32> to vector<3x256xf32>
    %486 = vector.shape_cast %483 : vector<3x256xf32> to vector<1x3x256xf32>
    tpu.vector_store %arg35[%c0_179, %c0_180, %c0_181], %486 {strides = array<i32>} : memref<1x3x256xf32, #tpu.memory_space<vmem>>, vector<1x3x256xf32>,
    return
  }
  func.func @transform_0(%arg0: i32) -> (i32, i32, i32) {
    %c0_i32 = arith.constant 0 : i32
    %c0_i32_0 = arith.constant 0 : i32
    %c0_i32_1 = arith.constant 0 : i32
    return %arg0, %c0_i32, %c0_i32_0 : i32, i32, i32
  }
  func.func @transform_1(%arg0: i32) -> (i32, i32) {
    %c0_i32 = arith.constant 0 : i32
    %c0_i32_0 = arith.constant 0 : i32
    %c0_i32_1 = arith.constant 0 : i32
    return %c0_i32, %c0_i32_0 : i32, i32
  }
  func.func @transform_2(%arg0: i32) -> (i32, i32) {
    %c0_i32 = arith.constant 0 : i32
    %c0_i32_0 = arith.constant 0 : i32
    %c0_i32_1 = arith.constant 0 : i32
    return %c0_i32, %c0_i32_0 : i32, i32
  }
  func.func @transform_3(%arg0: i32) -> (i32, i32) {
    %c0_i32 = arith.constant 0 : i32
    %c0_i32_0 = arith.constant 0 : i32
    %c0_i32_1 = arith.constant 0 : i32
    return %c0_i32, %c0_i32_0 : i32, i32
  }
  func.func @transform_4(%arg0: i32) -> (i32, i32) {
    %c0_i32 = arith.constant 0 : i32
    %c0_i32_0 = arith.constant 0 : i32
    %c0_i32_1 = arith.constant 0 : i32
    return %c0_i32, %c0_i32_0 : i32, i32
  }
  func.func @transform_5(%arg0: i32) -> (i32, i32) {
    %c0_i32 = arith.constant 0 : i32
    %c0_i32_0 = arith.constant 0 : i32
    %c0_i32_1 = arith.constant 0 : i32
    return %c0_i32, %c0_i32_0 : i32, i32
  }
  func.func @transform_6(%arg0: i32) -> (i32, i32) {
    %c0_i32 = arith.constant 0 : i32
    %c0_i32_0 = arith.constant 0 : i32
    %c0_i32_1 = arith.constant 0 : i32
    return %c0_i32, %c0_i32_0 : i32, i32
  }
  func.func @transform_7(%arg0: i32) -> (i32, i32) {
    %c0_i32 = arith.constant 0 : i32
    %c0_i32_0 = arith.constant 0 : i32
    %c0_i32_1 = arith.constant 0 : i32
    return %c0_i32, %c0_i32_0 : i32, i32
  }
  func.func @transform_8(%arg0: i32) -> (i32, i32) {
    %c0_i32 = arith.constant 0 : i32
    %c0_i32_0 = arith.constant 0 : i32
    %c0_i32_1 = arith.constant 0 : i32
    return %c0_i32, %c0_i32_0 : i32, i32
  }
  func.func @transform_9(%arg0: i32) -> (i32, i32) {
    %c0_i32 = arith.constant 0 : i32
    %c0_i32_0 = arith.constant 0 : i32
    %c0_i32_1 = arith.constant 0 : i32
    return %c0_i32, %c0_i32_0 : i32, i32
  }
  func.func @transform_10(%arg0: i32) -> (i32, i32) {
    %c0_i32 = arith.constant 0 : i32
    %c0_i32_0 = arith.constant 0 : i32
    %c0_i32_1 = arith.constant 0 : i32
    return %c0_i32, %c0_i32_0 : i32, i32
  }
  func.func @transform_11(%arg0: i32) -> (i32, i32) {
    %c0_i32 = arith.constant 0 : i32
    %c0_i32_0 = arith.constant 0 : i32
    %c0_i32_1 = arith.constant 0 : i32
    return %c0_i32, %c0_i32_0 : i32, i32
  }
  func.func @transform_12(%arg0: i32) -> (i32, i32) {
    %c0_i32 = arith.constant 0 : i32
    %c0_i32_0 = arith.constant 0 : i32
    %c0_i32_1 = arith.constant 0 : i32
    return %c0_i32, %c0_i32_0 : i32, i32
  }
  func.func @transform_13(%arg0: i32) -> (i32, i32) {
    %c0_i32 = arith.constant 0 : i32
    %c0_i32_0 = arith.constant 0 : i32
    %c0_i32_1 = arith.constant 0 : i32
    return %c0_i32, %c0_i32_0 : i32, i32
  }
  func.func @transform_14(%arg0: i32) -> (i32, i32) {
    %c0_i32 = arith.constant 0 : i32
    %c0_i32_0 = arith.constant 0 : i32
    %c0_i32_1 = arith.constant 0 : i32
    return %c0_i32, %c0_i32_0 : i32, i32
  }
  func.func @transform_15(%arg0: i32) -> (i32, i32) {
    %c0_i32 = arith.constant 0 : i32
    %c0_i32_0 = arith.constant 0 : i32
    %c0_i32_1 = arith.constant 0 : i32
    return %c0_i32, %c0_i32_0 : i32, i32
  }
  func.func @transform_16(%arg0: i32) -> (i32, i32) {
    %c0_i32 = arith.constant 0 : i32
    %c0_i32_0 = arith.constant 0 : i32
    %c0_i32_1 = arith.constant 0 : i32
    return %c0_i32, %c0_i32_0 : i32, i32
  }
  func.func @transform_17(%arg0: i32) -> (i32, i32) {
    %c0_i32 = arith.constant 0 : i32
    %c0_i32_0 = arith.constant 0 : i32
    %c0_i32_1 = arith.constant 0 : i32
    return %c0_i32, %c0_i32_0 : i32, i32
  }
  func.func @transform_18(%arg0: i32) -> (i32, i32) {
    %c0_i32 = arith.constant 0 : i32
    %c0_i32_0 = arith.constant 0 : i32
    %c0_i32_1 = arith.constant 0 : i32
    return %c0_i32, %c0_i32_0 : i32, i32
  }
  func.func @transform_19(%arg0: i32) -> (i32, i32) {
    %c0_i32 = arith.constant 0 : i32
    %c0_i32_0 = arith.constant 0 : i32
    %c0_i32_1 = arith.constant 0 : i32
    return %c0_i32, %c0_i32_0 : i32, i32
  }
  func.func @transform_20(%arg0: i32) -> (i32, i32) {
    %c0_i32 = arith.constant 0 : i32
    %c0_i32_0 = arith.constant 0 : i32
    %c0_i32_1 = arith.constant 0 : i32
    return %c0_i32, %c0_i32_0 : i32, i32
  }
  func.func @transform_21(%arg0: i32) -> (i32, i32) {
    %c0_i32 = arith.constant 0 : i32
    %c0_i32_0 = arith.constant 0 : i32
    %c0_i32_1 = arith.constant 0 : i32
    return %c0_i32, %c0_i32_0 : i32, i32
  }
  func.func @transform_22(%arg0: i32) -> (i32, i32) {
    %c0_i32 = arith.constant 0 : i32
    %c0_i32_0 = arith.constant 0 : i32
    %c0_i32_1 = arith.constant 0 : i32
    return %c0_i32, %c0_i32_0 : i32, i32
  }
  func.func @transform_23(%arg0: i32) -> (i32, i32) {
    %c0_i32 = arith.constant 0 : i32
    %c0_i32_0 = arith.constant 0 : i32
    %c0_i32_1 = arith.constant 0 : i32
    return %c0_i32, %c0_i32_0 : i32, i32
  }
  func.func @transform_24(%arg0: i32) -> (i32, i32) {
    %c0_i32 = arith.constant 0 : i32
    %c0_i32_0 = arith.constant 0 : i32
    %c0_i32_1 = arith.constant 0 : i32
    return %c0_i32, %c0_i32_0 : i32, i32
  }
  func.func @transform_25(%arg0: i32) -> (i32, i32) {
    %c0_i32 = arith.constant 0 : i32
    %c0_i32_0 = arith.constant 0 : i32
    %c0_i32_1 = arith.constant 0 : i32
    return %c0_i32, %c0_i32_0 : i32, i32
  }
  func.func @transform_26(%arg0: i32) -> (i32, i32) {
    %c0_i32 = arith.constant 0 : i32
    %c0_i32_0 = arith.constant 0 : i32
    %c0_i32_1 = arith.constant 0 : i32
    return %c0_i32, %c0_i32_0 : i32, i32
  }
  func.func @transform_27(%arg0: i32) -> (i32, i32) {
    %c0_i32 = arith.constant 0 : i32
    %c0_i32_0 = arith.constant 0 : i32
    %c0_i32_1 = arith.constant 0 : i32
    return %c0_i32, %c0_i32_0 : i32, i32
  }
  func.func @transform_28(%arg0: i32) -> (i32, i32) {
    %c0_i32 = arith.constant 0 : i32
    %c0_i32_0 = arith.constant 0 : i32
    %c0_i32_1 = arith.constant 0 : i32
    return %c0_i32, %c0_i32_0 : i32, i32
  }
  func.func @transform_29(%arg0: i32) -> (i32, i32) {
    %c0_i32 = arith.constant 0 : i32
    %c0_i32_0 = arith.constant 0 : i32
    %c0_i32_1 = arith.constant 0 : i32
    return %c0_i32, %c0_i32_0 : i32, i32
  }
  func.func @transform_30(%arg0: i32) -> (i32, i32) {
    %c0_i32 = arith.constant 0 : i32
    %c0_i32_0 = arith.constant 0 : i32
    %c0_i32_1 = arith.constant 0 : i32
    return %c0_i32, %c0_i32_0 : i32, i32
  }
  func.func @transform_31(%arg0: i32) -> (i32, i32) {
    %c0_i32 = arith.constant 0 : i32
    %c0_i32_0 = arith.constant 0 : i32
    %c0_i32_1 = arith.constant 0 : i32
    return %c0_i32, %c0_i32_0 : i32, i32
  }
  func.func @transform_32(%arg0: i32) -> (i32, i32) {
    %c0_i32 = arith.constant 0 : i32
    %c0_i32_0 = arith.constant 0 : i32
    %c0_i32_1 = arith.constant 0 : i32
    return %c0_i32, %c0_i32_0 : i32, i32
  }
  func.func @transform_33(%arg0: i32) -> (i32, i32) {
    %c0_i32 = arith.constant 0 : i32
    %c0_i32_0 = arith.constant 0 : i32
    %c0_i32_1 = arith.constant 0 : i32
    return %c0_i32, %c0_i32_0 : i32, i32
  }
  func.func @transform_34(%arg0: i32) -> (i32, i32, i32) {
    %c0_i32 = arith.constant 0 : i32
    %c0_i32_0 = arith.constant 0 : i32
    %c0_i32_1 = arith.constant 0 : i32
    return %arg0, %c0_i32, %c0_i32_0 : i32, i32, i32
  }
}

</mosaic_0001>

<llo_original>
// kernel: _lambda_.1
$region0: #{_lambda_.1}
  #allocation0 [shape = 'u32[]', space=smem, size = 0x4, offset = 0x4, fixed_abs, tag = 'smem constant byte address 0x4 - core index']
  #allocation1 [shape = 'u32[72,128]{1,0:T(1,128)}', space=vmem, size = 0x9000, scoped, tag = 'internal scratch']
  %s0 = inlined_call_operand.smem [shape: u32[35], index: -1, kind: input, shape index: {}]
  %s1 = sld [smem:[%s0]]
  %s2 = scalar_lea.smem %s0, 1
  %s3 = sld [smem:[%s2]]
  %s4 = scalar_lea.smem %s0, 2
  %s5 = sld [smem:[%s4]]
  %s6 = scalar_lea.smem %s0, 3
  %s7 = sld [smem:[%s6]]
  %s8 = scalar_lea.smem %s0, 4
  %s9 = sld [smem:[%s8]]
  %s10 = scalar_lea.smem %s0, 5
  %s11 = sld [smem:[%s10]]
  %s12 = scalar_lea.smem %s0, 6
  %s13 = sld [smem:[%s12]]
  %s14 = scalar_lea.smem %s0, 7
  %s15 = sld [smem:[%s14]]
  %s16 = scalar_lea.smem %s0, 8
  %s17 = sld [smem:[%s16]]
  %s18 = scalar_lea.smem %s0, 9
  %s19 = sld [smem:[%s18]]
  %s20 = scalar_lea.smem %s0, 10
  %s21 = sld [smem:[%s20]]
  %s22 = scalar_lea.smem %s0, 11
  %s23 = sld [smem:[%s22]]
  %s24 = scalar_lea.smem %s0, 12
  %s25 = sld [smem:[%s24]]
  %s26 = scalar_lea.smem %s0, 13
  %s27 = sld [smem:[%s26]]
  %s28 = scalar_lea.smem %s0, 14
  %s29 = sld [smem:[%s28]]
  %s30 = scalar_lea.smem %s0, 15
  %s31 = sld [smem:[%s30]]
  %s32 = scalar_lea.smem %s0, 16
  %s33 = sld [smem:[%s32]]
  %s34 = scalar_lea.smem %s0, 17
  %s35 = sld [smem:[%s34]]
  %s36 = scalar_lea.smem %s0, 18
  %s37 = sld [smem:[%s36]]
  %s38 = scalar_lea.smem %s0, 19
  %s39 = sld [smem:[%s38]]
  %s40 = scalar_lea.smem %s0, 20
  %s41 = sld [smem:[%s40]]
  %s42 = scalar_lea.smem %s0, 21
  %s43 = sld [smem:[%s42]]
  %s44 = scalar_lea.smem %s0, 22
  %s45 = sld [smem:[%s44]]
  %s46 = scalar_lea.smem %s0, 23
  %s47 = sld [smem:[%s46]]
  %s48 = scalar_lea.smem %s0, 24
  %s49 = sld [smem:[%s48]]
  %s50 = scalar_lea.smem %s0, 25
  %s51 = sld [smem:[%s50]]
  %s52 = scalar_lea.smem %s0, 26
  %s53 = sld [smem:[%s52]]
  %s54 = scalar_lea.smem %s0, 27
  %s55 = sld [smem:[%s54]]
  %s56 = scalar_lea.smem %s0, 28
  %s57 = sld [smem:[%s56]]
  %s58 = scalar_lea.smem %s0, 29
  %s59 = sld [smem:[%s58]]
  %s60 = scalar_lea.smem %s0, 30
  %s61 = sld [smem:[%s60]]
  %s62 = scalar_lea.smem %s0, 31
  %s63 = sld [smem:[%s62]]
  %s64 = scalar_lea.smem %s0, 32
  %s65 = sld [smem:[%s64]]
  %s66 = scalar_lea.smem %s0, 33
  %s67 = sld [smem:[%s66]]
  %s68 = scalar_lea.smem %s0, 34
  %s69 = sld [smem:[%s68]]
  %s70 = sld [smem:[#allocation0]]
  $region217: #{_lambda_.1} parent=0
    _
  %s72 = ssub.s32 1, %s70
  %s73 = scalar_select 0, %s72, %s70
  $region1: #{_lambda_.1} parent=0
    #allocation2 [shape = 'u8[4096]{0}', space=vmem, size = 0x1000, scoped, tag = 'input window, operand 1, single buffered']
    #allocation3 [shape = 's32[2]{0}', space=sflag, size = 0x8, scoped, tag = 'scoped memory for _lambda_.1']
    #allocation4 [shape = 'u8[4096]{0}', space=vmem, size = 0x1000, scoped, tag = 'input window, operand 3, single buffered']
    #allocation5 [shape = 's32[1]{0}', space=sflag, size = 0x4, scoped, tag = 'scoped memory for _lambda_.1']
    #allocation6 [shape = 'u8[4096]{0}', space=vmem, size = 0x1000, scoped, tag = 'input window, operand 5, single buffered']
    #allocation7 [shape = 'u8[1024]{0}', space=vmem, size = 0x400, scoped, tag = 'input window, operand 9, single buffered']
    #allocation8 [shape = 's32[1]{0}', space=sflag, size = 0x4, scoped, tag = 'scoped memory for _lambda_.1']
    #allocation9 [shape = 'u8[8192]{0}', space=vmem, size = 0x2000, scoped, tag = 'input window, operand 11, single buffered']
    #allocation10 [shape = 'u8[4096]{0}', space=vmem, size = 0x1000, scoped, tag = 'input window, operand 12, single buffered']
    #allocation11 [shape = 's32[1]{0}', space=sflag, size = 0x4, scoped, tag = 'scoped memory for _lambda_.1']
    #allocation12 [shape = 'u8[4096]{0}', space=vmem, size = 0x1000, scoped, tag = 'input window, operand 14, single buffered']
    #allocation13 [shape = 'u8[4096]{0}', space=vmem, size = 0x1000, scoped, tag = 'input window, operand 16, single buffered']
    #allocation14 [shape = 's32[1]{0}', space=sflag, size = 0x4, scoped, tag = 'scoped memory for _lambda_.1']
    #allocation15 [shape = 'u8[1024]{0}', space=vmem, size = 0x400, scoped, tag = 'input window, operand 20, single buffered']
    #allocation16 [shape = 'u8[65536]{0}', space=vmem, size = 0x10000, scoped, tag = 'input window, operand 22, single buffered']
    #allocation17 [shape = 's32[1]{0}', space=sflag, size = 0x4, scoped, tag = 'scoped memory for _lambda_.1']
    #allocation18 [shape = 'u8[4096]{0}', space=vmem, size = 0x1000, scoped, tag = 'input window, operand 23, single buffered']
    #allocation19 [shape = 'u8[2048]{0}', space=vmem, size = 0x800, scoped, tag = 'input window, operand 31, single buffered']
    #allocation20 [shape = 's32[1]{0}', space=sflag, size = 0x4, scoped, tag = 'scoped memory for _lambda_.1']
    %74 = vsyncpa [#allocation3], 0
    %75 = vsyncpa [#allocation5], 0
    %76 = vsyncpa [#allocation8], 0
    %77 = vsyncpa [#allocation11], 0
    %78 = vsyncpa [#allocation14], 0
    %79 = vsyncpa [#allocation17], 0
    %80 = vsyncpa [#allocation20], 0
    loop: start=0, step=1, limit=4
    $region2: #{_lambda_.1} parent=1 // loop_pre_header
      _
    $region3: #{_lambda_.1} parent=1 // loop_header
      %s82 = sphi 0, %s86
      %p83 = scmp.ge.s32.totalorder %s82, 4
      %s92 = sphi 0, %s94
      %s95 = sphi 0, %s92
      %s96 = sphi 0, %s95
      %s112 = sphi 0, %s96
      %s116 = sphi 0, %s116
      %s118 = sphi 0, %s116
      %s119 = sphi 0, %s118
      %s133 = sphi 0, %s119
      %s137 = sphi 0, %s137
      %s139 = sphi 0, %s137
      %s140 = sphi 0, %s139
      %s154 = sphi 0, %s140
      %s158 = sphi 0, %s158
      %s160 = sphi 0, %s158
      %s161 = sphi 0, %s160
      %s175 = sphi 0, %s161
      %s179 = sphi 0, %s179
      %s181 = sphi 0, %s179
      %s182 = sphi 0, %s181
      %s196 = sphi 0, %s182
      %s200 = sphi 0, %s200
      %s202 = sphi 0, %s200
      %s203 = sphi 0, %s202
      %s217 = sphi 0, %s203
      %s221 = sphi 0, %s221
      %s223 = sphi 0, %s221
      %s224 = sphi 0, %s223
      %s238 = sphi 0, %s224
      %s242 = sphi 0, %s242
      %s244 = sphi 0, %s242
      %s245 = sphi 0, %s244
      %s259 = sphi 0, %s245
      %s263 = sphi 0, %s263
      %s265 = sphi 0, %s263
      %s266 = sphi 0, %s265
      %s280 = sphi 0, %s266
      %s284 = sphi 0, %s284
      %s286 = sphi 0, %s284
      %s287 = sphi 0, %s286
      %s301 = sphi 0, %s287
      %s305 = sphi 0, %s305
      %s307 = sphi 0, %s305
      %s308 = sphi 0, %s307
      %s322 = sphi 0, %s308
      %s326 = sphi 0, %s326
      %s328 = sphi 0, %s326
      %s329 = sphi 0, %s328
      %s343 = sphi 0, %s329
      %s347 = sphi 0, %s347
      %s349 = sphi 0, %s347
      %s350 = sphi 0, %s349
      %s364 = sphi 0, %s350
      %s368 = sphi 0, %s368
      %s370 = sphi 0, %s368
      %s371 = sphi 0, %s370
      %s385 = sphi 0, %s371
      %s389 = sphi 0, %s389
      %s391 = sphi 0, %s389
      %s392 = sphi 0, %s391
      %s406 = sphi 0, %s392
      %s410 = sphi 0, %s410
      %s412 = sphi 0, %s410
      %s413 = sphi 0, %s412
      %s427 = sphi 0, %s413
      %s431 = sphi 0, %s431
      %s433 = sphi 0, %s431
      %s434 = sphi 0, %s433
      %s448 = sphi 0, %s434
      %s452 = sphi 0, %s452
      %s454 = sphi 0, %s452
      %s455 = sphi 0, %s454
      %s469 = sphi 0, %s455
      %s473 = sphi 0, %s473
      %s475 = sphi 0, %s473
      %s476 = sphi 0, %s475
      %s490 = sphi 0, %s476
      %s494 = sphi 0, %s494
      %s496 = sphi 0, %s494
      %s497 = sphi 0, %s496
      %s511 = sphi 0, %s497
      %s515 = sphi 0, %s515
      %s517 = sphi 0, %s515
      %s518 = sphi 0, %s517
      %s532 = sphi 0, %s518
      %s536 = sphi 0, %s536
      %s538 = sphi 0, %s536
      %s539 = sphi 0, %s538
      %s553 = sphi 0, %s539
      %s557 = sphi 0, %s557
      %s559 = sphi 0, %s557
      %s560 = sphi 0, %s559
      %s574 = sphi 0, %s560
      %s578 = sphi 0, %s578
      %s580 = sphi 0, %s578
      %s581 = sphi 0, %s580
      %s595 = sphi 0, %s581
      %s599 = sphi 0, %s599
      %s601 = sphi 0, %s599
      %s602 = sphi 0, %s601
      %s616 = sphi 0, %s602
      %s620 = sphi 0, %s620
      %s622 = sphi 0, %s620
      %s623 = sphi 0, %s622
      %s637 = sphi 0, %s623
      %s641 = sphi 0, %s641
      %s643 = sphi 0, %s641
      %s644 = sphi 0, %s643
      %s658 = sphi 0, %s644
      %s662 = sphi 0, %s662
      %s664 = sphi 0, %s662
      %s665 = sphi 0, %s664
      %s679 = sphi 0, %s665
      %s683 = sphi 0, %s683
      %s685 = sphi 0, %s683
      %s686 = sphi 0, %s685
      %s700 = sphi 0, %s686
      %s704 = sphi 0, %s704
      %s706 = sphi 0, %s704
      %s707 = sphi 0, %s706
      %s721 = sphi 0, %s707
      %s725 = sphi 0, %s725
      %s727 = sphi 0, %s725
      %s728 = sphi 0, %s727
      %s742 = sphi 0, %s728
      %s746 = sphi 0, %s746
      %s748 = sphi 0, %s746
      %s749 = sphi 0, %s748
      %s763 = sphi 0, %s749
      %s767 = sphi 0, %s767
      %s769 = sphi 0, %s767
      %s770 = sphi 0, %s769
      %s784 = sphi 0, %s770
      %s788 = sphi 0, %s788
      %s790 = sphi 0, %s788
      %s791 = sphi 0, %s790
      %s805 = sphi 0, %s791
      %s811 = sphi 0, %s813
      %s814 = sphi 0, %s811
      %s815 = sphi 0, %s814
      %s831 = sphi 0, %s815
    $region4: #{_lambda_.1} parent=1 // loop_header_branch
      %85 = sbr.rel (%p83) target = $region8
    $region5: #{_lambda_.1} parent=1 // loop_body
      %s87 = ssub.s32 %s82, 1
      %s88 = ssub.s32 %s82, 2
      %s89 = sadd.s32 %s82, 1
      %s90 = ssub.s32 %s82, %s89
      %p91 = scmp.eq.s32.totalorder %s90, 0
      %s93 = sadd.s32 %s92, 1
      %s94 = scalar_select %p91, %s92, %s93
      %p97 = pneg %p91
      %p98 = scmp.eq.s32.totalorder %s82, 1
      %p99 = por %p97, %p98
      %p100 = scmp.ne.s32.totalorder %s92, %s95
      %p101 = scmp.eq.s32.totalorder %s82, 0
      %p102 = por %p100, %p101
      %p103 = scmp.ne.s32.totalorder %s92, %s95
      %p104 = scmp.eq.s32.totalorder %s87, 1
      %p105 = por %p103, %p104
      %p106 = scmp.ne.s32.totalorder %s95, %s96
      %p107 = scmp.eq.s32.totalorder %s87, 0
      %p108 = por %p106, %p107
      %p109 = scmp.ne.s32.totalorder %s95, %s96
      %p110 = scmp.eq.s32.totalorder %s88, 1
      %p111 = por %p109, %p110
      %p113 = scmp.ne.s32.totalorder %s96, %s112
      %p114 = scmp.eq.s32.totalorder %s88, 0
      %p115 = por %p113, %p114
      %s117 = sadd.s32 %s116, 1
      %p120 = scmp.eq.s32.totalorder %s82, 1
      %p121 = scmp.ne.s32.totalorder %s116, %s118
      %p122 = scmp.eq.s32.totalorder %s82, 0
      %p123 = por %p121, %p122
      %p124 = scmp.ne.s32.totalorder %s116, %s118
      %p125 = scmp.eq.s32.totalorder %s87, 1
      %p126 = por %p124, %p125
      %p127 = scmp.ne.s32.totalorder %s118, %s119
      %p128 = scmp.eq.s32.totalorder %s87, 0
      %p129 = por %p127, %p128
      %p130 = scmp.ne.s32.totalorder %s118, %s119
      %p131 = scmp.eq.s32.totalorder %s88, 1
      %p132 = por %p130, %p131
      %p134 = scmp.ne.s32.totalorder %s119, %s133
      %p135 = scmp.eq.s32.totalorder %s88, 0
      %p136 = por %p134, %p135
      %s138 = sadd.s32 %s137, 1
      %p141 = scmp.eq.s32.totalorder %s82, 1
      %p142 = scmp.ne.s32.totalorder %s137, %s139
      %p143 = scmp.eq.s32.totalorder %s82, 0
      %p144 = por %p142, %p143
      %p145 = scmp.ne.s32.totalorder %s137, %s139
      %p146 = scmp.eq.s32.totalorder %s87, 1
      %p147 = por %p145, %p146
      %p148 = scmp.ne.s32.totalorder %s139, %s140
      %p149 = scmp.eq.s32.totalorder %s87, 0
      %p150 = por %p148, %p149
      %p151 = scmp.ne.s32.totalorder %s139, %s140
      %p152 = scmp.eq.s32.totalorder %s88, 1
      %p153 = por %p151, %p152
      %p155 = scmp.ne.s32.totalorder %s140, %s154
      %p156 = scmp.eq.s32.totalorder %s88, 0
      %p157 = por %p155, %p156
      %s159 = sadd.s32 %s158, 1
      %p162 = scmp.eq.s32.totalorder %s82, 1
      %p163 = scmp.ne.s32.totalorder %s158, %s160
      %p164 = scmp.eq.s32.totalorder %s82, 0
      %p165 = por %p163, %p164
      %p166 = scmp.ne.s32.totalorder %s158, %s160
      %p167 = scmp.eq.s32.totalorder %s87, 1
      %p168 = por %p166, %p167
      %p169 = scmp.ne.s32.totalorder %s160, %s161
      %p170 = scmp.eq.s32.totalorder %s87, 0
      %p171 = por %p169, %p170
      %p172 = scmp.ne.s32.totalorder %s160, %s161
      %p173 = scmp.eq.s32.totalorder %s88, 1
      %p174 = por %p172, %p173
      %p176 = scmp.ne.s32.totalorder %s161, %s175
      %p177 = scmp.eq.s32.totalorder %s88, 0
      %p178 = por %p176, %p177
      %s180 = sadd.s32 %s179, 1
      %p183 = scmp.eq.s32.totalorder %s82, 1
      %p184 = scmp.ne.s32.totalorder %s179, %s181
      %p185 = scmp.eq.s32.totalorder %s82, 0
      %p186 = por %p184, %p185
      %p187 = scmp.ne.s32.totalorder %s179, %s181
      %p188 = scmp.eq.s32.totalorder %s87, 1
      %p189 = por %p187, %p188
      %p190 = scmp.ne.s32.totalorder %s181, %s182
      %p191 = scmp.eq.s32.totalorder %s87, 0
      %p192 = por %p190, %p191
      %p193 = scmp.ne.s32.totalorder %s181, %s182
      %p194 = scmp.eq.s32.totalorder %s88, 1
      %p195 = por %p193, %p194
      %p197 = scmp.ne.s32.totalorder %s182, %s196
      %p198 = scmp.eq.s32.totalorder %s88, 0
      %p199 = por %p197, %p198
      %s201 = sadd.s32 %s200, 1
      %p204 = scmp.eq.s32.totalorder %s82, 1
      %p205 = scmp.ne.s32.totalorder %s200, %s202
      %p206 = scmp.eq.s32.totalorder %s82, 0
      %p207 = por %p205, %p206
      %p208 = scmp.ne.s32.totalorder %s200, %s202
      %p209 = scmp.eq.s32.totalorder %s87, 1
      %p210 = por %p208, %p209
      %p211 = scmp.ne.s32.totalorder %s202, %s203
      %p212 = scmp.eq.s32.totalorder %s87, 0
      %p213 = por %p211, %p212
      %p214 = scmp.ne.s32.totalorder %s202, %s203
      %p215 = scmp.eq.s32.totalorder %s88, 1
      %p216 = por %p214, %p215
      %p218 = scmp.ne.s32.totalorder %s203, %s217
      %p219 = scmp.eq.s32.totalorder %s88, 0
      %p220 = por %p218, %p219
      %s222 = sadd.s32 %s221, 1
      %p225 = scmp.eq.s32.totalorder %s82, 1
      %p226 = scmp.ne.s32.totalorder %s221, %s223
      %p227 = scmp.eq.s32.totalorder %s82, 0
      %p228 = por %p226, %p227
      %p229 = scmp.ne.s32.totalorder %s221, %s223
      %p230 = scmp.eq.s32.totalorder %s87, 1
      %p231 = por %p229, %p230
      %p232 = scmp.ne.s32.totalorder %s223, %s224
      %p233 = scmp.eq.s32.totalorder %s87, 0
      %p234 = por %p232, %p233
      %p235 = scmp.ne.s32.totalorder %s223, %s224
      %p236 = scmp.eq.s32.totalorder %s88, 1
      %p237 = por %p235, %p236
      %p239 = scmp.ne.s32.totalorder %s224, %s238
      %p240 = scmp.eq.s32.totalorder %s88, 0
      %p241 = por %p239, %p240
      %s243 = sadd.s32 %s242, 1
      %p246 = scmp.eq.s32.totalorder %s82, 1
      %p247 = scmp.ne.s32.totalorder %s242, %s244
      %p248 = scmp.eq.s32.totalorder %s82, 0
      %p249 = por %p247, %p248
      %p250 = scmp.ne.s32.totalorder %s242, %s244
      %p251 = scmp.eq.s32.totalorder %s87, 1
      %p252 = por %p250, %p251
      %p253 = scmp.ne.s32.totalorder %s244, %s245
      %p254 = scmp.eq.s32.totalorder %s87, 0
      %p255 = por %p253, %p254
      %p256 = scmp.ne.s32.totalorder %s244, %s245
      %p257 = scmp.eq.s32.totalorder %s88, 1
      %p258 = por %p256, %p257
      %p260 = scmp.ne.s32.totalorder %s245, %s259
      %p261 = scmp.eq.s32.totalorder %s88, 0
      %p262 = por %p260, %p261
      %s264 = sadd.s32 %s263, 1
      %p267 = scmp.eq.s32.totalorder %s82, 1
      %p268 = scmp.ne.s32.totalorder %s263, %s265
      %p269 = scmp.eq.s32.totalorder %s82, 0
      %p270 = por %p268, %p269
      %p271 = scmp.ne.s32.totalorder %s263, %s265
      %p272 = scmp.eq.s32.totalorder %s87, 1
      %p273 = por %p271, %p272
      %p274 = scmp.ne.s32.totalorder %s265, %s266
      %p275 = scmp.eq.s32.totalorder %s87, 0
      %p276 = por %p274, %p275
      %p277 = scmp.ne.s32.totalorder %s265, %s266
      %p278 = scmp.eq.s32.totalorder %s88, 1
      %p279 = por %p277, %p278
      %p281 = scmp.ne.s32.totalorder %s266, %s280
      %p282 = scmp.eq.s32.totalorder %s88, 0
      %p283 = por %p281, %p282
      %s285 = sadd.s32 %s284, 1
      %p288 = scmp.eq.s32.totalorder %s82, 1
      %p289 = scmp.ne.s32.totalorder %s284, %s286
      %p290 = scmp.eq.s32.totalorder %s82, 0
      %p291 = por %p289, %p290
      %p292 = scmp.ne.s32.totalorder %s284, %s286
      %p293 = scmp.eq.s32.totalorder %s87, 1
      %p294 = por %p292, %p293
      %p295 = scmp.ne.s32.totalorder %s286, %s287
      %p296 = scmp.eq.s32.totalorder %s87, 0
      %p297 = por %p295, %p296
      %p298 = scmp.ne.s32.totalorder %s286, %s287
      %p299 = scmp.eq.s32.totalorder %s88, 1
      %p300 = por %p298, %p299
      %p302 = scmp.ne.s32.totalorder %s287, %s301
      %p303 = scmp.eq.s32.totalorder %s88, 0
      %p304 = por %p302, %p303
      %s306 = sadd.s32 %s305, 1
      %p309 = scmp.eq.s32.totalorder %s82, 1
      %p310 = scmp.ne.s32.totalorder %s305, %s307
      %p311 = scmp.eq.s32.totalorder %s82, 0
      %p312 = por %p310, %p311
      %p313 = scmp.ne.s32.totalorder %s305, %s307
      %p314 = scmp.eq.s32.totalorder %s87, 1
      %p315 = por %p313, %p314
      %p316 = scmp.ne.s32.totalorder %s307, %s308
      %p317 = scmp.eq.s32.totalorder %s87, 0
      %p318 = por %p316, %p317
      %p319 = scmp.ne.s32.totalorder %s307, %s308
      %p320 = scmp.eq.s32.totalorder %s88, 1
      %p321 = por %p319, %p320
      %p323 = scmp.ne.s32.totalorder %s308, %s322
      %p324 = scmp.eq.s32.totalorder %s88, 0
      %p325 = por %p323, %p324
      %s327 = sadd.s32 %s326, 1
      %p330 = scmp.eq.s32.totalorder %s82, 1
      %p331 = scmp.ne.s32.totalorder %s326, %s328
      %p332 = scmp.eq.s32.totalorder %s82, 0
      %p333 = por %p331, %p332
      %p334 = scmp.ne.s32.totalorder %s326, %s328
      %p335 = scmp.eq.s32.totalorder %s87, 1
      %p336 = por %p334, %p335
      %p337 = scmp.ne.s32.totalorder %s328, %s329
      %p338 = scmp.eq.s32.totalorder %s87, 0
      %p339 = por %p337, %p338
      %p340 = scmp.ne.s32.totalorder %s328, %s329
      %p341 = scmp.eq.s32.totalorder %s88, 1
      %p342 = por %p340, %p341
      %p344 = scmp.ne.s32.totalorder %s329, %s343
      %p345 = scmp.eq.s32.totalorder %s88, 0
      %p346 = por %p344, %p345
      %s348 = sadd.s32 %s347, 1
      %p351 = scmp.eq.s32.totalorder %s82, 1
      %p352 = scmp.ne.s32.totalorder %s347, %s349
      %p353 = scmp.eq.s32.totalorder %s82, 0
      %p354 = por %p352, %p353
      %p355 = scmp.ne.s32.totalorder %s347, %s349
      %p356 = scmp.eq.s32.totalorder %s87, 1
      %p357 = por %p355, %p356
      %p358 = scmp.ne.s32.totalorder %s349, %s350
      %p359 = scmp.eq.s32.totalorder %s87, 0
      %p360 = por %p358, %p359
      %p361 = scmp.ne.s32.totalorder %s349, %s350
      %p362 = scmp.eq.s32.totalorder %s88, 1
      %p363 = por %p361, %p362
      %p365 = scmp.ne.s32.totalorder %s350, %s364
      %p366 = scmp.eq.s32.totalorder %s88, 0
      %p367 = por %p365, %p366
      %s369 = sadd.s32 %s368, 1
      %p372 = scmp.eq.s32.totalorder %s82, 1
      %p373 = scmp.ne.s32.totalorder %s368, %s370
      %p374 = scmp.eq.s32.totalorder %s82, 0
      %p375 = por %p373, %p374
      %p376 = scmp.ne.s32.totalorder %s368, %s370
      %p377 = scmp.eq.s32.totalorder %s87, 1
      %p378 = por %p376, %p377
      %p379 = scmp.ne.s32.totalorder %s370, %s371
      %p380 = scmp.eq.s32.totalorder %s87, 0
      %p381 = por %p379, %p380
      %p382 = scmp.ne.s32.totalorder %s370, %s371
      %p383 = scmp.eq.s32.totalorder %s88, 1
      %p384 = por %p382, %p383
      %p386 = scmp.ne.s32.totalorder %s371, %s385
      %p387 = scmp.eq.s32.totalorder %s88, 0
      %p388 = por %p386, %p387
      %s390 = sadd.s32 %s389, 1
      %p393 = scmp.eq.s32.totalorder %s82, 1
      %p394 = scmp.ne.s32.totalorder %s389, %s391
      %p395 = scmp.eq.s32.totalorder %s82, 0
      %p396 = por %p394, %p395
      %p397 = scmp.ne.s32.totalorder %s389, %s391
      %p398 = scmp.eq.s32.totalorder %s87, 1
      %p399 = por %p397, %p398
      %p400 = scmp.ne.s32.totalorder %s391, %s392
      %p401 = scmp.eq.s32.totalorder %s87, 0
      %p402 = por %p400, %p401
      %p403 = scmp.ne.s32.totalorder %s391, %s392
      %p404 = scmp.eq.s32.totalorder %s88, 1
      %p405 = por %p403, %p404
      %p407 = scmp.ne.s32.totalorder %s392, %s406
      %p408 = scmp.eq.s32.totalorder %s88, 0
      %p409 = por %p407, %p408
      %s411 = sadd.s32 %s410, 1
      %p414 = scmp.eq.s32.totalorder %s82, 1
      %p415 = scmp.ne.s32.totalorder %s410, %s412
      %p416 = scmp.eq.s32.totalorder %s82, 0
      %p417 = por %p415, %p416
      %p418 = scmp.ne.s32.totalorder %s410, %s412
      %p419 = scmp.eq.s32.totalorder %s87, 1
      %p420 = por %p418, %p419
      %p421 = scmp.ne.s32.totalorder %s412, %s413
      %p422 = scmp.eq.s32.totalorder %s87, 0
      %p423 = por %p421, %p422
      %p424 = scmp.ne.s32.totalorder %s412, %s413
      %p425 = scmp.eq.s32.totalorder %s88, 1
      %p426 = por %p424, %p425
      %p428 = scmp.ne.s32.totalorder %s413, %s427
      %p429 = scmp.eq.s32.totalorder %s88, 0
      %p430 = por %p428, %p429
      %s432 = sadd.s32 %s431, 1
      %p435 = scmp.eq.s32.totalorder %s82, 1
      %p436 = scmp.ne.s32.totalorder %s431, %s433
      %p437 = scmp.eq.s32.totalorder %s82, 0
      %p438 = por %p436, %p437
      %p439 = scmp.ne.s32.totalorder %s431, %s433
      %p440 = scmp.eq.s32.totalorder %s87, 1
      %p441 = por %p439, %p440
      %p442 = scmp.ne.s32.totalorder %s433, %s434
      %p443 = scmp.eq.s32.totalorder %s87, 0
      %p444 = por %p442, %p443
      %p445 = scmp.ne.s32.totalorder %s433, %s434
      %p446 = scmp.eq.s32.totalorder %s88, 1
      %p447 = por %p445, %p446
      %p449 = scmp.ne.s32.totalorder %s434, %s448
      %p450 = scmp.eq.s32.totalorder %s88, 0
      %p451 = por %p449, %p450
      %s453 = sadd.s32 %s452, 1
      %p456 = scmp.eq.s32.totalorder %s82, 1
      %p457 = scmp.ne.s32.totalorder %s452, %s454
      %p458 = scmp.eq.s32.totalorder %s82, 0
      %p459 = por %p457, %p458
      %p460 = scmp.ne.s32.totalorder %s452, %s454
      %p461 = scmp.eq.s32.totalorder %s87, 1
      %p462 = por %p460, %p461
      %p463 = scmp.ne.s32.totalorder %s454, %s455
      %p464 = scmp.eq.s32.totalorder %s87, 0
      %p465 = por %p463, %p464
      %p466 = scmp.ne.s32.totalorder %s454, %s455
      %p467 = scmp.eq.s32.totalorder %s88, 1
      %p468 = por %p466, %p467
      %p470 = scmp.ne.s32.totalorder %s455, %s469
      %p471 = scmp.eq.s32.totalorder %s88, 0
      %p472 = por %p470, %p471
      %s474 = sadd.s32 %s473, 1
      %p477 = scmp.eq.s32.totalorder %s82, 1
      %p478 = scmp.ne.s32.totalorder %s473, %s475
      %p479 = scmp.eq.s32.totalorder %s82, 0
      %p480 = por %p478, %p479
      %p481 = scmp.ne.s32.totalorder %s473, %s475
      %p482 = scmp.eq.s32.totalorder %s87, 1
      %p483 = por %p481, %p482
      %p484 = scmp.ne.s32.totalorder %s475, %s476
      %p485 = scmp.eq.s32.totalorder %s87, 0
      %p486 = por %p484, %p485
      %p487 = scmp.ne.s32.totalorder %s475, %s476
      %p488 = scmp.eq.s32.totalorder %s88, 1
      %p489 = por %p487, %p488
      %p491 = scmp.ne.s32.totalorder %s476, %s490
      %p492 = scmp.eq.s32.totalorder %s88, 0
      %p493 = por %p491, %p492
      %s495 = sadd.s32 %s494, 1
      %p498 = scmp.eq.s32.totalorder %s82, 1
      %p499 = scmp.ne.s32.totalorder %s494, %s496
      %p500 = scmp.eq.s32.totalorder %s82, 0
      %p501 = por %p499, %p500
      %p502 = scmp.ne.s32.totalorder %s494, %s496
      %p503 = scmp.eq.s32.totalorder %s87, 1
      %p504 = por %p502, %p503
      %p505 = scmp.ne.s32.totalorder %s496, %s497
      %p506 = scmp.eq.s32.totalorder %s87, 0
      %p507 = por %p505, %p506
      %p508 = scmp.ne.s32.totalorder %s496, %s497
      %p509 = scmp.eq.s32.totalorder %s88, 1
      %p510 = por %p508, %p509
      %p512 = scmp.ne.s32.totalorder %s497, %s511
      %p513 = scmp.eq.s32.totalorder %s88, 0
      %p514 = por %p512, %p513
      %s516 = sadd.s32 %s515, 1
      %p519 = scmp.eq.s32.totalorder %s82, 1
      %p520 = scmp.ne.s32.totalorder %s515, %s517
      %p521 = scmp.eq.s32.totalorder %s82, 0
      %p522 = por %p520, %p521
      %p523 = scmp.ne.s32.totalorder %s515, %s517
      %p524 = scmp.eq.s32.totalorder %s87, 1
      %p525 = por %p523, %p524
      %p526 = scmp.ne.s32.totalorder %s517, %s518
      %p527 = scmp.eq.s32.totalorder %s87, 0
      %p528 = por %p526, %p527
      %p529 = scmp.ne.s32.totalorder %s517, %s518
      %p530 = scmp.eq.s32.totalorder %s88, 1
      %p531 = por %p529, %p530
      %p533 = scmp.ne.s32.totalorder %s518, %s532
      %p534 = scmp.eq.s32.totalorder %s88, 0
      %p535 = por %p533, %p534
      %s537 = sadd.s32 %s536, 1
      %p540 = scmp.eq.s32.totalorder %s82, 1
      %p541 = scmp.ne.s32.totalorder %s536, %s538
      %p542 = scmp.eq.s32.totalorder %s82, 0
      %p543 = por %p541, %p542
      %p544 = scmp.ne.s32.totalorder %s536, %s538
      %p545 = scmp.eq.s32.totalorder %s87, 1
      %p546 = por %p544, %p545
      %p547 = scmp.ne.s32.totalorder %s538, %s539
      %p548 = scmp.eq.s32.totalorder %s87, 0
      %p549 = por %p547, %p548
      %p550 = scmp.ne.s32.totalorder %s538, %s539
      %p551 = scmp.eq.s32.totalorder %s88, 1
      %p552 = por %p550, %p551
      %p554 = scmp.ne.s32.totalorder %s539, %s553
      %p555 = scmp.eq.s32.totalorder %s88, 0
      %p556 = por %p554, %p555
      %s558 = sadd.s32 %s557, 1
      %p561 = scmp.eq.s32.totalorder %s82, 1
      %p562 = scmp.ne.s32.totalorder %s557, %s559
      %p563 = scmp.eq.s32.totalorder %s82, 0
      %p564 = por %p562, %p563
      %p565 = scmp.ne.s32.totalorder %s557, %s559
      %p566 = scmp.eq.s32.totalorder %s87, 1
      %p567 = por %p565, %p566
      %p568 = scmp.ne.s32.totalorder %s559, %s560
      %p569 = scmp.eq.s32.totalorder %s87, 0
      %p570 = por %p568, %p569
      %p571 = scmp.ne.s32.totalorder %s559, %s560
      %p572 = scmp.eq.s32.totalorder %s88, 1
      %p573 = por %p571, %p572
      %p575 = scmp.ne.s32.totalorder %s560, %s574
      %p576 = scmp.eq.s32.totalorder %s88, 0
      %p577 = por %p575, %p576
      %s579 = sadd.s32 %s578, 1
      %p582 = scmp.eq.s32.totalorder %s82, 1
      %p583 = scmp.ne.s32.totalorder %s578, %s580
      %p584 = scmp.eq.s32.totalorder %s82, 0
      %p585 = por %p583, %p584
      %p586 = scmp.ne.s32.totalorder %s578, %s580
      %p587 = scmp.eq.s32.totalorder %s87, 1
      %p588 = por %p586, %p587
      %p589 = scmp.ne.s32.totalorder %s580, %s581
      %p590 = scmp.eq.s32.totalorder %s87, 0
      %p591 = por %p589, %p590
      %p592 = scmp.ne.s32.totalorder %s580, %s581
      %p593 = scmp.eq.s32.totalorder %s88, 1
      %p594 = por %p592, %p593
      %p596 = scmp.ne.s32.totalorder %s581, %s595
      %p597 = scmp.eq.s32.totalorder %s88, 0
      %p598 = por %p596, %p597
      %s600 = sadd.s32 %s599, 1
      %p603 = scmp.eq.s32.totalorder %s82, 1
      %p604 = scmp.ne.s32.totalorder %s599, %s601
      %p605 = scmp.eq.s32.totalorder %s82, 0
      %p606 = por %p604, %p605
      %p607 = scmp.ne.s32.totalorder %s599, %s601
      %p608 = scmp.eq.s32.totalorder %s87, 1
      %p609 = por %p607, %p608
      %p610 = scmp.ne.s32.totalorder %s601, %s602
      %p611 = scmp.eq.s32.totalorder %s87, 0
      %p612 = por %p610, %p611
      %p613 = scmp.ne.s32.totalorder %s601, %s602
      %p614 = scmp.eq.s32.totalorder %s88, 1
      %p615 = por %p613, %p614
      %p617 = scmp.ne.s32.totalorder %s602, %s616
      %p618 = scmp.eq.s32.totalorder %s88, 0
      %p619 = por %p617, %p618
      %s621 = sadd.s32 %s620, 1
      %p624 = scmp.eq.s32.totalorder %s82, 1
      %p625 = scmp.ne.s32.totalorder %s620, %s622
      %p626 = scmp.eq.s32.totalorder %s82, 0
      %p627 = por %p625, %p626
      %p628 = scmp.ne.s32.totalorder %s620, %s622
      %p629 = scmp.eq.s32.totalorder %s87, 1
      %p630 = por %p628, %p629
      %p631 = scmp.ne.s32.totalorder %s622, %s623
      %p632 = scmp.eq.s32.totalorder %s87, 0
      %p633 = por %p631, %p632
      %p634 = scmp.ne.s32.totalorder %s622, %s623
      %p635 = scmp.eq.s32.totalorder %s88, 1
      %p636 = por %p634, %p635
      %p638 = scmp.ne.s32.totalorder %s623, %s637
      %p639 = scmp.eq.s32.totalorder %s88, 0
      %p640 = por %p638, %p639
      %s642 = sadd.s32 %s641, 1
      %p645 = scmp.eq.s32.totalorder %s82, 1
      %p646 = scmp.ne.s32.totalorder %s641, %s643
      %p647 = scmp.eq.s32.totalorder %s82, 0
      %p648 = por %p646, %p647
      %p649 = scmp.ne.s32.totalorder %s641, %s643
      %p650 = scmp.eq.s32.totalorder %s87, 1
      %p651 = por %p649, %p650
      %p652 = scmp.ne.s32.totalorder %s643, %s644
      %p653 = scmp.eq.s32.totalorder %s87, 0
      %p654 = por %p652, %p653
      %p655 = scmp.ne.s32.totalorder %s643, %s644
      %p656 = scmp.eq.s32.totalorder %s88, 1
      %p657 = por %p655, %p656
      %p659 = scmp.ne.s32.totalorder %s644, %s658
      %p660 = scmp.eq.s32.totalorder %s88, 0
      %p661 = por %p659, %p660
      %s663 = sadd.s32 %s662, 1
      %p666 = scmp.eq.s32.totalorder %s82, 1
      %p667 = scmp.ne.s32.totalorder %s662, %s664
      %p668 = scmp.eq.s32.totalorder %s82, 0
      %p669 = por %p667, %p668
      %p670 = scmp.ne.s32.totalorder %s662, %s664
      %p671 = scmp.eq.s32.totalorder %s87, 1
      %p672 = por %p670, %p671
      %p673 = scmp.ne.s32.totalorder %s664, %s665
      %p674 = scmp.eq.s32.totalorder %s87, 0
      %p675 = por %p673, %p674
      %p676 = scmp.ne.s32.totalorder %s664, %s665
      %p677 = scmp.eq.s32.totalorder %s88, 1
      %p678 = por %p676, %p677
      %p680 = scmp.ne.s32.totalorder %s665, %s679
      %p681 = scmp.eq.s32.totalorder %s88, 0
      %p682 = por %p680, %p681
      %s684 = sadd.s32 %s683, 1
      %p687 = scmp.eq.s32.totalorder %s82, 1
      %p688 = scmp.ne.s32.totalorder %s683, %s685
      %p689 = scmp.eq.s32.totalorder %s82, 0
      %p690 = por %p688, %p689
      %p691 = scmp.ne.s32.totalorder %s683, %s685
      %p692 = scmp.eq.s32.totalorder %s87, 1
      %p693 = por %p691, %p692
      %p694 = scmp.ne.s32.totalorder %s685, %s686
      %p695 = scmp.eq.s32.totalorder %s87, 0
      %p696 = por %p694, %p695
      %p697 = scmp.ne.s32.totalorder %s685, %s686
      %p698 = scmp.eq.s32.totalorder %s88, 1
      %p699 = por %p697, %p698
      %p701 = scmp.ne.s32.totalorder %s686, %s700
      %p702 = scmp.eq.s32.totalorder %s88, 0
      %p703 = por %p701, %p702
      %s705 = sadd.s32 %s704, 1
      %p708 = scmp.eq.s32.totalorder %s82, 1
      %p709 = scmp.ne.s32.totalorder %s704, %s706
      %p710 = scmp.eq.s32.totalorder %s82, 0
      %p711 = por %p709, %p710
      %p712 = scmp.ne.s32.totalorder %s704, %s706
      %p713 = scmp.eq.s32.totalorder %s87, 1
      %p714 = por %p712, %p713
      %p715 = scmp.ne.s32.totalorder %s706, %s707
      %p716 = scmp.eq.s32.totalorder %s87, 0
      %p717 = por %p715, %p716
      %p718 = scmp.ne.s32.totalorder %s706, %s707
      %p719 = scmp.eq.s32.totalorder %s88, 1
      %p720 = por %p718, %p719
      %p722 = scmp.ne.s32.totalorder %s707, %s721
      %p723 = scmp.eq.s32.totalorder %s88, 0
      %p724 = por %p722, %p723
      %s726 = sadd.s32 %s725, 1
      %p729 = scmp.eq.s32.totalorder %s82, 1
      %p730 = scmp.ne.s32.totalorder %s725, %s727
      %p731 = scmp.eq.s32.totalorder %s82, 0
      %p732 = por %p730, %p731
      %p733 = scmp.ne.s32.totalorder %s725, %s727
      %p734 = scmp.eq.s32.totalorder %s87, 1
      %p735 = por %p733, %p734
      %p736 = scmp.ne.s32.totalorder %s727, %s728
      %p737 = scmp.eq.s32.totalorder %s87, 0
      %p738 = por %p736, %p737
      %p739 = scmp.ne.s32.totalorder %s727, %s728
      %p740 = scmp.eq.s32.totalorder %s88, 1
      %p741 = por %p739, %p740
      %p743 = scmp.ne.s32.totalorder %s728, %s742
      %p744 = scmp.eq.s32.totalorder %s88, 0
      %p745 = por %p743, %p744
      %s747 = sadd.s32 %s746, 1
      %p750 = scmp.eq.s32.totalorder %s82, 1
      %p751 = scmp.ne.s32.totalorder %s746, %s748
      %p752 = scmp.eq.s32.totalorder %s82, 0
      %p753 = por %p751, %p752
      %p754 = scmp.ne.s32.totalorder %s746, %s748
      %p755 = scmp.eq.s32.totalorder %s87, 1
      %p756 = por %p754, %p755
      %p757 = scmp.ne.s32.totalorder %s748, %s749
      %p758 = scmp.eq.s32.totalorder %s87, 0
      %p759 = por %p757, %p758
      %p760 = scmp.ne.s32.totalorder %s748, %s749
      %p761 = scmp.eq.s32.totalorder %s88, 1
      %p762 = por %p760, %p761
      %p764 = scmp.ne.s32.totalorder %s749, %s763
      %p765 = scmp.eq.s32.totalorder %s88, 0
      %p766 = por %p764, %p765
      %s768 = sadd.s32 %s767, 1
      %p771 = scmp.eq.s32.totalorder %s82, 1
      %p772 = scmp.ne.s32.totalorder %s767, %s769
      %p773 = scmp.eq.s32.totalorder %s82, 0
      %p774 = por %p772, %p773
      %p775 = scmp.ne.s32.totalorder %s767, %s769
      %p776 = scmp.eq.s32.totalorder %s87, 1
      %p777 = por %p775, %p776
      %p778 = scmp.ne.s32.totalorder %s769, %s770
      %p779 = scmp.eq.s32.totalorder %s87, 0
      %p780 = por %p778, %p779
      %p781 = scmp.ne.s32.totalorder %s769, %s770
      %p782 = scmp.eq.s32.totalorder %s88, 1
      %p783 = por %p781, %p782
      %p785 = scmp.ne.s32.totalorder %s770, %s784
      %p786 = scmp.eq.s32.totalorder %s88, 0
      %p787 = por %p785, %p786
      %s789 = sadd.s32 %s788, 1
      %p792 = scmp.eq.s32.totalorder %s82, 1
      %p793 = scmp.ne.s32.totalorder %s788, %s790
      %p794 = scmp.eq.s32.totalorder %s82, 0
      %p795 = por %p793, %p794
      %p796 = scmp.ne.s32.totalorder %s788, %s790
      %p797 = scmp.eq.s32.totalorder %s87, 1
      %p798 = por %p796, %p797
      %p799 = scmp.ne.s32.totalorder %s790, %s791
      %p800 = scmp.eq.s32.totalorder %s87, 0
      %p801 = por %p799, %p800
      %p802 = scmp.ne.s32.totalorder %s790, %s791
      %p803 = scmp.eq.s32.totalorder %s88, 1
      %p804 = por %p802, %p803
      %p806 = scmp.ne.s32.totalorder %s791, %s805
      %p807 = scmp.eq.s32.totalorder %s88, 0
      %p808 = por %p806, %p807
      %s809 = ssub.s32 %s82, %s89
      %p810 = scmp.eq.s32.totalorder %s809, 0
      %s812 = sadd.s32 %s811, 1
      %s813 = scalar_select %p810, %s811, %s812
      %p816 = pneg %p810
      %p817 = scmp.eq.s32.totalorder %s82, 1
      %p818 = por %p816, %p817
      %p819 = scmp.ne.s32.totalorder %s811, %s814
      %p820 = scmp.eq.s32.totalorder %s82, 0
      %p821 = por %p819, %p820
      %p822 = scmp.ne.s32.totalorder %s811, %s814
      %p823 = scmp.eq.s32.totalorder %s87, 1
      %p824 = por %p822, %p823
      %p825 = scmp.ne.s32.totalorder %s814, %s815
      %p826 = scmp.eq.s32.totalorder %s87, 0
      %p827 = por %p825, %p826
      %p828 = scmp.ne.s32.totalorder %s814, %s815
      %p829 = scmp.eq.s32.totalorder %s88, 1
      %p830 = por %p828, %p829
      %p832 = scmp.ne.s32.totalorder %s815, %s831
      %p833 = scmp.eq.s32.totalorder %s88, 0
      %p834 = por %p832, %p833
      %p835 = scmp.le.s32.totalorder 1, %s82
      %p836 = scmp.lt.s32.totalorder %s82, 3
      %p837 = pnand %p835, %p836
      %p838 = pneg %p837
      // Predicated region
      $region9: #{_lambda_.1} parent=5 // pred_check
        _
      $region10: #{_lambda_.1} parent=5 // pred_check_branch
        %840 = sbr.rel (%p837) target = $region12
      $region11: #{_lambda_.1} parent=5 // pred_region
        %s841 = ssub.s32 %s82, 1
        // Predicated region
        $region13: #{_lambda_.1} parent=11 // pred_check
          %p842 = pneg %p129
        $region14: #{_lambda_.1} parent=11 // pred_check_branch
          %844 = sbr.rel (%p842) target = $region16
        $region15: #{_lambda_.1} parent=11 // pred_region
          %846 = vsyncadd [#allocation3], 0
          %s848 = sshll.u32 %s3, 4
          %s849 = int_to_ptr.hbm [resolvable:$true] %s848
          %s850 = sshll.u32 [#allocation2], 4
          %s851 = int_to_ptr.vmem [resolvable:$true] %s850
          %853 = dma.hbm_to_vmem [thread:$0]  %s849, 128, %s851, [#allocation3]
        $region16: #{_lambda_.1} parent=11 // pred_fallthru
          _
        // Predicated region
        $region17: #{_lambda_.1} parent=11 // pred_check
          %p854 = pneg %p150
        $region18: #{_lambda_.1} parent=11 // pred_check_branch
          %856 = sbr.rel (%p854) target = $region20
        $region19: #{_lambda_.1} parent=11 // pred_region
          _
        $region20: #{_lambda_.1} parent=11 // pred_fallthru
          _
        // Predicated region
        $region21: #{_lambda_.1} parent=11 // pred_check
          %p857 = pneg %p171
        $region22: #{_lambda_.1} parent=11 // pred_check_branch
          %859 = sbr.rel (%p857) target = $region24
        $region23: #{_lambda_.1} parent=11 // pred_region
          %861 = vsyncadd [#allocation5], 0
          %s863 = sshll.u32 %s7, 4
          %s864 = int_to_ptr.hbm [resolvable:$true] %s863
          %s865 = sshll.u32 [#allocation4], 4
          %s866 = int_to_ptr.vmem [resolvable:$true] %s865
          %868 = dma.hbm_to_vmem [thread:$0]  %s864, 128, %s866, [#allocation5]
        $region24: #{_lambda_.1} parent=11 // pred_fallthru
          _
        // Predicated region
        $region25: #{_lambda_.1} parent=11 // pred_check
          %p869 = pneg %p192
        $region26: #{_lambda_.1} parent=11 // pred_check_branch
          %871 = sbr.rel (%p869) target = $region28
        $region27: #{_lambda_.1} parent=11 // pred_region
          _
        $region28: #{_lambda_.1} parent=11 // pred_fallthru
          _
        // Predicated region
        $region29: #{_lambda_.1} parent=11 // pred_check
          %p872 = pneg %p213
        $region30: #{_lambda_.1} parent=11 // pred_check_branch
          %874 = sbr.rel (%p872) target = $region32
        $region31: #{_lambda_.1} parent=11 // pred_region
          %876 = vsyncadd [#allocation5], 0
          %s878 = sshll.u32 %s11, 4
          %s879 = int_to_ptr.hbm [resolvable:$true] %s878
          %s880 = sshll.u32 [#allocation6], 4
          %s881 = int_to_ptr.vmem [resolvable:$true] %s880
          %883 = dma.hbm_to_vmem [thread:$0]  %s879, 128, %s881, [#allocation5]
        $region32: #{_lambda_.1} parent=11 // pred_fallthru
          _
        // Predicated region
        $region33: #{_lambda_.1} parent=11 // pred_check
          %p884 = pneg %p234
        $region34: #{_lambda_.1} parent=11 // pred_check_branch
          %886 = sbr.rel (%p884) target = $region36
        $region35: #{_lambda_.1} parent=11 // pred_region
          _
        $region36: #{_lambda_.1} parent=11 // pred_fallthru
          _
        // Predicated region
        $region37: #{_lambda_.1} parent=11 // pred_check
          %p887 = pneg %p255
        $region38: #{_lambda_.1} parent=11 // pred_check_branch
          %889 = sbr.rel (%p887) target = $region40
        $region39: #{_lambda_.1} parent=11 // pred_region
          _
        $region40: #{_lambda_.1} parent=11 // pred_fallthru
          _
        // Predicated region
        $region41: #{_lambda_.1} parent=11 // pred_check
          %p890 = pneg %p276
        $region42: #{_lambda_.1} parent=11 // pred_check_branch
          %892 = sbr.rel (%p890) target = $region44
        $region43: #{_lambda_.1} parent=11 // pred_region
          _
        $region44: #{_lambda_.1} parent=11 // pred_fallthru
          _
        // Predicated region
        $region45: #{_lambda_.1} parent=11 // pred_check
          %p893 = pneg %p297
        $region46: #{_lambda_.1} parent=11 // pred_check_branch
          %895 = sbr.rel (%p893) target = $region48
        $region47: #{_lambda_.1} parent=11 // pred_region
          %897 = vsyncadd [#allocation8], 0
          %s899 = sshll.u32 %s19, 4
          %s900 = int_to_ptr.hbm [resolvable:$true] %s899
          %s901 = sshll.u32 [#allocation7], 4
          %s902 = int_to_ptr.vmem [resolvable:$true] %s901
          %904 = dma.hbm_to_vmem [thread:$0]  %s900, 32, %s902, [#allocation8]
        $region48: #{_lambda_.1} parent=11 // pred_fallthru
          _
        // Predicated region
        $region49: #{_lambda_.1} parent=11 // pred_check
          %p905 = pneg %p318
        $region50: #{_lambda_.1} parent=11 // pred_check_branch
          %907 = sbr.rel (%p905) target = $region52
        $region51: #{_lambda_.1} parent=11 // pred_region
          _
        $region52: #{_lambda_.1} parent=11 // pred_fallthru
          _
        // Predicated region
        $region53: #{_lambda_.1} parent=11 // pred_check
          %p908 = pneg %p339
        $region54: #{_lambda_.1} parent=11 // pred_check_branch
          %910 = sbr.rel (%p908) target = $region56
        $region55: #{_lambda_.1} parent=11 // pred_region
          %912 = vsyncadd [#allocation8], 0
          %s913 = sshll.u32 %s23, 4
          %s914 = int_to_ptr.hbm [resolvable:$true] %s913
          %s915 = sshll.u32 [#allocation9], 4
          %s916 = int_to_ptr.vmem [resolvable:$true] %s915
          %921 = dma.hbm_to_vmem [thread:$0]  %s914, 256, %s916, [#allocation8], 128, 128, 8
        $region56: #{_lambda_.1} parent=11 // pred_fallthru
          _
        // Predicated region
        $region57: #{_lambda_.1} parent=11 // pred_check
          %p922 = pneg %p360
        $region58: #{_lambda_.1} parent=11 // pred_check_branch
          %924 = sbr.rel (%p922) target = $region60
        $region59: #{_lambda_.1} parent=11 // pred_region
          %926 = vsyncadd [#allocation11], 0
          %s928 = sshll.u32 %s25, 4
          %s929 = int_to_ptr.hbm [resolvable:$true] %s928
          %s930 = sshll.u32 [#allocation10], 4
          %s931 = int_to_ptr.vmem [resolvable:$true] %s930
          %933 = dma.hbm_to_vmem [thread:$0]  %s929, 128, %s931, [#allocation11]
        $region60: #{_lambda_.1} parent=11 // pred_fallthru
          _
        // Predicated region
        $region61: #{_lambda_.1} parent=11 // pred_check
          %p934 = pneg %p381
        $region62: #{_lambda_.1} parent=11 // pred_check_branch
          %936 = sbr.rel (%p934) target = $region64
        $region63: #{_lambda_.1} parent=11 // pred_region
          _
        $region64: #{_lambda_.1} parent=11 // pred_fallthru
          _
        // Predicated region
        $region65: #{_lambda_.1} parent=11 // pred_check
          %p937 = pneg %p402
        $region66: #{_lambda_.1} parent=11 // pred_check_branch
          %939 = sbr.rel (%p937) target = $region68
        $region67: #{_lambda_.1} parent=11 // pred_region
          %941 = vsyncadd [#allocation11], 0
          %s943 = sshll.u32 %s29, 4
          %s944 = int_to_ptr.hbm [resolvable:$true] %s943
          %s945 = sshll.u32 [#allocation12], 4
          %s946 = int_to_ptr.vmem [resolvable:$true] %s945
          %948 = dma.hbm_to_vmem [thread:$0]  %s944, 128, %s946, [#allocation11]
        $region68: #{_lambda_.1} parent=11 // pred_fallthru
          _
        // Predicated region
        $region69: #{_lambda_.1} parent=11 // pred_check
          %p949 = pneg %p423
        $region70: #{_lambda_.1} parent=11 // pred_check_branch
          %951 = sbr.rel (%p949) target = $region72
        $region71: #{_lambda_.1} parent=11 // pred_region
          _
        $region72: #{_lambda_.1} parent=11 // pred_fallthru
          _
        // Predicated region
        $region73: #{_lambda_.1} parent=11 // pred_check
          %p952 = pneg %p444
        $region74: #{_lambda_.1} parent=11 // pred_check_branch
          %954 = sbr.rel (%p952) target = $region76
        $region75: #{_lambda_.1} parent=11 // pred_region
          %956 = vsyncadd [#allocation14], 0
          %s958 = sshll.u32 %s33, 4
          %s959 = int_to_ptr.hbm [resolvable:$true] %s958
          %s960 = sshll.u32 [#allocation13], 4
          %s961 = int_to_ptr.vmem [resolvable:$true] %s960
          %963 = dma.hbm_to_vmem [thread:$0]  %s959, 128, %s961, [#allocation14]
        $region76: #{_lambda_.1} parent=11 // pred_fallthru
          _
        // Predicated region
        $region77: #{_lambda_.1} parent=11 // pred_check
          %p964 = pneg %p465
        $region78: #{_lambda_.1} parent=11 // pred_check_branch
          %966 = sbr.rel (%p964) target = $region80
        $region79: #{_lambda_.1} parent=11 // pred_region
          _
        $region80: #{_lambda_.1} parent=11 // pred_fallthru
          _
        // Predicated region
        $region81: #{_lambda_.1} parent=11 // pred_check
          %p967 = pneg %p486
        $region82: #{_lambda_.1} parent=11 // pred_check_branch
          %969 = sbr.rel (%p967) target = $region84
        $region83: #{_lambda_.1} parent=11 // pred_region
          _
        $region84: #{_lambda_.1} parent=11 // pred_fallthru
          _
        // Predicated region
        $region85: #{_lambda_.1} parent=11 // pred_check
          %p970 = pneg %p507
        $region86: #{_lambda_.1} parent=11 // pred_check_branch
          %972 = sbr.rel (%p970) target = $region88
        $region87: #{_lambda_.1} parent=11 // pred_region
          _
        $region88: #{_lambda_.1} parent=11 // pred_fallthru
          _
        // Predicated region
        $region89: #{_lambda_.1} parent=11 // pred_check
          %p973 = pneg %p528
        $region90: #{_lambda_.1} parent=11 // pred_check_branch
          %975 = sbr.rel (%p973) target = $region92
        $region91: #{_lambda_.1} parent=11 // pred_region
          %977 = vsyncadd [#allocation14], 0
          %s979 = sshll.u32 %s41, 4
          %s980 = int_to_ptr.hbm [resolvable:$true] %s979
          %s981 = sshll.u32 [#allocation15], 4
          %s982 = int_to_ptr.vmem [resolvable:$true] %s981
          %984 = dma.hbm_to_vmem [thread:$0]  %s980, 32, %s982, [#allocation14]
        $region92: #{_lambda_.1} parent=11 // pred_fallthru
          _
        // Predicated region
        $region93: #{_lambda_.1} parent=11 // pred_check
          %p985 = pneg %p549
        $region94: #{_lambda_.1} parent=11 // pred_check_branch
          %987 = sbr.rel (%p985) target = $region96
        $region95: #{_lambda_.1} parent=11 // pred_region
          _
        $region96: #{_lambda_.1} parent=11 // pred_fallthru
          _
        // Predicated region
        $region97: #{_lambda_.1} parent=11 // pred_check
          %p988 = pneg %p570
        $region98: #{_lambda_.1} parent=11 // pred_check_branch
          %990 = sbr.rel (%p988) target = $region100
        $region99: #{_lambda_.1} parent=11 // pred_region
          %992 = vsyncadd [#allocation17], 0
          %s993 = sshll.u32 %s45, 4
          %s994 = int_to_ptr.hbm [resolvable:$true] %s993
          %s995 = sshll.u32 [#allocation16], 4
          %s996 = int_to_ptr.vmem [resolvable:$true] %s995
          %1001 = dma.hbm_to_vmem [thread:$0]  %s994, 2048, %s996, [#allocation17], 256, 256, 16
        $region100: #{_lambda_.1} parent=11 // pred_fallthru
          _
        // Predicated region
        $region101: #{_lambda_.1} parent=11 // pred_check
          %p1002 = pneg %p591
        $region102: #{_lambda_.1} parent=11 // pred_check_branch
          %1004 = sbr.rel (%p1002) target = $region104
        $region103: #{_lambda_.1} parent=11 // pred_region
          %1006 = vsyncadd [#allocation17], 0
          %s1008 = sshll.u32 %s47, 4
          %s1009 = int_to_ptr.hbm [resolvable:$true] %s1008
          %s1010 = sshll.u32 [#allocation18], 4
          %s1011 = int_to_ptr.vmem [resolvable:$true] %s1010
          %1013 = dma.hbm_to_vmem [thread:$0]  %s1009, 128, %s1011, [#allocation17]
        $region104: #{_lambda_.1} parent=11 // pred_fallthru
          _
        // Predicated region
        $region105: #{_lambda_.1} parent=11 // pred_check
          %p1014 = pneg %p612
        $region106: #{_lambda_.1} parent=11 // pred_check_branch
          %1016 = sbr.rel (%p1014) target = $region108
        $region107: #{_lambda_.1} parent=11 // pred_region
          _
        $region108: #{_lambda_.1} parent=11 // pred_fallthru
          _
        // Predicated region
        $region109: #{_lambda_.1} parent=11 // pred_check
          %p1017 = pneg %p633
        $region110: #{_lambda_.1} parent=11 // pred_check_branch
          %1019 = sbr.rel (%p1017) target = $region112
        $region111: #{_lambda_.1} parent=11 // pred_region
          _
        $region112: #{_lambda_.1} parent=11 // pred_fallthru
          _
        // Predicated region
        $region113: #{_lambda_.1} parent=11 // pred_check
          %p1020 = pneg %p654
        $region114: #{_lambda_.1} parent=11 // pred_check_branch
          %1022 = sbr.rel (%p1020) target = $region116
        $region115: #{_lambda_.1} parent=11 // pred_region
          _
        $region116: #{_lambda_.1} parent=11 // pred_fallthru
          _
        // Predicated region
        $region117: #{_lambda_.1} parent=11 // pred_check
          %p1023 = pneg %p675
        $region118: #{_lambda_.1} parent=11 // pred_check_branch
          %1025 = sbr.rel (%p1023) target = $region120
        $region119: #{_lambda_.1} parent=11 // pred_region
          _
        $region120: #{_lambda_.1} parent=11 // pred_fallthru
          _
        // Predicated region
        $region121: #{_lambda_.1} parent=11 // pred_check
          %p1026 = pneg %p696
        $region122: #{_lambda_.1} parent=11 // pred_check_branch
          %1028 = sbr.rel (%p1026) target = $region124
        $region123: #{_lambda_.1} parent=11 // pred_region
          _
        $region124: #{_lambda_.1} parent=11 // pred_fallthru
          _
        // Predicated region
        $region125: #{_lambda_.1} parent=11 // pred_check
          %p1029 = pneg %p717
        $region126: #{_lambda_.1} parent=11 // pred_check_branch
          %1031 = sbr.rel (%p1029) target = $region128
        $region127: #{_lambda_.1} parent=11 // pred_region
          _
        $region128: #{_lambda_.1} parent=11 // pred_fallthru
          _
        // Predicated region
        $region129: #{_lambda_.1} parent=11 // pred_check
          %p1032 = pneg %p738
        $region130: #{_lambda_.1} parent=11 // pred_check_branch
          %1034 = sbr.rel (%p1032) target = $region132
        $region131: #{_lambda_.1} parent=11 // pred_region
          _
        $region132: #{_lambda_.1} parent=11 // pred_fallthru
          _
        // Predicated region
        $region133: #{_lambda_.1} parent=11 // pred_check
          %p1035 = pneg %p759
        $region134: #{_lambda_.1} parent=11 // pred_check_branch
          %1037 = sbr.rel (%p1035) target = $region136
        $region135: #{_lambda_.1} parent=11 // pred_region
          %1039 = vsyncadd [#allocation20], 0
          %s1041 = sshll.u32 %s63, 4
          %s1042 = int_to_ptr.hbm [resolvable:$true] %s1041
          %s1043 = sshll.u32 [#allocation19], 4
          %s1044 = int_to_ptr.vmem [resolvable:$true] %s1043
          %1046 = dma.hbm_to_vmem [thread:$0]  %s1042, 64, %s1044, [#allocation20]
        $region136: #{_lambda_.1} parent=11 // pred_fallthru
          _
        // Predicated region
        $region137: #{_lambda_.1} parent=11 // pred_check
          %p1047 = pneg %p780
        $region138: #{_lambda_.1} parent=11 // pred_check_branch
          %1049 = sbr.rel (%p1047) target = $region140
        $region139: #{_lambda_.1} parent=11 // pred_region
          _
        $region140: #{_lambda_.1} parent=11 // pred_fallthru
          _
        // Predicated region
        $region141: #{_lambda_.1} parent=11 // pred_check
          %p1050 = pneg %p801
        $region142: #{_lambda_.1} parent=11 // pred_check_branch
          %1052 = sbr.rel (%p1050) target = $region144
        $region143: #{_lambda_.1} parent=11 // pred_region
          _
        $region144: #{_lambda_.1} parent=11 // pred_fallthru
          _
      $region12: #{_lambda_.1} parent=5 // pred_fallthru
        _
      %p1053 = scmp.lt.s32.totalorder %s82, 2
      // Predicated region
      $region145: #{_lambda_.1} parent=5 // pred_check
        %p1054 = pneg %p1053
      $region146: #{_lambda_.1} parent=5 // pred_check_branch
        %1056 = sbr.rel (%p1054) target = $region148
      $region147: #{_lambda_.1} parent=5 // pred_region
        // Predicated region
        $region149: #{_lambda_.1} parent=147 // pred_check
          %p1057 = pneg %p102
        $region150: #{_lambda_.1} parent=147 // pred_check_branch
          %1059 = sbr.rel (%p1057) target = $region152
        $region151: #{_lambda_.1} parent=147 // pred_region
          %p1060 = scmp.lt.s32.totalorder %s82, 1
          %s1061 = scalar_select %p1060, %s82, 1
          %s1062 = smul.addr %s1061, 2
          %s1063 = smul.addr %s1062, 8
          %s1064 = scalar_lea.vmem %s1, %s1063
        $region152: #{_lambda_.1} parent=147 // pred_fallthru
          _
      $region148: #{_lambda_.1} parent=5 // pred_fallthru
        _
      %p1065 = scmp.le.s32.totalorder 1, %s82
      %p1066 = scmp.lt.s32.totalorder %s82, 3
      %p1067 = pnand %p1065, %p1066
      %p1068 = pneg %p1067
      // Predicated region
      $region153: #{_lambda_.1} parent=5 // pred_check
        _
      $region154: #{_lambda_.1} parent=5 // pred_check_branch
        %1070 = sbr.rel (%p1067) target = $region156
      $region155: #{_lambda_.1} parent=5 // pred_region
        %s1071 = ssub.s32 %s82, 1
        // Predicated region
        $region157: #{_lambda_.1} parent=155 // pred_check
          %p1072 = pneg %p129
        $region158: #{_lambda_.1} parent=155 // pred_check_branch
          %1074 = sbr.rel (%p1072) target = $region160
        $region159: #{_lambda_.1} parent=155 // pred_region
          %1076 = dma.done [#allocation3], 128
        $region160: #{_lambda_.1} parent=155 // pred_fallthru
          _
        // Predicated region
        $region161: #{_lambda_.1} parent=155 // pred_check
          %p1077 = pneg %p171
        $region162: #{_lambda_.1} parent=155 // pred_check_branch
          %1079 = sbr.rel (%p1077) target = $region164
        $region163: #{_lambda_.1} parent=155 // pred_region
          %1081 = dma.done [#allocation5], 128
        $region164: #{_lambda_.1} parent=155 // pred_fallthru
          _
        // Predicated region
        $region165: #{_lambda_.1} parent=155 // pred_check
          %p1082 = pneg %p213
        $region166: #{_lambda_.1} parent=155 // pred_check_branch
          %1084 = sbr.rel (%p1082) target = $region168
        $region167: #{_lambda_.1} parent=155 // pred_region
          %1086 = dma.done [#allocation5], 128
        $region168: #{_lambda_.1} parent=155 // pred_fallthru
          _
        // Predicated region
        $region169: #{_lambda_.1} parent=155 // pred_check
          %p1087 = pneg %p297
        $region170: #{_lambda_.1} parent=155 // pred_check_branch
          %1089 = sbr.rel (%p1087) target = $region172
        $region171: #{_lambda_.1} parent=155 // pred_region
          %1091 = dma.done [#allocation8], 32
        $region172: #{_lambda_.1} parent=155 // pred_fallthru
          _
        // Predicated region
        $region173: #{_lambda_.1} parent=155 // pred_check
          %p1092 = pneg %p339
        $region174: #{_lambda_.1} parent=155 // pred_check_branch
          %1094 = sbr.rel (%p1092) target = $region176
        $region175: #{_lambda_.1} parent=155 // pred_region
          %1096 = dma.done [#allocation8], 256
        $region176: #{_lambda_.1} parent=155 // pred_fallthru
          _
        // Predicated region
        $region177: #{_lambda_.1} parent=155 // pred_check
          %p1097 = pneg %p360
        $region178: #{_lambda_.1} parent=155 // pred_check_branch
          %1099 = sbr.rel (%p1097) target = $region180
        $region179: #{_lambda_.1} parent=155 // pred_region
          %1101 = dma.done [#allocation11], 128
        $region180: #{_lambda_.1} parent=155 // pred_fallthru
          _
        // Predicated region
        $region181: #{_lambda_.1} parent=155 // pred_check
          %p1102 = pneg %p402
        $region182: #{_lambda_.1} parent=155 // pred_check_branch
          %1104 = sbr.rel (%p1102) target = $region184
        $region183: #{_lambda_.1} parent=155 // pred_region
          %1106 = dma.done [#allocation11], 128
        $region184: #{_lambda_.1} parent=155 // pred_fallthru
          _
        // Predicated region
        $region185: #{_lambda_.1} parent=155 // pred_check
          %p1107 = pneg %p444
        $region186: #{_lambda_.1} parent=155 // pred_check_branch
          %1109 = sbr.rel (%p1107) target = $region188
        $region187: #{_lambda_.1} parent=155 // pred_region
          %1111 = dma.done [#allocation14], 128
        $region188: #{_lambda_.1} parent=155 // pred_fallthru
          _
        // Predicated region
        $region189: #{_lambda_.1} parent=155 // pred_check
          %p1112 = pneg %p528
        $region190: #{_lambda_.1} parent=155 // pred_check_branch
          %1114 = sbr.rel (%p1112) target = $region192
        $region191: #{_lambda_.1} parent=155 // pred_region
          %1116 = dma.done [#allocation14], 32
        $region192: #{_lambda_.1} parent=155 // pred_fallthru
          _
        // Predicated region
        $region193: #{_lambda_.1} parent=155 // pred_check
          %p1117 = pneg %p570
        $region194: #{_lambda_.1} parent=155 // pred_check_branch
          %1119 = sbr.rel (%p1117) target = $region196
        $region195: #{_lambda_.1} parent=155 // pred_region
          %1121 = dma.done [#allocation17], 2048
        $region196: #{_lambda_.1} parent=155 // pred_fallthru
          _
        // Predicated region
        $region197: #{_lambda_.1} parent=155 // pred_check
          %p1122 = pneg %p591
        $region198: #{_lambda_.1} parent=155 // pred_check_branch
          %1124 = sbr.rel (%p1122) target = $region200
        $region199: #{_lambda_.1} parent=155 // pred_region
          %1126 = dma.done [#allocation17], 128
        $region200: #{_lambda_.1} parent=155 // pred_fallthru
          _
        // Predicated region
        $region201: #{_lambda_.1} parent=155 // pred_check
          %p1127 = pneg %p759
        $region202: #{_lambda_.1} parent=155 // pred_check_branch
          %1129 = sbr.rel (%p1127) target = $region204
        $region203: #{_lambda_.1} parent=155 // pred_region
          %1131 = dma.done [#allocation20], 64
        $region204: #{_lambda_.1} parent=155 // pred_fallthru
          _
        %p1132 = scmp.lt.s32.totalorder %s87, 1
        %s1133 = scalar_select %p1132, %s87, 1
        %s1134 = smul.addr %s1133, 2
        %s1135 = smul.addr %s1134, 8
        %s1136 = scalar_lea.vmem %s1, %s1135
        %p1137 = pneg %p108
        %p1138 = pneg %p105
        %p1139 = pneg %p129
        %p1140 = pneg %p126
        %p1141 = pneg %p150
        %p1142 = pneg %p147
        %p1143 = pneg %p171
        %p1144 = pneg %p168
        %p1145 = pneg %p192
        %p1146 = pneg %p189
        %p1147 = pneg %p213
        %p1148 = pneg %p210
        %p1149 = pneg %p234
        %p1150 = pneg %p231
        %p1151 = pneg %p255
        %p1152 = pneg %p252
        %p1153 = pneg %p276
        %p1154 = pneg %p273
        %p1155 = pneg %p297
        %p1156 = pneg %p294
        %p1157 = pneg %p318
        %p1158 = pneg %p315
        %p1159 = pneg %p339
        %p1160 = pneg %p336
        %p1161 = pneg %p360
        %p1162 = pneg %p357
        %p1163 = pneg %p381
        %p1164 = pneg %p378
        %p1165 = pneg %p402
        %p1166 = pneg %p399
        %p1167 = pneg %p423
        %p1168 = pneg %p420
        %p1169 = pneg %p444
        %p1170 = pneg %p441
        %p1171 = pneg %p465
        %p1172 = pneg %p462
        %p1173 = pneg %p486
        %p1174 = pneg %p483
        %p1175 = pneg %p507
        %p1176 = pneg %p504
        %p1177 = pneg %p528
        %p1178 = pneg %p525
        %p1179 = pneg %p549
        %p1180 = pneg %p546
        %p1181 = pneg %p570
        %p1182 = pneg %p567
        %p1183 = pneg %p591
        %p1184 = pneg %p588
        %p1185 = pneg %p612
        %p1186 = pneg %p609
        %p1187 = pneg %p633
        %p1188 = pneg %p630
        %p1189 = pneg %p654
        %p1190 = pneg %p651
        %p1191 = pneg %p675
        %p1192 = pneg %p672
        %p1193 = pneg %p696
        %p1194 = pneg %p693
        %p1195 = pneg %p717
        %p1196 = pneg %p714
        %p1197 = pneg %p738
        %p1198 = pneg %p735
        %p1199 = pneg %p759
        %p1200 = pneg %p756
        %p1201 = pneg %p780
        %p1202 = pneg %p777
        %p1203 = pneg %p801
        %p1204 = pneg %p798
        %p1205 = pneg %p827
        %p1206 = pneg %p824
        %p1207 = scmp.lt.s32.totalorder %s87, 1
        %s1208 = scalar_select %p1207, %s87, 1
        %s1209 = smul.addr %s1208, 2
        %s1210 = smul.addr %s1209, 4
        %s1211 = scalar_lea.vmem %s69, %s1210
        %p1212 = scmp.lt.s32.totalorder %s87, 1
        %s1213 = scalar_select %p1212, %s87, 1
        %s1214 = smul.addr %s1213, 2
        %s1215 = smul.addr %s1214, 8
        %s1216 = scalar_lea.vmem %s1, %s1215
        %p1217 = scmp.lt.s32.totalorder %s87, 1
        %s1218 = scalar_select %p1217, %s87, 1
        %s1219 = smul.addr %s1218, 2
        %s1220 = smul.addr %s1219, 4
        %s1221 = scalar_lea.vmem %s69, %s1220
        %v1222 = vld [vmem:[%s1216] sm:$0xff]
        %v1223 = vld [vmem:[%s1216 + $0x8] sm:$0xff]
        %v1224 = vmul.f32 %v1222, 0.5
        %v1225 = vmul.f32 %v1223, 0.5
        %v1226 = vmul.f32 %v1222, 0.70710677
        %v1227 = vmul.f32 %v1223, 0.70710677
        %v1228 = vmul.f32 %v1226, %v1226
        %v1229 = vmin.f32 16.0, %v1228
        %v1230 = vmul.f32 %v1229, 2.1237322e-06
        %v1231 = vadd.f32 %v1230, 0.00028619796
        %v1232 = vmul.f32 %v1229, %v1231
        %v1233 = vadd.f32 %v1232, 0.0036580483
        %v1234 = vmul.f32 %v1229, %v1233
        %v1235 = vadd.f32 %v1234, 0.05243302
        %v1236 = vmul.f32 %v1229, %v1235
        %v1237 = vadd.f32 %v1236, 0.18741608
        %v1238 = vmul.f32 %v1229, %v1237
        %v1239 = vadd.f32 %v1238, 1.1283791
        %v1240 = vmul.f32 %v1226, %v1239
        %v1241 = vmul.f32 %v1229, 3.8918573e-05
        %v1242 = vadd.f32 %v1241, 0.001143296
        %v1243 = vmul.f32 %v1229, %v1242
        %v1244 = vadd.f32 %v1243, 0.014752088
        %v1245 = vmul.f32 %v1229, %v1244
        %v1246 = vadd.f32 %v1245, 0.112945676
        %v1247 = vmul.f32 %v1229, %v1246
        %v1248 = vadd.f32 %v1247, 0.4994258
        %v1249 = vmul.f32 %v1229, %v1248
        %v1250 = vadd.f32 %v1249, 1.0
        %v1251 = vrcp.pop %v1250
        %v1252 = vmul.f32 %v1250, %v1251
        %v1253 = vsub.f32 1.0, %v1252
        %v1254 = vmul.f32 %v1251, %v1253
        %v1255 = vadd.f32 %v1251, %v1254
        %vm1256 = vweird.f32 %v1250
        %vm1257 = vweird.f32 %v1251
        %vm1258 = vmor %vm1256, %vm1257
        %v1259 = vsel %vm1258, %v1251, %v1255
        %v1260 = vand.u32 2147483647, %v1250
        %vm1261 = vcmp.eq.f32.partialorder %v1260, 8.507059e+37
        %v1262 = vand.u32 %v1250, 2147483648
        %v1263 = vor.u32 1.1754944e-38, %v1262
        %v1264 = vsel %vm1261, %v1263, %v1259
        %v1265 = vmul.f32 %v1240, %v1264
        %v1266 = vmin.f32 %v1265, 1.0
        %v1267 = vmax.f32 %v1266, -1.0
        %v1268 = vmul.f32 %v1227, %v1227
        %v1269 = vmin.f32 16.0, %v1268
        %v1270 = vmul.f32 %v1269, 2.1237322e-06
        %v1271 = vadd.f32 %v1270, 0.00028619796
        %v1272 = vmul.f32 %v1269, %v1271
        %v1273 = vadd.f32 %v1272, 0.0036580483
        %v1274 = vmul.f32 %v1269, %v1273
        %v1275 = vadd.f32 %v1274, 0.05243302
        %v1276 = vmul.f32 %v1269, %v1275
        %v1277 = vadd.f32 %v1276, 0.18741608
        %v1278 = vmul.f32 %v1269, %v1277
        %v1279 = vadd.f32 %v1278, 1.1283791
        %v1280 = vmul.f32 %v1227, %v1279
        %v1281 = vmul.f32 %v1269, 3.8918573e-05
        %v1282 = vadd.f32 %v1281, 0.001143296
        %v1283 = vmul.f32 %v1269, %v1282
        %v1284 = vadd.f32 %v1283, 0.014752088
        %v1285 = vmul.f32 %v1269, %v1284
        %v1286 = vadd.f32 %v1285, 0.112945676
        %v1287 = vmul.f32 %v1269, %v1286
        %v1288 = vadd.f32 %v1287, 0.4994258
        %v1289 = vmul.f32 %v1269, %v1288
        %v1290 = vadd.f32 %v1289, 1.0
        %v1291 = vrcp.pop %v1290
        %v1292 = vmul.f32 %v1290, %v1291
        %v1293 = vsub.f32 1.0, %v1292
        %v1294 = vmul.f32 %v1291, %v1293
        %v1295 = vadd.f32 %v1291, %v1294
        %vm1296 = vweird.f32 %v1290
        %vm1297 = vweird.f32 %v1291
        %vm1298 = vmor %vm1296, %vm1297
        %v1299 = vsel %vm1298, %v1291, %v1295
        %v1300 = vand.u32 2147483647, %v1290
        %vm1301 = vcmp.eq.f32.partialorder %v1300, 8.507059e+37
        %v1302 = vand.u32 %v1290, 2147483648
        %v1303 = vor.u32 1.1754944e-38, %v1302
        %v1304 = vsel %vm1301, %v1303, %v1299
        %v1305 = vmul.f32 %v1280, %v1304
        %v1306 = vmin.f32 %v1305, 1.0
        %v1307 = vmax.f32 %v1306, -1.0
        %v1308 = vadd.f32 %v1267, 1.0
        %v1309 = vadd.f32 %v1307, 1.0
        %v1310 = vmul.f32 %v1224, %v1308
        %v1311 = vmul.f32 %v1225, %v1309
        %v1312 = vld [vmem:[#allocation2] sm:$0xff]
        %v1313 = vld [vmem:[%s5] sm:$0xff]
        %1315 = vset.pattern.permute.xlu0 0
        %1316 = vperm.xlu0 %1315, %v1313
        %v1317 = vpop.permute.xlu0 %1316
        %vm1319 = vcmask 130048
        %v1321 = vsel %vm1319, %v1312, 0
        %1323 = vmatpush.msra.mxu0 0.0
        %1324 = vmatpush.msra.mxu0 0.0
        %1325 = vmatpush.msra.mxu0 0.0
        %1326 = vmatpush.msra.mxu0 0.0
        %1327 = vmatpush.msra.mxu0 0.0
        %1328 = vmatpush.msra.mxu0 0.0
        %1329 = vmatpush.msra.mxu0 0.0
        %1330 = vmatpush.msra.mxu0 0.0
        %1331 = vmatpush.msra.mxu0 0.0
        %1332 = vmatpush.msra.mxu0 0.0
        %1333 = vmatpush.msra.mxu0 0.0
        %1334 = vmatpush.msra.mxu0 0.0
        %1335 = vmatpush.msra.mxu0 0.0
        %1336 = vmatpush.msra.mxu0 0.0
        %1337 = vmatpush.msra.mxu0 %v1311
        %1338 = vmatpush.msra.mxu0 %v1310
        %1339 = vmatmul.f32.gmra.mxu0 %v1321
        %v1340 = vpop.f32.mrf.mxu0
        %v1341 = vadd.f32 %v1317, %v1340
        %1342 = vdwg.mxu0
        %v1343 = vld [vmem:[#allocation7] sm:$0x3]
        %v1344 = vmul.f32 %v1341, 0.5
        %v1345 = vmul.f32 %v1341, 0.70710677
        %v1346 = vmul.f32 %v1345, %v1345
        %v1347 = vmin.f32 16.0, %v1346
        %v1348 = vmul.f32 %v1347, 2.1237322e-06
        %v1349 = vadd.f32 %v1348, 0.00028619796
        %v1350 = vmul.f32 %v1347, %v1349
        %v1351 = vadd.f32 %v1350, 0.0036580483
        %v1352 = vmul.f32 %v1347, %v1351
        %v1353 = vadd.f32 %v1352, 0.05243302
        %v1354 = vmul.f32 %v1347, %v1353
        %v1355 = vadd.f32 %v1354, 0.18741608
        %v1356 = vmul.f32 %v1347, %v1355
        %v1357 = vadd.f32 %v1356, 1.1283791
        %v1358 = vmul.f32 %v1345, %v1357
        %v1359 = vmul.f32 %v1347, 3.8918573e-05
        %v1360 = vadd.f32 %v1359, 0.001143296
        %v1361 = vmul.f32 %v1347, %v1360
        %v1362 = vadd.f32 %v1361, 0.014752088
        %v1363 = vmul.f32 %v1347, %v1362
        %v1364 = vadd.f32 %v1363, 0.112945676
        %v1365 = vmul.f32 %v1347, %v1364
        %v1366 = vadd.f32 %v1365, 0.4994258
        %v1367 = vmul.f32 %v1347, %v1366
        %v1368 = vadd.f32 %v1367, 1.0
        %v1369 = vrcp.pop %v1368
        %v1370 = vmul.f32 %v1368, %v1369
        %v1371 = vsub.f32 1.0, %v1370
        %v1372 = vmul.f32 %v1369, %v1371
        %v1373 = vadd.f32 %v1369, %v1372
        %vm1374 = vweird.f32 %v1368
        %vm1375 = vweird.f32 %v1369
        %vm1376 = vmor %vm1374, %vm1375
        %v1377 = vsel %vm1376, %v1369, %v1373
        %v1378 = vand.u32 2147483647, %v1368
        %vm1379 = vcmp.eq.f32.partialorder %v1378, 8.507059e+37
        %v1380 = vand.u32 %v1368, 2147483648
        %v1381 = vor.u32 1.1754944e-38, %v1380
        %v1382 = vsel %vm1379, %v1381, %v1377
        %v1383 = vmul.f32 %v1358, %v1382
        %v1384 = vmin.f32 %v1383, 1.0
        %v1385 = vmax.f32 %v1384, -1.0
        %v1386 = vadd.f32 %v1385, 1.0
        %v1387 = vmul.f32 %v1344, %v1386
        %v1388 = vld [vmem:[#allocation4] sm:$0xff]
        %v1389 = vld [vmem:[%s9] sm:$0xff]
        %1391 = vrot.lane.b32.xlu0 %v1387, 5
        %v1392 = vpop.permute.xlu0 %1391
        %vm1394 = vcmask 39936
        %v1395 = vsel %vm1394, 0.0, %v1392
        %v1396 = vperm.slane %v1343, 0
        %v1397 = vmul.f32 %v1395, %v1396
        %1398 = vrot.lane.b32.xlu0 %v1387, 4
        %v1399 = vpop.permute.xlu0 %1398
        %vm1401 = vcmask 31744
        %v1402 = vsel %vm1401, 0.0, %v1399
        %1403 = vrot.lane.b32.xlu0 %v1387, 3
        %v1404 = vpop.permute.xlu0 %1403
        %vm1406 = vcmask 23552
        %v1407 = vsel %vm1406, 0.0, %v1404
        %v1408 = vperm.slane %v1343, 1
        %v1409 = vmul.f32 %v1407, %v1408
        %1410 = vrot.lane.b32.xlu0 %v1387, 1
        %v1411 = vpop.permute.xlu0 %1410
        %vm1413 = vcmask 7168
        %v1414 = vsel %vm1413, 0.0, %v1411
        %v1415 = vmul.f32 %v1414, %v1396
        %1416 = vrot.lane.b32.xlu0 %v1387, 127
        %v1417 = vpop.permute.xlu0 %1416
        %vm1419 = vcmask 121856
        %v1420 = vsel %vm1419, %v1417, 0.0
        %v1421 = vmul.f32 %v1420, %v1408
        %1422 = vrot.lane.b32.xlu0 %v1387, 125
        %v1423 = vpop.permute.xlu0 %1422
        %vm1425 = vcmask 105472
        %v1426 = vsel %vm1425, %v1423, 0.0
        %v1427 = vmul.f32 %v1426, %v1396
        %1428 = vrot.lane.b32.xlu0 %v1387, 124
        %v1429 = vpop.permute.xlu0 %1428
        %vm1431 = vcmask 97280
        %v1432 = vsel %vm1431, %v1429, 0.0
        %1433 = vrot.lane.b32.xlu0 %v1387, 123
        %v1434 = vpop.permute.xlu0 %1433
        %vm1436 = vcmask 89088
        %v1437 = vsel %vm1436, %v1434, 0.0
        %v1438 = vmul.f32 %v1437, %v1408
        %1440 = vset.pattern.permute.xlu0 0
        %1441 = vperm.xlu0 %1440, %v1389
        %v1442 = vpop.permute.xlu0 %1441
        %vm1444 = vcmask 588800
        %v1446 = vsel %vm1444, %v1388, 0
        %1448 = vmatpush.msra.mxu0 0.0
        %1449 = vmatpush.msra.mxu0 0.0
        %1450 = vmatpush.msra.mxu0 0.0
        %1451 = vmatpush.msra.mxu0 0.0
        %1452 = vmatpush.msra.mxu0 0.0
        %1453 = vmatpush.msra.mxu0 0.0
        %1454 = vmatpush.msra.mxu0 0.0
        %1455 = vmatpush.msra.mxu0 %v1438
        %1456 = vmatpush.msra.mxu0 %v1432
        %1457 = vmatpush.msra.mxu0 %v1427
        %1458 = vmatpush.msra.mxu0 %v1421
        %1459 = vmatpush.msra.mxu0 %v1387
        %1460 = vmatpush.msra.mxu0 %v1415
        %1461 = vmatpush.msra.mxu0 %v1409
        %1462 = vmatpush.msra.mxu0 %v1402
        %1463 = vmatpush.msra.mxu0 %v1397
        %1464 = vmatmul.f32.gmra.mxu0 %v1446
        %v1465 = vpop.f32.mrf.mxu0
        %v1466 = vadd.f32 %v1442, %v1465
        %1467 = vdwg.mxu0
        %v1468 = vmul.f32 %v1466, 0.5
        %v1469 = vmul.f32 %v1466, 0.70710677
        %v1470 = vmul.f32 %v1469, %v1469
        %v1471 = vmin.f32 16.0, %v1470
        %v1472 = vmul.f32 %v1471, 2.1237322e-06
        %v1473 = vadd.f32 %v1472, 0.00028619796
        %v1474 = vmul.f32 %v1471, %v1473
        %v1475 = vadd.f32 %v1474, 0.0036580483
        %v1476 = vmul.f32 %v1471, %v1475
        %v1477 = vadd.f32 %v1476, 0.05243302
        %v1478 = vmul.f32 %v1471, %v1477
        %v1479 = vadd.f32 %v1478, 0.18741608
        %v1480 = vmul.f32 %v1471, %v1479
        %v1481 = vadd.f32 %v1480, 1.1283791
        %v1482 = vmul.f32 %v1469, %v1481
        %v1483 = vmul.f32 %v1471, 3.8918573e-05
        %v1484 = vadd.f32 %v1483, 0.001143296
        %v1485 = vmul.f32 %v1471, %v1484
        %v1486 = vadd.f32 %v1485, 0.014752088
        %v1487 = vmul.f32 %v1471, %v1486
        %v1488 = vadd.f32 %v1487, 0.112945676
        %v1489 = vmul.f32 %v1471, %v1488
        %v1490 = vadd.f32 %v1489, 0.4994258
        %v1491 = vmul.f32 %v1471, %v1490
        %v1492 = vadd.f32 %v1491, 1.0
        %v1493 = vrcp.pop %v1492
        %v1494 = vmul.f32 %v1492, %v1493
        %v1495 = vsub.f32 1.0, %v1494
        %v1496 = vmul.f32 %v1493, %v1495
        %v1497 = vadd.f32 %v1493, %v1496
        %vm1498 = vweird.f32 %v1492
        %vm1499 = vweird.f32 %v1493
        %vm1500 = vmor %vm1498, %vm1499
        %v1501 = vsel %vm1500, %v1493, %v1497
        %v1502 = vand.u32 2147483647, %v1492
        %vm1503 = vcmp.eq.f32.partialorder %v1502, 8.507059e+37
        %v1504 = vand.u32 %v1492, 2147483648
        %v1505 = vor.u32 1.1754944e-38, %v1504
        %v1506 = vsel %vm1503, %v1505, %v1501
        %v1507 = vmul.f32 %v1482, %v1506
        %v1508 = vmin.f32 %v1507, 1.0
        %v1509 = vmax.f32 %v1508, -1.0
        %v1510 = vadd.f32 %v1509, 1.0
        %v1511 = vmul.f32 %v1468, %v1510
        %v1512 = vld [vmem:[#allocation6] sm:$0xff]
        %v1513 = vld [vmem:[%s13] sm:$0xff]
        %1515 = vrot.lane.b32.xlu0 %v1511, 5
        %v1516 = vpop.permute.xlu0 %1515
        %v1518 = vsel %vm1394, 0.0, %v1516
        %v1519 = vmul.f32 %v1518, %v1396
        %1520 = vrot.lane.b32.xlu0 %v1511, 4
        %v1521 = vpop.permute.xlu0 %1520
        %v1523 = vsel %vm1401, 0.0, %v1521
        %1524 = vrot.lane.b32.xlu0 %v1511, 3
        %v1525 = vpop.permute.xlu0 %1524
        %v1527 = vsel %vm1406, 0.0, %v1525
        %v1528 = vmul.f32 %v1527, %v1408
        %1529 = vrot.lane.b32.xlu0 %v1511, 1
        %v1530 = vpop.permute.xlu0 %1529
        %v1532 = vsel %vm1413, 0.0, %v1530
        %v1533 = vmul.f32 %v1532, %v1396
        %1534 = vrot.lane.b32.xlu0 %v1511, 127
        %v1535 = vpop.permute.xlu0 %1534
        %v1537 = vsel %vm1419, %v1535, 0.0
        %v1538 = vmul.f32 %v1537, %v1408
        %1539 = vrot.lane.b32.xlu0 %v1511, 125
        %v1540 = vpop.permute.xlu0 %1539
        %v1542 = vsel %vm1425, %v1540, 0.0
        %v1543 = vmul.f32 %v1542, %v1396
        %1544 = vrot.lane.b32.xlu0 %v1511, 124
        %v1545 = vpop.permute.xlu0 %1544
        %v1547 = vsel %vm1431, %v1545, 0.0
        %1548 = vrot.lane.b32.xlu0 %v1511, 123
        %v1549 = vpop.permute.xlu0 %1548
        %v1551 = vsel %vm1436, %v1549, 0.0
        %v1552 = vmul.f32 %v1551, %v1408
        %1554 = vset.pattern.permute.xlu0 0
        %1555 = vperm.xlu0 %1554, %v1513
        %v1556 = vpop.permute.xlu0 %1555
        %v1559 = vsel %vm1444, %v1512, 0
        %1561 = vmatpush.msra.mxu0 0.0
        %1562 = vmatpush.msra.mxu0 0.0
        %1563 = vmatpush.msra.mxu0 0.0
        %1564 = vmatpush.msra.mxu0 0.0
        %1565 = vmatpush.msra.mxu0 0.0
        %1566 = vmatpush.msra.mxu0 0.0
        %1567 = vmatpush.msra.mxu0 0.0
        %1568 = vmatpush.msra.mxu0 %v1552
        %1569 = vmatpush.msra.mxu0 %v1547
        %1570 = vmatpush.msra.mxu0 %v1543
        %1571 = vmatpush.msra.mxu0 %v1538
        %1572 = vmatpush.msra.mxu0 %v1511
        %1573 = vmatpush.msra.mxu0 %v1533
        %1574 = vmatpush.msra.mxu0 %v1528
        %1575 = vmatpush.msra.mxu0 %v1523
        %1576 = vmatpush.msra.mxu0 %v1519
        %1577 = vmatmul.f32.gmra.mxu0 %v1559
        %v1578 = vpop.f32.mrf.mxu0
        %v1579 = vadd.f32 %v1556, %v1578
        %1580 = vdwg.mxu0
        %v1581 = vmul.f32 %v1579, 0.5
        %v1582 = vmul.f32 %v1579, 0.70710677
        %v1583 = vmul.f32 %v1582, %v1582
        %v1584 = vmin.f32 16.0, %v1583
        %v1585 = vmul.f32 %v1584, 2.1237322e-06
        %v1586 = vadd.f32 %v1585, 0.00028619796
        %v1587 = vmul.f32 %v1584, %v1586
        %v1588 = vadd.f32 %v1587, 0.0036580483
        %v1589 = vmul.f32 %v1584, %v1588
        %v1590 = vadd.f32 %v1589, 0.05243302
        %v1591 = vmul.f32 %v1584, %v1590
        %v1592 = vadd.f32 %v1591, 0.18741608
        %v1593 = vmul.f32 %v1584, %v1592
        %v1594 = vadd.f32 %v1593, 1.1283791
        %v1595 = vmul.f32 %v1582, %v1594
        %v1596 = vmul.f32 %v1584, 3.8918573e-05
        %v1597 = vadd.f32 %v1596, 0.001143296
        %v1598 = vmul.f32 %v1584, %v1597
        %v1599 = vadd.f32 %v1598, 0.014752088
        %v1600 = vmul.f32 %v1584, %v1599
        %v1601 = vadd.f32 %v1600, 0.112945676
        %v1602 = vmul.f32 %v1584, %v1601
        %v1603 = vadd.f32 %v1602, 0.4994258
        %v1604 = vmul.f32 %v1584, %v1603
        %v1605 = vadd.f32 %v1604, 1.0
        %v1606 = vrcp.pop %v1605
        %v1607 = vmul.f32 %v1605, %v1606
        %v1608 = vsub.f32 1.0, %v1607
        %v1609 = vmul.f32 %v1606, %v1608
        %v1610 = vadd.f32 %v1606, %v1609
        %vm1611 = vweird.f32 %v1605
        %vm1612 = vweird.f32 %v1606
        %vm1613 = vmor %vm1611, %vm1612
        %v1614 = vsel %vm1613, %v1606, %v1610
        %v1615 = vand.u32 2147483647, %v1605
        %vm1616 = vcmp.eq.f32.partialorder %v1615, 8.507059e+37
        %v1617 = vand.u32 %v1605, 2147483648
        %v1618 = vor.u32 1.1754944e-38, %v1617
        %v1619 = vsel %vm1616, %v1618, %v1614
        %v1620 = vmul.f32 %v1595, %v1619
        %v1621 = vmin.f32 %v1620, 1.0
        %v1622 = vmax.f32 %v1621, -1.0
        %v1623 = vadd.f32 %v1622, 1.0
        %v1624 = vmul.f32 %v1581, %v1623
        %v1625 = vld [vmem:[%s15] sm:$0xff]
        %v1626 = vld [vmem:[%s15 + $0x8] sm:$0xff]
        %v1627 = vld [vmem:[%s17] sm:$0xff]
        %v1628 = vld [vmem:[%s17 + $0x8] sm:$0xff]
        %1630 = vset.pattern.permute.xlu0 0
        %1631 = vperm.xlu0 %1630, %v1627
        %v1632 = vpop.permute.xlu0 %1631
        %1635 = vset.pattern.permute.xlu0 0
        %1636 = vperm.xlu0 %1635, %v1628
        %v1637 = vpop.permute.xlu0 %1636
        %vm1639 = vcmask 64512
        %v1641 = vsel %vm1639, %v1625, 0
        %v1644 = vsel %vm1639, %v1626, 0
        %1646 = vmatpush.msra.mxu0 0.0
        %1647 = vmatpush.msra.mxu0 0.0
        %1648 = vmatpush.msra.mxu0 0.0
        %1649 = vmatpush.msra.mxu0 0.0
        %1650 = vmatpush.msra.mxu0 0.0
        %1651 = vmatpush.msra.mxu0 0.0
        %1652 = vmatpush.msra.mxu0 0.0
        %1653 = vmatpush.msra.mxu0 0.0
        %1654 = vmatpush.msra.mxu0 0.0
        %1655 = vmatpush.msra.mxu0 0.0
        %1656 = vmatpush.msra.mxu0 0.0
        %1657 = vmatpush.msra.mxu0 0.0
        %1658 = vmatpush.msra.mxu0 0.0
        %1659 = vmatpush.msra.mxu0 0.0
        %1660 = vmatpush.msra.mxu0 0.0
        %1661 = vmatpush.msra.mxu0 %v1624
        %1662 = vmatmul.f32.gmra.mxu0 %v1641
        %v1663 = vpop.f32.mrf.mxu0
        %v1664 = vadd.f32 %v1632, %v1663
        %1665 = vmatmul.f32.gmra.mxu0 %v1644
        %v1666 = vpop.f32.mrf.mxu0
        %v1667 = vadd.f32 %v1637, %v1666
        %1668 = vdwg.mxu0
        %v1669 = vadd.f32 %v1222, %v1664
        %v1670 = vadd.f32 %v1223, %v1667
        %v1671 = vld [vmem:[%s21] sm:$0xff]
        %v1672 = vld [vmem:[%s21 + $0x8] sm:$0xff]
        %v1674 = vsel %vm1319, %v1671, 0
        %v1677 = vsel %vm1319, %v1672, 0
        %1679 = vmatpush.msra.mxu0 0.0
        %1680 = vmatpush.msra.mxu0 0.0
        %1681 = vmatpush.msra.mxu0 0.0
        %1682 = vmatpush.msra.mxu0 0.0
        %1683 = vmatpush.msra.mxu0 0.0
        %1684 = vmatpush.msra.mxu0 0.0
        %1685 = vmatpush.msra.mxu0 0.0
        %1686 = vmatpush.msra.mxu0 0.0
        %1687 = vmatpush.msra.mxu0 0.0
        %1688 = vmatpush.msra.mxu0 0.0
        %1689 = vmatpush.msra.mxu0 0.0
        %1690 = vmatpush.msra.mxu0 0.0
        %1691 = vmatpush.msra.mxu0 0.0
        %1692 = vmatpush.msra.mxu0 0.0
        %1693 = vmatpush.msra.mxu0 %v1670
        %1694 = vmatpush.msra.mxu0 %v1669
        %1695 = vmatmul.f32.gmra.mxu0 %v1674
        %v1696 = vpop.f32.mrf.mxu0
        %v1697 = vadd.f32 0.0, %v1696
        %1698 = vmatmul.f32.gmra.mxu0 %v1677
        %v1699 = vpop.f32.mrf.mxu0
        %v1700 = vadd.f32 0.0, %v1699
        %1701 = vdwg.mxu0
        %v1702 = vld [vmem:[#allocation9] sm:$0xff]
        %v1703 = vld [vmem:[#allocation9 + $0x8] sm:$0xff]
        %v1705 = vsel %vm1319, %v1697, 0
        %v1708 = vsel %vm1319, %v1700, 0
        %1710 = vmatpush.msra.mxu0 0.0
        %1711 = vmatpush.msra.mxu0 0.0
        %1712 = vmatpush.msra.mxu0 0.0
        %1713 = vmatpush.msra.mxu0 0.0
        %1714 = vmatpush.msra.mxu0 0.0
        %1715 = vmatpush.msra.mxu0 0.0
        %1716 = vmatpush.msra.mxu0 0.0
        %1717 = vmatpush.msra.mxu0 0.0
        %1718 = vmatpush.msra.mxu0 0.0
        %1719 = vmatpush.msra.mxu0 0.0
        %1720 = vmatpush.msra.mxu0 0.0
        %1721 = vmatpush.msra.mxu0 0.0
        %1722 = vmatpush.msra.mxu0 0.0
        %1723 = vmatpush.msra.mxu0 0.0
        %1724 = vmatpush.msra.mxu0 %v1703
        %1725 = vmatpush.msra.mxu0 %v1702
        %1726 = vmatmul.f32.gmra.mxu0 %v1705
        %v1727 = vpop.f32.mrf.mxu0
        %v1728 = vadd.f32 0.0, %v1727
        %1729 = vmatmul.f32.gmra.mxu0 %v1708
        %v1730 = vpop.f32.mrf.mxu0
        %v1731 = vadd.f32 0.0, %v1730
        %1732 = vdwg.mxu0
        %v1733 = vmul.f32 %v1728, 0.5
        %v1734 = vmul.f32 %v1731, 0.5
        %v1735 = vmul.f32 %v1728, 0.70710677
        %v1736 = vmul.f32 %v1731, 0.70710677
        %v1737 = vmul.f32 %v1735, %v1735
        %v1738 = vmin.f32 16.0, %v1737
        %v1739 = vmul.f32 %v1738, 2.1237322e-06
        %v1740 = vadd.f32 %v1739, 0.00028619796
        %v1741 = vmul.f32 %v1738, %v1740
        %v1742 = vadd.f32 %v1741, 0.0036580483
        %v1743 = vmul.f32 %v1738, %v1742
        %v1744 = vadd.f32 %v1743, 0.05243302
        %v1745 = vmul.f32 %v1738, %v1744
        %v1746 = vadd.f32 %v1745, 0.18741608
        %v1747 = vmul.f32 %v1738, %v1746
        %v1748 = vadd.f32 %v1747, 1.1283791
        %v1749 = vmul.f32 %v1735, %v1748
        %v1750 = vmul.f32 %v1738, 3.8918573e-05
        %v1751 = vadd.f32 %v1750, 0.001143296
        %v1752 = vmul.f32 %v1738, %v1751
        %v1753 = vadd.f32 %v1752, 0.014752088
        %v1754 = vmul.f32 %v1738, %v1753
        %v1755 = vadd.f32 %v1754, 0.112945676
        %v1756 = vmul.f32 %v1738, %v1755
        %v1757 = vadd.f32 %v1756, 0.4994258
        %v1758 = vmul.f32 %v1738, %v1757
        %v1759 = vadd.f32 %v1758, 1.0
        %v1760 = vrcp.pop %v1759
        %v1761 = vmul.f32 %v1759, %v1760
        %v1762 = vsub.f32 1.0, %v1761
        %v1763 = vmul.f32 %v1760, %v1762
        %v1764 = vadd.f32 %v1760, %v1763
        %vm1765 = vweird.f32 %v1759
        %vm1766 = vweird.f32 %v1760
        %vm1767 = vmor %vm1765, %vm1766
        %v1768 = vsel %vm1767, %v1760, %v1764
        %v1769 = vand.u32 2147483647, %v1759
        %vm1770 = vcmp.eq.f32.partialorder %v1769, 8.507059e+37
        %v1771 = vand.u32 %v1759, 2147483648
        %v1772 = vor.u32 1.1754944e-38, %v1771
        %v1773 = vsel %vm1770, %v1772, %v1768
        %v1774 = vmul.f32 %v1749, %v1773
        %v1775 = vmin.f32 %v1774, 1.0
        %v1776 = vmax.f32 %v1775, -1.0
        %v1777 = vmul.f32 %v1736, %v1736
        %v1778 = vmin.f32 16.0, %v1777
        %v1779 = vmul.f32 %v1778, 2.1237322e-06
        %v1780 = vadd.f32 %v1779, 0.00028619796
        %v1781 = vmul.f32 %v1778, %v1780
        %v1782 = vadd.f32 %v1781, 0.0036580483
        %v1783 = vmul.f32 %v1778, %v1782
        %v1784 = vadd.f32 %v1783, 0.05243302
        %v1785 = vmul.f32 %v1778, %v1784
        %v1786 = vadd.f32 %v1785, 0.18741608
        %v1787 = vmul.f32 %v1778, %v1786
        %v1788 = vadd.f32 %v1787, 1.1283791
        %v1789 = vmul.f32 %v1736, %v1788
        %v1790 = vmul.f32 %v1778, 3.8918573e-05
        %v1791 = vadd.f32 %v1790, 0.001143296
        %v1792 = vmul.f32 %v1778, %v1791
        %v1793 = vadd.f32 %v1792, 0.014752088
        %v1794 = vmul.f32 %v1778, %v1793
        %v1795 = vadd.f32 %v1794, 0.112945676
        %v1796 = vmul.f32 %v1778, %v1795
        %v1797 = vadd.f32 %v1796, 0.4994258
        %v1798 = vmul.f32 %v1778, %v1797
        %v1799 = vadd.f32 %v1798, 1.0
        %v1800 = vrcp.pop %v1799
        %v1801 = vmul.f32 %v1799, %v1800
        %v1802 = vsub.f32 1.0, %v1801
        %v1803 = vmul.f32 %v1800, %v1802
        %v1804 = vadd.f32 %v1800, %v1803
        %vm1805 = vweird.f32 %v1799
        %vm1806 = vweird.f32 %v1800
        %vm1807 = vmor %vm1805, %vm1806
        %v1808 = vsel %vm1807, %v1800, %v1804
        %v1809 = vand.u32 2147483647, %v1799
        %vm1810 = vcmp.eq.f32.partialorder %v1809, 8.507059e+37
        %v1811 = vand.u32 %v1799, 2147483648
        %v1812 = vor.u32 1.1754944e-38, %v1811
        %v1813 = vsel %vm1810, %v1812, %v1808
        %v1814 = vmul.f32 %v1789, %v1813
        %v1815 = vmin.f32 %v1814, 1.0
        %v1816 = vmax.f32 %v1815, -1.0
        %v1817 = vadd.f32 %v1776, 1.0
        %v1818 = vadd.f32 %v1816, 1.0
        %v1819 = vmul.f32 %v1733, %v1817
        %v1820 = vmul.f32 %v1734, %v1818
        %v1821 = vld [vmem:[#allocation10] sm:$0xff]
        %v1822 = vld [vmem:[%s27] sm:$0xff]
        %1824 = vset.pattern.permute.xlu0 0
        %1825 = vperm.xlu0 %1824, %v1822
        %v1826 = vpop.permute.xlu0 %1825
        %v1829 = vsel %vm1319, %v1821, 0
        %1831 = vmatpush.msra.mxu0 0.0
        %1832 = vmatpush.msra.mxu0 0.0
        %1833 = vmatpush.msra.mxu0 0.0
        %1834 = vmatpush.msra.mxu0 0.0
        %1835 = vmatpush.msra.mxu0 0.0
        %1836 = vmatpush.msra.mxu0 0.0
        %1837 = vmatpush.msra.mxu0 0.0
        %1838 = vmatpush.msra.mxu0 0.0
        %1839 = vmatpush.msra.mxu0 0.0
        %1840 = vmatpush.msra.mxu0 0.0
        %1841 = vmatpush.msra.mxu0 0.0
        %1842 = vmatpush.msra.mxu0 0.0
        %1843 = vmatpush.msra.mxu0 0.0
        %1844 = vmatpush.msra.mxu0 0.0
        %1845 = vmatpush.msra.mxu0 %v1820
        %1846 = vmatpush.msra.mxu0 %v1819
        %1847 = vmatmul.f32.gmra.mxu0 %v1829
        %v1848 = vpop.f32.mrf.mxu0
        %v1849 = vadd.f32 %v1826, %v1848
        %1850 = vdwg.mxu0
        %v1851 = vld [vmem:[#allocation15] sm:$0x3]
        %v1852 = vmul.f32 %v1849, 0.5
        %v1853 = vmul.f32 %v1849, 0.70710677
        %v1854 = vmul.f32 %v1853, %v1853
        %v1855 = vmin.f32 16.0, %v1854
        %v1856 = vmul.f32 %v1855, 2.1237322e-06
        %v1857 = vadd.f32 %v1856, 0.00028619796
        %v1858 = vmul.f32 %v1855, %v1857
        %v1859 = vadd.f32 %v1858, 0.0036580483
        %v1860 = vmul.f32 %v1855, %v1859
        %v1861 = vadd.f32 %v1860, 0.05243302
        %v1862 = vmul.f32 %v1855, %v1861
        %v1863 = vadd.f32 %v1862, 0.18741608
        %v1864 = vmul.f32 %v1855, %v1863
        %v1865 = vadd.f32 %v1864, 1.1283791
        %v1866 = vmul.f32 %v1853, %v1865
        %v1867 = vmul.f32 %v1855, 3.8918573e-05
        %v1868 = vadd.f32 %v1867, 0.001143296
        %v1869 = vmul.f32 %v1855, %v1868
        %v1870 = vadd.f32 %v1869, 0.014752088
        %v1871 = vmul.f32 %v1855, %v1870
        %v1872 = vadd.f32 %v1871, 0.112945676
        %v1873 = vmul.f32 %v1855, %v1872
        %v1874 = vadd.f32 %v1873, 0.4994258
        %v1875 = vmul.f32 %v1855, %v1874
        %v1876 = vadd.f32 %v1875, 1.0
        %v1877 = vrcp.pop %v1876
        %v1878 = vmul.f32 %v1876, %v1877
        %v1879 = vsub.f32 1.0, %v1878
        %v1880 = vmul.f32 %v1877, %v1879
        %v1881 = vadd.f32 %v1877, %v1880
        %vm1882 = vweird.f32 %v1876
        %vm1883 = vweird.f32 %v1877
        %vm1884 = vmor %vm1882, %vm1883
        %v1885 = vsel %vm1884, %v1877, %v1881
        %v1886 = vand.u32 2147483647, %v1876
        %vm1887 = vcmp.eq.f32.partialorder %v1886, 8.507059e+37
        %v1888 = vand.u32 %v1876, 2147483648
        %v1889 = vor.u32 1.1754944e-38, %v1888
        %v1890 = vsel %vm1887, %v1889, %v1885
        %v1891 = vmul.f32 %v1866, %v1890
        %v1892 = vmin.f32 %v1891, 1.0
        %v1893 = vmax.f32 %v1892, -1.0
        %v1894 = vadd.f32 %v1893, 1.0
        %v1895 = vmul.f32 %v1852, %v1894
        %v1896 = vld [vmem:[#allocation12] sm:$0xff]
        %v1897 = vld [vmem:[%s31] sm:$0xff]
        %1899 = vrot.lane.b32.xlu0 %v1895, 9
        %v1900 = vpop.permute.xlu0 %1899
        %vm1902 = vcmask 72704
        %v1903 = vsel %vm1902, 0.0, %v1900
        %v1904 = vperm.slane %v1851, 0
        %v1905 = vmul.f32 %v1903, %v1904
        %1906 = vrot.lane.b32.xlu0 %v1895, 8
        %v1907 = vpop.permute.xlu0 %1906
        %v1909 = vsel %vm1639, 0.0, %v1907
        %1910 = vrot.lane.b32.xlu0 %v1895, 7
        %v1911 = vpop.permute.xlu0 %1910
        %vm1913 = vcmask 56320
        %v1914 = vsel %vm1913, 0.0, %v1911
        %v1915 = vperm.slane %v1851, 1
        %v1916 = vmul.f32 %v1914, %v1915
        %1917 = vrot.lane.b32.xlu0 %v1895, 1
        %v1918 = vpop.permute.xlu0 %1917
        %v1920 = vsel %vm1413, 0.0, %v1918
        %v1921 = vmul.f32 %v1920, %v1904
        %1922 = vrot.lane.b32.xlu0 %v1895, 127
        %v1923 = vpop.permute.xlu0 %1922
        %vm1925 = vcmask 515072
        %v1926 = vsel %vm1925, %v1923, 0.0
        %v1927 = vmul.f32 %v1926, %v1915
        %1928 = vrot.lane.b32.xlu0 %v1895, 121
        %v1929 = vpop.permute.xlu0 %1928
        %vm1931 = vcmask 465920
        %v1932 = vsel %vm1931, %v1929, 0.0
        %v1933 = vmul.f32 %v1932, %v1904
        %1934 = vrot.lane.b32.xlu0 %v1895, 120
        %v1935 = vpop.permute.xlu0 %1934
        %vm1937 = vcmask 457728
        %v1938 = vsel %vm1937, %v1935, 0.0
        %1939 = vrot.lane.b32.xlu0 %v1895, 119
        %v1940 = vpop.permute.xlu0 %1939
        %vm1942 = vcmask 449536
        %v1943 = vsel %vm1942, %v1940, 0.0
        %v1944 = vmul.f32 %v1943, %v1915
        %1946 = vset.pattern.permute.xlu0 0
        %1947 = vperm.xlu0 %1946, %v1897
        %v1948 = vpop.permute.xlu0 %1947
        %v1951 = vsel %vm1444, %v1896, 0
        %1953 = vmatpush.msra.mxu0 0.0
        %1954 = vmatpush.msra.mxu0 0.0
        %1955 = vmatpush.msra.mxu0 0.0
        %1956 = vmatpush.msra.mxu0 0.0
        %1957 = vmatpush.msra.mxu0 0.0
        %1958 = vmatpush.msra.mxu0 0.0
        %1959 = vmatpush.msra.mxu0 0.0
        %1960 = vmatpush.msra.mxu0 %v1944
        %1961 = vmatpush.msra.mxu0 %v1938
        %1962 = vmatpush.msra.mxu0 %v1933
        %1963 = vmatpush.msra.mxu0 %v1927
        %1964 = vmatpush.msra.mxu0 %v1895
        %1965 = vmatpush.msra.mxu0 %v1921
        %1966 = vmatpush.msra.mxu0 %v1916
        %1967 = vmatpush.msra.mxu0 %v1909
        %1968 = vmatpush.msra.mxu0 %v1905
        %1969 = vmatmul.f32.gmra.mxu0 %v1951
        %v1970 = vpop.f32.mrf.mxu0
        %v1971 = vadd.f32 %v1948, %v1970
        %1972 = vdwg.mxu0
        %v1973 = vmul.f32 %v1971, 0.5
        %v1974 = vmul.f32 %v1971, 0.70710677
        %v1975 = vmul.f32 %v1974, %v1974
        %v1976 = vmin.f32 16.0, %v1975
        %v1977 = vmul.f32 %v1976, 2.1237322e-06
        %v1978 = vadd.f32 %v1977, 0.00028619796
        %v1979 = vmul.f32 %v1976, %v1978
        %v1980 = vadd.f32 %v1979, 0.0036580483
        %v1981 = vmul.f32 %v1976, %v1980
        %v1982 = vadd.f32 %v1981, 0.05243302
        %v1983 = vmul.f32 %v1976, %v1982
        %v1984 = vadd.f32 %v1983, 0.18741608
        %v1985 = vmul.f32 %v1976, %v1984
        %v1986 = vadd.f32 %v1985, 1.1283791
        %v1987 = vmul.f32 %v1974, %v1986
        %v1988 = vmul.f32 %v1976, 3.8918573e-05
        %v1989 = vadd.f32 %v1988, 0.001143296
        %v1990 = vmul.f32 %v1976, %v1989
        %v1991 = vadd.f32 %v1990, 0.014752088
        %v1992 = vmul.f32 %v1976, %v1991
        %v1993 = vadd.f32 %v1992, 0.112945676
        %v1994 = vmul.f32 %v1976, %v1993
        %v1995 = vadd.f32 %v1994, 0.4994258
        %v1996 = vmul.f32 %v1976, %v1995
        %v1997 = vadd.f32 %v1996, 1.0
        %v1998 = vrcp.pop %v1997
        %v1999 = vmul.f32 %v1997, %v1998
        %v2000 = vsub.f32 1.0, %v1999
        %v2001 = vmul.f32 %v1998, %v2000
        %v2002 = vadd.f32 %v1998, %v2001
        %vm2003 = vweird.f32 %v1997
        %vm2004 = vweird.f32 %v1998
        %vm2005 = vmor %vm2003, %vm2004
        %v2006 = vsel %vm2005, %v1998, %v2002
        %v2007 = vand.u32 2147483647, %v1997
        %vm2008 = vcmp.eq.f32.partialorder %v2007, 8.507059e+37
        %v2009 = vand.u32 %v1997, 2147483648
        %v2010 = vor.u32 1.1754944e-38, %v2009
        %v2011 = vsel %vm2008, %v2010, %v2006
        %v2012 = vmul.f32 %v1987, %v2011
        %v2013 = vmin.f32 %v2012, 1.0
        %v2014 = vmax.f32 %v2013, -1.0
        %v2015 = vadd.f32 %v2014, 1.0
        %v2016 = vmul.f32 %v1973, %v2015
        %v2017 = vld [vmem:[#allocation13] sm:$0xff]
        %v2018 = vld [vmem:[%s35] sm:$0xff]
        %2020 = vrot.lane.b32.xlu0 %v2016, 9
        %v2021 = vpop.permute.xlu0 %2020
        %v2023 = vsel %vm1902, 0.0, %v2021
        %v2024 = vmul.f32 %v2023, %v1904
        %2025 = vrot.lane.b32.xlu0 %v2016, 8
        %v2026 = vpop.permute.xlu0 %2025
        %v2028 = vsel %vm1639, 0.0, %v2026
        %2029 = vrot.lane.b32.xlu0 %v2016, 7
        %v2030 = vpop.permute.xlu0 %2029
        %v2032 = vsel %vm1913, 0.0, %v2030
        %v2033 = vmul.f32 %v2032, %v1915
        %2034 = vrot.lane.b32.xlu0 %v2016, 1
        %v2035 = vpop.permute.xlu0 %2034
        %v2037 = vsel %vm1413, 0.0, %v2035
        %v2038 = vmul.f32 %v2037, %v1904
        %2039 = vrot.lane.b32.xlu0 %v2016, 127
        %v2040 = vpop.permute.xlu0 %2039
        %v2042 = vsel %vm1925, %v2040, 0.0
        %v2043 = vmul.f32 %v2042, %v1915
        %2044 = vrot.lane.b32.xlu0 %v2016, 121
        %v2045 = vpop.permute.xlu0 %2044
        %v2047 = vsel %vm1931, %v2045, 0.0
        %v2048 = vmul.f32 %v2047, %v1904
        %2049 = vrot.lane.b32.xlu0 %v2016, 120
        %v2050 = vpop.permute.xlu0 %2049
        %v2052 = vsel %vm1937, %v2050, 0.0
        %2053 = vrot.lane.b32.xlu0 %v2016, 119
        %v2054 = vpop.permute.xlu0 %2053
        %v2056 = vsel %vm1942, %v2054, 0.0
        %v2057 = vmul.f32 %v2056, %v1915
        %2059 = vset.pattern.permute.xlu0 0
        %2060 = vperm.xlu0 %2059, %v2018
        %v2061 = vpop.permute.xlu0 %2060
        %v2064 = vsel %vm1444, %v2017, 0
        %2066 = vmatpush.msra.mxu0 0.0
        %2067 = vmatpush.msra.mxu0 0.0
        %2068 = vmatpush.msra.mxu0 0.0
        %2069 = vmatpush.msra.mxu0 0.0
        %2070 = vmatpush.msra.mxu0 0.0
        %2071 = vmatpush.msra.mxu0 0.0
        %2072 = vmatpush.msra.mxu0 0.0
        %2073 = vmatpush.msra.mxu0 %v2057
        %2074 = vmatpush.msra.mxu0 %v2052
        %2075 = vmatpush.msra.mxu0 %v2048
        %2076 = vmatpush.msra.mxu0 %v2043
        %2077 = vmatpush.msra.mxu0 %v2016
        %2078 = vmatpush.msra.mxu0 %v2038
        %2079 = vmatpush.msra.mxu0 %v2033
        %2080 = vmatpush.msra.mxu0 %v2028
        %2081 = vmatpush.msra.mxu0 %v2024
        %2082 = vmatmul.f32.gmra.mxu0 %v2064
        %v2083 = vpop.f32.mrf.mxu0
        %v2084 = vadd.f32 %v2061, %v2083
        %2085 = vdwg.mxu0
        %v2086 = vmul.f32 %v2084, 0.5
        %v2087 = vmul.f32 %v2084, 0.70710677
        %v2088 = vmul.f32 %v2087, %v2087
        %v2089 = vmin.f32 16.0, %v2088
        %v2090 = vmul.f32 %v2089, 2.1237322e-06
        %v2091 = vadd.f32 %v2090, 0.00028619796
        %v2092 = vmul.f32 %v2089, %v2091
        %v2093 = vadd.f32 %v2092, 0.0036580483
        %v2094 = vmul.f32 %v2089, %v2093
        %v2095 = vadd.f32 %v2094, 0.05243302
        %v2096 = vmul.f32 %v2089, %v2095
        %v2097 = vadd.f32 %v2096, 0.18741608
        %v2098 = vmul.f32 %v2089, %v2097
        %v2099 = vadd.f32 %v2098, 1.1283791
        %v2100 = vmul.f32 %v2087, %v2099
        %v2101 = vmul.f32 %v2089, 3.8918573e-05
        %v2102 = vadd.f32 %v2101, 0.001143296
        %v2103 = vmul.f32 %v2089, %v2102
        %v2104 = vadd.f32 %v2103, 0.014752088
        %v2105 = vmul.f32 %v2089, %v2104
        %v2106 = vadd.f32 %v2105, 0.112945676
        %v2107 = vmul.f32 %v2089, %v2106
        %v2108 = vadd.f32 %v2107, 0.4994258
        %v2109 = vmul.f32 %v2089, %v2108
        %v2110 = vadd.f32 %v2109, 1.0
        %v2111 = vrcp.pop %v2110
        %v2112 = vmul.f32 %v2110, %v2111
        %v2113 = vsub.f32 1.0, %v2112
        %v2114 = vmul.f32 %v2111, %v2113
        %v2115 = vadd.f32 %v2111, %v2114
        %vm2116 = vweird.f32 %v2110
        %vm2117 = vweird.f32 %v2111
        %vm2118 = vmor %vm2116, %vm2117
        %v2119 = vsel %vm2118, %v2111, %v2115
        %v2120 = vand.u32 2147483647, %v2110
        %vm2121 = vcmp.eq.f32.partialorder %v2120, 8.507059e+37
        %v2122 = vand.u32 %v2110, 2147483648
        %v2123 = vor.u32 1.1754944e-38, %v2122
        %v2124 = vsel %vm2121, %v2123, %v2119
        %v2125 = vmul.f32 %v2100, %v2124
        %v2126 = vmin.f32 %v2125, 1.0
        %v2127 = vmax.f32 %v2126, -1.0
        %v2128 = vadd.f32 %v2127, 1.0
        %v2129 = vmul.f32 %v2086, %v2128
        %v2130 = vld [vmem:[%s37] sm:$0xff]
        %v2131 = vld [vmem:[%s37 + $0x8] sm:$0xff]
        %v2132 = vld [vmem:[%s39] sm:$0xff]
        %v2133 = vld [vmem:[%s39 + $0x8] sm:$0xff]
        %2135 = vset.pattern.permute.xlu0 0
        %2136 = vperm.xlu0 %2135, %v2132
        %v2137 = vpop.permute.xlu0 %2136
        %2140 = vset.pattern.permute.xlu0 0
        %2141 = vperm.xlu0 %2140, %v2133
        %v2142 = vpop.permute.xlu0 %2141
        %v2145 = vsel %vm1639, %v2130, 0
        %v2148 = vsel %vm1639, %v2131, 0
        %2150 = vmatpush.msra.mxu0 0.0
        %2151 = vmatpush.msra.mxu0 0.0
        %2152 = vmatpush.msra.mxu0 0.0
        %2153 = vmatpush.msra.mxu0 0.0
        %2154 = vmatpush.msra.mxu0 0.0
        %2155 = vmatpush.msra.mxu0 0.0
        %2156 = vmatpush.msra.mxu0 0.0
        %2157 = vmatpush.msra.mxu0 0.0
        %2158 = vmatpush.msra.mxu0 0.0
        %2159 = vmatpush.msra.mxu0 0.0
        %2160 = vmatpush.msra.mxu0 0.0
        %2161 = vmatpush.msra.mxu0 0.0
        %2162 = vmatpush.msra.mxu0 0.0
        %2163 = vmatpush.msra.mxu0 0.0
        %2164 = vmatpush.msra.mxu0 0.0
        %2165 = vmatpush.msra.mxu0 %v2129
        %2166 = vmatmul.f32.gmra.mxu0 %v2145
        %v2167 = vpop.f32.mrf.mxu0
        %v2168 = vadd.f32 %v2137, %v2167
        %2169 = vmatmul.f32.gmra.mxu0 %v2148
        %v2170 = vpop.f32.mrf.mxu0
        %v2171 = vadd.f32 %v2142, %v2170
        %2172 = vdwg.mxu0
        %v2173 = vadd.f32 %v1728, %v2168
        %v2174 = vadd.f32 %v1731, %v2171
        %v2175 = vld [vmem:[%s43] sm:$0xff]
        %v2176 = vld [vmem:[%s43 + $0x8] sm:$0xff]
        %v2178 = vsel %vm1319, %v2175, 0
        %v2181 = vsel %vm1319, %v2176, 0
        %2183 = vmatpush.msra.mxu0 0.0
        %2184 = vmatpush.msra.mxu0 0.0
        %2185 = vmatpush.msra.mxu0 0.0
        %2186 = vmatpush.msra.mxu0 0.0
        %2187 = vmatpush.msra.mxu0 0.0
        %2188 = vmatpush.msra.mxu0 0.0
        %2189 = vmatpush.msra.mxu0 0.0
        %2190 = vmatpush.msra.mxu0 0.0
        %2191 = vmatpush.msra.mxu0 0.0
        %2192 = vmatpush.msra.mxu0 0.0
        %2193 = vmatpush.msra.mxu0 0.0
        %2194 = vmatpush.msra.mxu0 0.0
        %2195 = vmatpush.msra.mxu0 0.0
        %2196 = vmatpush.msra.mxu0 0.0
        %2197 = vmatpush.msra.mxu0 %v2174
        %2198 = vmatpush.msra.mxu0 %v2173
        %2199 = vmatmul.f32.gmra.mxu0 %v2178
        %v2200 = vpop.f32.mrf.mxu0
        %v2201 = vadd.f32 0.0, %v2200
        %2202 = vmatmul.f32.gmra.mxu0 %v2181
        %v2203 = vpop.f32.mrf.mxu0
        %v2204 = vadd.f32 0.0, %v2203
        %2205 = vdwg.mxu0
        %v2206 = vld [vmem:[#allocation16] sm:$0xff]
        %v2207 = vld [vmem:[#allocation16 + $0x8] sm:$0xff]
        %v2208 = vld [vmem:[#allocation16 + $0x10] sm:$0xff]
        %v2209 = vld [vmem:[#allocation16 + $0x18] sm:$0xff]
        %v2210 = vld [vmem:[#allocation16 + $0x20] sm:$0xff]
        %v2211 = vld [vmem:[#allocation16 + $0x28] sm:$0xff]
        %v2212 = vld [vmem:[#allocation16 + $0x30] sm:$0xff]
        %v2213 = vld [vmem:[#allocation16 + $0x38] sm:$0xff]
        %v2214 = vld [vmem:[#allocation16 + $0x40] sm:$0xff]
        %v2215 = vld [vmem:[#allocation16 + $0x48] sm:$0xff]
        %v2216 = vld [vmem:[#allocation16 + $0x50] sm:$0xff]
        %v2217 = vld [vmem:[#allocation16 + $0x58] sm:$0xff]
        %v2218 = vld [vmem:[#allocation16 + $0x60] sm:$0xff]
        %v2219 = vld [vmem:[#allocation16 + $0x68] sm:$0xff]
        %v2220 = vld [vmem:[#allocation16 + $0x70] sm:$0xff]
        %v2221 = vld [vmem:[#allocation16 + $0x78] sm:$0xff]
        %vm2222 = vcmask 523264
        %v2224 = vsel %vm2222, %v2201, 0
        %v2227 = vsel %vm2222, %v2204, 0
        %2229 = vmatpush.msra.mxu0 0.0
        %2230 = vmatpush.msra.mxu0 0.0
        %2231 = vmatpush.msra.mxu0 0.0
        %2232 = vmatpush.msra.mxu0 0.0
        %2233 = vmatpush.msra.mxu0 0.0
        %2234 = vmatpush.msra.mxu0 0.0
        %2235 = vmatpush.msra.mxu0 0.0
        %2236 = vmatpush.msra.mxu0 0.0
        %2237 = vmatpush.msra.mxu0 %v2220
        %2238 = vmatpush.msra.mxu0 %v2218
        %2239 = vmatpush.msra.mxu0 %v2216
        %2240 = vmatpush.msra.mxu0 %v2214
        %2241 = vmatpush.msra.mxu0 %v2212
        %2242 = vmatpush.msra.mxu0 %v2210
        %2243 = vmatpush.msra.mxu0 %v2208
        %2244 = vmatpush.msra.mxu0 %v2206
        %2245 = vmatmul.f32.gmra.mxu0 %v2224
        %v2246 = vpop.f32.mrf.mxu0
        %v2247 = vadd.f32 0.0, %v2246
        %2248 = vmatmul.f32.gmra.mxu0 %v2227
        %v2249 = vpop.f32.mrf.mxu0
        %v2250 = vadd.f32 0.0, %v2249
        %2251 = vdwg.mxu0
        %2252 = vmatpush.msra.mxu0 0.0
        %2253 = vmatpush.msra.mxu0 0.0
        %2254 = vmatpush.msra.mxu0 0.0
        %2255 = vmatpush.msra.mxu0 0.0
        %2256 = vmatpush.msra.mxu0 0.0
        %2257 = vmatpush.msra.mxu0 0.0
        %2258 = vmatpush.msra.mxu0 0.0
        %2259 = vmatpush.msra.mxu0 0.0
        %2260 = vmatpush.msra.mxu0 %v2221
        %2261 = vmatpush.msra.mxu0 %v2219
        %2262 = vmatpush.msra.mxu0 %v2217
        %2263 = vmatpush.msra.mxu0 %v2215
        %2264 = vmatpush.msra.mxu0 %v2213
        %2265 = vmatpush.msra.mxu0 %v2211
        %2266 = vmatpush.msra.mxu0 %v2209
        %2267 = vmatpush.msra.mxu0 %v2207
        %2268 = vmatmul.f32.gmra.mxu0 %v2224
        %v2269 = vpop.f32.mrf.mxu0
        %v2270 = vadd.f32 0.0, %v2269
        %2271 = vmatmul.f32.gmra.mxu0 %v2227
        %v2272 = vpop.f32.mrf.mxu0
        %v2273 = vadd.f32 0.0, %v2272
        %2274 = vdwg.mxu0
        %v2275 = vmul.f32 %v2247, 0.5
        %v2276 = vmul.f32 %v2270, 0.5
        %v2277 = vmul.f32 %v2250, 0.5
        %v2278 = vmul.f32 %v2273, 0.5
        %v2279 = vmul.f32 %v2247, 0.70710677
        %v2280 = vmul.f32 %v2270, 0.70710677
        %v2281 = vmul.f32 %v2250, 0.70710677
        %v2282 = vmul.f32 %v2273, 0.70710677
        %v2283 = vmul.f32 %v2279, %v2279
        %v2284 = vmin.f32 16.0, %v2283
        %v2285 = vmul.f32 %v2284, 2.1237322e-06
        %v2286 = vadd.f32 %v2285, 0.00028619796
        %v2287 = vmul.f32 %v2284, %v2286
        %v2288 = vadd.f32 %v2287, 0.0036580483
        %v2289 = vmul.f32 %v2284, %v2288
        %v2290 = vadd.f32 %v2289, 0.05243302
        %v2291 = vmul.f32 %v2284, %v2290
        %v2292 = vadd.f32 %v2291, 0.18741608
        %v2293 = vmul.f32 %v2284, %v2292
        %v2294 = vadd.f32 %v2293, 1.1283791
        %v2295 = vmul.f32 %v2279, %v2294
        %v2296 = vmul.f32 %v2284, 3.8918573e-05
        %v2297 = vadd.f32 %v2296, 0.001143296
        %v2298 = vmul.f32 %v2284, %v2297
        %v2299 = vadd.f32 %v2298, 0.014752088
        %v2300 = vmul.f32 %v2284, %v2299
        %v2301 = vadd.f32 %v2300, 0.112945676
        %v2302 = vmul.f32 %v2284, %v2301
        %v2303 = vadd.f32 %v2302, 0.4994258
        %v2304 = vmul.f32 %v2284, %v2303
        %v2305 = vadd.f32 %v2304, 1.0
        %v2306 = vrcp.pop %v2305
        %v2307 = vmul.f32 %v2305, %v2306
        %v2308 = vsub.f32 1.0, %v2307
        %v2309 = vmul.f32 %v2306, %v2308
        %v2310 = vadd.f32 %v2306, %v2309
        %vm2311 = vweird.f32 %v2305
        %vm2312 = vweird.f32 %v2306
        %vm2313 = vmor %vm2311, %vm2312
        %v2314 = vsel %vm2313, %v2306, %v2310
        %v2315 = vand.u32 2147483647, %v2305
        %vm2316 = vcmp.eq.f32.partialorder %v2315, 8.507059e+37
        %v2317 = vand.u32 %v2305, 2147483648
        %v2318 = vor.u32 1.1754944e-38, %v2317
        %v2319 = vsel %vm2316, %v2318, %v2314
        %v2320 = vmul.f32 %v2295, %v2319
        %v2321 = vmin.f32 %v2320, 1.0
        %v2322 = vmax.f32 %v2321, -1.0
        %v2323 = vmul.f32 %v2280, %v2280
        %v2324 = vmin.f32 16.0, %v2323
        %v2325 = vmul.f32 %v2324, 2.1237322e-06
        %v2326 = vadd.f32 %v2325, 0.00028619796
        %v2327 = vmul.f32 %v2324, %v2326
        %v2328 = vadd.f32 %v2327, 0.0036580483
        %v2329 = vmul.f32 %v2324, %v2328
        %v2330 = vadd.f32 %v2329, 0.05243302
        %v2331 = vmul.f32 %v2324, %v2330
        %v2332 = vadd.f32 %v2331, 0.18741608
        %v2333 = vmul.f32 %v2324, %v2332
        %v2334 = vadd.f32 %v2333, 1.1283791
        %v2335 = vmul.f32 %v2280, %v2334
        %v2336 = vmul.f32 %v2324, 3.8918573e-05
        %v2337 = vadd.f32 %v2336, 0.001143296
        %v2338 = vmul.f32 %v2324, %v2337
        %v2339 = vadd.f32 %v2338, 0.014752088
        %v2340 = vmul.f32 %v2324, %v2339
        %v2341 = vadd.f32 %v2340, 0.112945676
        %v2342 = vmul.f32 %v2324, %v2341
        %v2343 = vadd.f32 %v2342, 0.4994258
        %v2344 = vmul.f32 %v2324, %v2343
        %v2345 = vadd.f32 %v2344, 1.0
        %v2346 = vrcp.pop %v2345
        %v2347 = vmul.f32 %v2345, %v2346
        %v2348 = vsub.f32 1.0, %v2347
        %v2349 = vmul.f32 %v2346, %v2348
        %v2350 = vadd.f32 %v2346, %v2349
        %vm2351 = vweird.f32 %v2345
        %vm2352 = vweird.f32 %v2346
        %vm2353 = vmor %vm2351, %vm2352
        %v2354 = vsel %vm2353, %v2346, %v2350
        %v2355 = vand.u32 2147483647, %v2345
        %vm2356 = vcmp.eq.f32.partialorder %v2355, 8.507059e+37
        %v2357 = vand.u32 %v2345, 2147483648
        %v2358 = vor.u32 1.1754944e-38, %v2357
        %v2359 = vsel %vm2356, %v2358, %v2354
        %v2360 = vmul.f32 %v2335, %v2359
        %v2361 = vmin.f32 %v2360, 1.0
        %v2362 = vmax.f32 %v2361, -1.0
        %v2363 = vmul.f32 %v2281, %v2281
        %v2364 = vmin.f32 16.0, %v2363
        %v2365 = vmul.f32 %v2364, 2.1237322e-06
        %v2366 = vadd.f32 %v2365, 0.00028619796
        %v2367 = vmul.f32 %v2364, %v2366
        %v2368 = vadd.f32 %v2367, 0.0036580483
        %v2369 = vmul.f32 %v2364, %v2368
        %v2370 = vadd.f32 %v2369, 0.05243302
        %v2371 = vmul.f32 %v2364, %v2370
        %v2372 = vadd.f32 %v2371, 0.18741608
        %v2373 = vmul.f32 %v2364, %v2372
        %v2374 = vadd.f32 %v2373, 1.1283791
        %v2375 = vmul.f32 %v2281, %v2374
        %v2376 = vmul.f32 %v2364, 3.8918573e-05
        %v2377 = vadd.f32 %v2376, 0.001143296
        %v2378 = vmul.f32 %v2364, %v2377
        %v2379 = vadd.f32 %v2378, 0.014752088
        %v2380 = vmul.f32 %v2364, %v2379
        %v2381 = vadd.f32 %v2380, 0.112945676
        %v2382 = vmul.f32 %v2364, %v2381
        %v2383 = vadd.f32 %v2382, 0.4994258
        %v2384 = vmul.f32 %v2364, %v2383
        %v2385 = vadd.f32 %v2384, 1.0
        %v2386 = vrcp.pop %v2385
        %v2387 = vmul.f32 %v2385, %v2386
        %v2388 = vsub.f32 1.0, %v2387
        %v2389 = vmul.f32 %v2386, %v2388
        %v2390 = vadd.f32 %v2386, %v2389
        %vm2391 = vweird.f32 %v2385
        %vm2392 = vweird.f32 %v2386
        %vm2393 = vmor %vm2391, %vm2392
        %v2394 = vsel %vm2393, %v2386, %v2390
        %v2395 = vand.u32 2147483647, %v2385
        %vm2396 = vcmp.eq.f32.partialorder %v2395, 8.507059e+37
        %v2397 = vand.u32 %v2385, 2147483648
        %v2398 = vor.u32 1.1754944e-38, %v2397
        %v2399 = vsel %vm2396, %v2398, %v2394
        %v2400 = vmul.f32 %v2375, %v2399
        %v2401 = vmin.f32 %v2400, 1.0
        %v2402 = vmax.f32 %v2401, -1.0
        %v2403 = vmul.f32 %v2282, %v2282
        %v2404 = vmin.f32 16.0, %v2403
        %v2405 = vmul.f32 %v2404, 2.1237322e-06
        %v2406 = vadd.f32 %v2405, 0.00028619796
        %v2407 = vmul.f32 %v2404, %v2406
        %v2408 = vadd.f32 %v2407, 0.0036580483
        %v2409 = vmul.f32 %v2404, %v2408
        %v2410 = vadd.f32 %v2409, 0.05243302
        %v2411 = vmul.f32 %v2404, %v2410
        %v2412 = vadd.f32 %v2411, 0.18741608
        %v2413 = vmul.f32 %v2404, %v2412
        %v2414 = vadd.f32 %v2413, 1.1283791
        %v2415 = vmul.f32 %v2282, %v2414
        %v2416 = vmul.f32 %v2404, 3.8918573e-05
        %v2417 = vadd.f32 %v2416, 0.001143296
        %v2418 = vmul.f32 %v2404, %v2417
        %v2419 = vadd.f32 %v2418, 0.014752088
        %v2420 = vmul.f32 %v2404, %v2419
        %v2421 = vadd.f32 %v2420, 0.112945676
        %v2422 = vmul.f32 %v2404, %v2421
        %v2423 = vadd.f32 %v2422, 0.4994258
        %v2424 = vmul.f32 %v2404, %v2423
        %v2425 = vadd.f32 %v2424, 1.0
        %v2426 = vrcp.pop %v2425
        %v2427 = vmul.f32 %v2425, %v2426
        %v2428 = vsub.f32 1.0, %v2427
        %v2429 = vmul.f32 %v2426, %v2428
        %v2430 = vadd.f32 %v2426, %v2429
        %vm2431 = vweird.f32 %v2425
        %vm2432 = vweird.f32 %v2426
        %vm2433 = vmor %vm2431, %vm2432
        %v2434 = vsel %vm2433, %v2426, %v2430
        %v2435 = vand.u32 2147483647, %v2425
        %vm2436 = vcmp.eq.f32.partialorder %v2435, 8.507059e+37
        %v2437 = vand.u32 %v2425, 2147483648
        %v2438 = vor.u32 1.1754944e-38, %v2437
        %v2439 = vsel %vm2436, %v2438, %v2434
        %v2440 = vmul.f32 %v2415, %v2439
        %v2441 = vmin.f32 %v2440, 1.0
        %v2442 = vmax.f32 %v2441, -1.0
        %v2443 = vadd.f32 %v2322, 1.0
        %v2444 = vadd.f32 %v2362, 1.0
        %v2445 = vadd.f32 %v2402, 1.0
        %v2446 = vadd.f32 %v2442, 1.0
        %v2447 = vmul.f32 %v2275, %v2443
        %v2448 = vmul.f32 %v2276, %v2444
        %v2449 = vmul.f32 %v2277, %v2445
        %v2450 = vmul.f32 %v2278, %v2446
        %v2451 = vld [vmem:[#allocation18] sm:$0xff]
        %v2452 = vld [vmem:[%s49] sm:$0xff]
        %2454 = vset.pattern.permute.xlu0 0
        %2455 = vperm.xlu0 %2454, %v2452
        %v2456 = vpop.permute.xlu0 %2455
        %v2459 = vsel %vm1319, %v2451, 0
        %2461 = vmatpush.msra.mxu0 0.0
        %2462 = vmatpush.msra.mxu0 0.0
        %2463 = vmatpush.msra.mxu0 0.0
        %2464 = vmatpush.msra.mxu0 0.0
        %2465 = vmatpush.msra.mxu0 0.0
        %2466 = vmatpush.msra.mxu0 0.0
        %2467 = vmatpush.msra.mxu0 0.0
        %2468 = vmatpush.msra.mxu0 0.0
        %2469 = vmatpush.msra.mxu0 0.0
        %2470 = vmatpush.msra.mxu0 0.0
        %2471 = vmatpush.msra.mxu0 0.0
        %2472 = vmatpush.msra.mxu0 0.0
        %2473 = vmatpush.msra.mxu0 0.0
        %2474 = vmatpush.msra.mxu0 0.0
        %2475 = vmatpush.msra.mxu0 %v2449
        %2476 = vmatpush.msra.mxu0 %v2447
        %2477 = vmatmul.f32.gmra.mxu0 %v2459
        %v2478 = vpop.f32.mrf.mxu0
        %v2479 = vadd.f32 %v2456, %v2478
        %2480 = vdwg.mxu0
        %2481 = vmatpush.msra.mxu0 0.0
        %2482 = vmatpush.msra.mxu0 0.0
        %2483 = vmatpush.msra.mxu0 0.0
        %2484 = vmatpush.msra.mxu0 0.0
        %2485 = vmatpush.msra.mxu0 0.0
        %2486 = vmatpush.msra.mxu0 0.0
        %2487 = vmatpush.msra.mxu0 0.0
        %2488 = vmatpush.msra.mxu0 0.0
        %2489 = vmatpush.msra.mxu0 0.0
        %2490 = vmatpush.msra.mxu0 0.0
        %2491 = vmatpush.msra.mxu0 0.0
        %2492 = vmatpush.msra.mxu0 0.0
        %2493 = vmatpush.msra.mxu0 0.0
        %2494 = vmatpush.msra.mxu0 0.0
        %2495 = vmatpush.msra.mxu0 %v2450
        %2496 = vmatpush.msra.mxu0 %v2448
        %2497 = vmatmul.f32.gmra.mxu0 %v2459
        %v2498 = vpop.f32.mrf.mxu0
        %v2499 = vadd.f32 %v2456, %v2498
        %2500 = vdwg.mxu0
        %v2501 = vld [vmem:[#allocation19] sm:$0xf]
        %v2502 = vmul.f32 %v2479, 0.5
        %v2503 = vmul.f32 %v2499, 0.5
        %v2504 = vmul.f32 %v2479, 0.70710677
        %v2505 = vmul.f32 %v2499, 0.70710677
        %v2506 = vmul.f32 %v2504, %v2504
        %v2507 = vmin.f32 16.0, %v2506
        %v2508 = vmul.f32 %v2507, 2.1237322e-06
        %v2509 = vadd.f32 %v2508, 0.00028619796
        %v2510 = vmul.f32 %v2507, %v2509
        %v2511 = vadd.f32 %v2510, 0.0036580483
        %v2512 = vmul.f32 %v2507, %v2511
        %v2513 = vadd.f32 %v2512, 0.05243302
        %v2514 = vmul.f32 %v2507, %v2513
        %v2515 = vadd.f32 %v2514, 0.18741608
        %v2516 = vmul.f32 %v2507, %v2515
        %v2517 = vadd.f32 %v2516, 1.1283791
        %v2518 = vmul.f32 %v2504, %v2517
        %v2519 = vmul.f32 %v2507, 3.8918573e-05
        %v2520 = vadd.f32 %v2519, 0.001143296
        %v2521 = vmul.f32 %v2507, %v2520
        %v2522 = vadd.f32 %v2521, 0.014752088
        %v2523 = vmul.f32 %v2507, %v2522
        %v2524 = vadd.f32 %v2523, 0.112945676
        %v2525 = vmul.f32 %v2507, %v2524
        %v2526 = vadd.f32 %v2525, 0.4994258
        %v2527 = vmul.f32 %v2507, %v2526
        %v2528 = vadd.f32 %v2527, 1.0
        %v2529 = vrcp.pop %v2528
        %v2530 = vmul.f32 %v2528, %v2529
        %v2531 = vsub.f32 1.0, %v2530
        %v2532 = vmul.f32 %v2529, %v2531
        %v2533 = vadd.f32 %v2529, %v2532
        %vm2534 = vweird.f32 %v2528
        %vm2535 = vweird.f32 %v2529
        %vm2536 = vmor %vm2534, %vm2535
        %v2537 = vsel %vm2536, %v2529, %v2533
        %v2538 = vand.u32 2147483647, %v2528
        %vm2539 = vcmp.eq.f32.partialorder %v2538, 8.507059e+37
        %v2540 = vand.u32 %v2528, 2147483648
        %v2541 = vor.u32 1.1754944e-38, %v2540
        %v2542 = vsel %vm2539, %v2541, %v2537
        %v2543 = vmul.f32 %v2518, %v2542
        %v2544 = vmin.f32 %v2543, 1.0
        %v2545 = vmax.f32 %v2544, -1.0
        %v2546 = vmul.f32 %v2505, %v2505
        %v2547 = vmin.f32 16.0, %v2546
        %v2548 = vmul.f32 %v2547, 2.1237322e-06
        %v2549 = vadd.f32 %v2548, 0.00028619796
        %v2550 = vmul.f32 %v2547, %v2549
        %v2551 = vadd.f32 %v2550, 0.0036580483
        %v2552 = vmul.f32 %v2547, %v2551
        %v2553 = vadd.f32 %v2552, 0.05243302
        %v2554 = vmul.f32 %v2547, %v2553
        %v2555 = vadd.f32 %v2554, 0.18741608
        %v2556 = vmul.f32 %v2547, %v2555
        %v2557 = vadd.f32 %v2556, 1.1283791
        %v2558 = vmul.f32 %v2505, %v2557
        %v2559 = vmul.f32 %v2547, 3.8918573e-05
        %v2560 = vadd.f32 %v2559, 0.001143296
        %v2561 = vmul.f32 %v2547, %v2560
        %v2562 = vadd.f32 %v2561, 0.014752088
        %v2563 = vmul.f32 %v2547, %v2562
        %v2564 = vadd.f32 %v2563, 0.112945676
        %v2565 = vmul.f32 %v2547, %v2564
        %v2566 = vadd.f32 %v2565, 0.4994258
        %v2567 = vmul.f32 %v2547, %v2566
        %v2568 = vadd.f32 %v2567, 1.0
        %v2569 = vrcp.pop %v2568
        %v2570 = vmul.f32 %v2568, %v2569
        %v2571 = vsub.f32 1.0, %v2570
        %v2572 = vmul.f32 %v2569, %v2571
        %v2573 = vadd.f32 %v2569, %v2572
        %vm2574 = vweird.f32 %v2568
        %vm2575 = vweird.f32 %v2569
        %vm2576 = vmor %vm2574, %vm2575
        %v2577 = vsel %vm2576, %v2569, %v2573
        %v2578 = vand.u32 2147483647, %v2568
        %vm2579 = vcmp.eq.f32.partialorder %v2578, 8.507059e+37
        %v2580 = vand.u32 %v2568, 2147483648
        %v2581 = vor.u32 1.1754944e-38, %v2580
        %v2582 = vsel %vm2579, %v2581, %v2577
        %v2583 = vmul.f32 %v2558, %v2582
        %v2584 = vmin.f32 %v2583, 1.0
        %v2585 = vmax.f32 %v2584, -1.0
        %v2586 = vadd.f32 %v2545, 1.0
        %v2587 = vadd.f32 %v2585, 1.0
        %v2588 = vmul.f32 %v2502, %v2586
        %v2589 = vmul.f32 %v2503, %v2587
        %v2590 = vld [vmem:[%s51] sm:$0xff]
        %v2591 = vld [vmem:[%s53] sm:$0xff]
        %2594 = vrot.lane.b32.xlu0 %v2588, 17
        %v2595 = vpop.permute.xlu0 %2594
        %2596 = vrot.lane.b32.xlu0 %v2589, 17
        %v2597 = vpop.permute.xlu0 %2596
        %vm2598 = vcmask 138240
        %v2599 = vsel %vm2598, %v2595, %v2597
        %v2602 = vsel %vm2598, 0.0, %v2595
        %v2604 = vperm.slane %v2501, 0
        %v2605 = vperm.slane %v2501, 2
        %v2608 = vperm.slane %v2604, 0
        %v2609 = vperm.slane %v2605, 0
        %v2610 = vmul.f32 %v2602, %v2608
        %v2611 = vmul.f32 %v2599, %v2609
        %2612 = vrot.lane.b32.xlu0 %v2588, 16
        %v2613 = vpop.permute.xlu0 %2612
        %2614 = vrot.lane.b32.xlu0 %v2589, 16
        %v2615 = vpop.permute.xlu0 %2614
        %v2616 = vsel %vm1319, %v2613, %v2615
        %v2619 = vsel %vm1319, 0.0, %v2613
        %2620 = vrot.lane.b32.xlu0 %v2588, 15
        %v2621 = vpop.permute.xlu0 %2620
        %2622 = vrot.lane.b32.xlu0 %v2589, 15
        %v2623 = vpop.permute.xlu0 %2622
        %v2624 = vsel %vm1419, %v2621, %v2623
        %v2627 = vsel %vm1419, 0.0, %v2621
        %v2628 = vperm.slane %v2501, 1
        %v2629 = vperm.slane %v2501, 3
        %v2632 = vperm.slane %v2628, 1
        %v2633 = vperm.slane %v2629, 1
        %v2634 = vmul.f32 %v2627, %v2632
        %v2635 = vmul.f32 %v2624, %v2633
        %2636 = vrot.lane.b32.xlu0 %v2588, 1
        %v2637 = vpop.permute.xlu0 %2636
        %2638 = vrot.lane.b32.xlu0 %v2589, 1
        %v2639 = vpop.permute.xlu0 %2638
        %v2640 = vsel %vm1413, %v2637, %v2639
        %v2643 = vsel %vm1413, 0.0, %v2637
        %v2644 = vmul.f32 %v2643, %v2608
        %v2645 = vmul.f32 %v2640, %v2609
        %2646 = vrot.lane.b32.xlu0 %v2588, 127
        %v2647 = vpop.permute.xlu0 %2646
        %2648 = vrot.lane.b32.xlu0 %v2589, 127
        %v2649 = vpop.permute.xlu0 %2648
        %vm2650 = vcmask 1039360
        %v2651 = vsel %vm2650, %v2647, %v2649
        %v2654 = vsel %vm2650, %v2649, 0.0
        %v2655 = vmul.f32 %v2651, %v2632
        %v2656 = vmul.f32 %v2654, %v2633
        %2657 = vrot.lane.b32.xlu0 %v2588, 113
        %v2658 = vpop.permute.xlu0 %2657
        %2659 = vrot.lane.b32.xlu0 %v2589, 113
        %v2660 = vpop.permute.xlu0 %2659
        %vm2661 = vcmask 924672
        %v2662 = vsel %vm2661, %v2658, %v2660
        %v2665 = vsel %vm2661, %v2660, 0.0
        %v2666 = vmul.f32 %v2662, %v2608
        %v2667 = vmul.f32 %v2665, %v2609
        %2668 = vrot.lane.b32.xlu0 %v2588, 112
        %v2669 = vpop.permute.xlu0 %2668
        %2670 = vrot.lane.b32.xlu0 %v2589, 112
        %v2671 = vpop.permute.xlu0 %2670
        %vm2672 = vcmask 916480
        %v2673 = vsel %vm2672, %v2669, %v2671
        %v2676 = vsel %vm2672, %v2671, 0.0
        %2677 = vrot.lane.b32.xlu0 %v2588, 111
        %v2678 = vpop.permute.xlu0 %2677
        %2679 = vrot.lane.b32.xlu0 %v2589, 111
        %v2680 = vpop.permute.xlu0 %2679
        %vm2681 = vcmask 908288
        %v2682 = vsel %vm2681, %v2678, %v2680
        %v2685 = vsel %vm2681, %v2680, 0.0
        %v2686 = vmul.f32 %v2682, %v2632
        %v2687 = vmul.f32 %v2685, %v2633
        %2689 = vset.pattern.permute.xlu0 0
        %2690 = vperm.xlu0 %2689, %v2591
        %v2691 = vpop.permute.xlu0 %2690
        %v2694 = vsel %vm1444, %v2590, 0
        %2696 = vmatpush.msra.mxu0 0.0
        %2697 = vmatpush.msra.mxu0 0.0
        %2698 = vmatpush.msra.mxu0 0.0
        %2699 = vmatpush.msra.mxu0 0.0
        %2700 = vmatpush.msra.mxu0 0.0
        %2701 = vmatpush.msra.mxu0 0.0
        %2702 = vmatpush.msra.mxu0 0.0
        %2703 = vmatpush.msra.mxu0 %v2686
        %2704 = vmatpush.msra.mxu0 %v2673
        %2705 = vmatpush.msra.mxu0 %v2666
        %2706 = vmatpush.msra.mxu0 %v2655
        %2707 = vmatpush.msra.mxu0 %v2588
        %2708 = vmatpush.msra.mxu0 %v2644
        %2709 = vmatpush.msra.mxu0 %v2634
        %2710 = vmatpush.msra.mxu0 %v2619
        %2711 = vmatpush.msra.mxu0 %v2610
        %2712 = vmatmul.f32.gmra.mxu0 %v2694
        %v2713 = vpop.f32.mrf.mxu0
        %v2714 = vadd.f32 %v2691, %v2713
        %2715 = vdwg.mxu0
        %2716 = vmatpush.msra.mxu0 0.0
        %2717 = vmatpush.msra.mxu0 0.0
        %2718 = vmatpush.msra.mxu0 0.0
        %2719 = vmatpush.msra.mxu0 0.0
        %2720 = vmatpush.msra.mxu0 0.0
        %2721 = vmatpush.msra.mxu0 0.0
        %2722 = vmatpush.msra.mxu0 0.0
        %2723 = vmatpush.msra.mxu0 %v2687
        %2724 = vmatpush.msra.mxu0 %v2676
        %2725 = vmatpush.msra.mxu0 %v2667
        %2726 = vmatpush.msra.mxu0 %v2656
        %2727 = vmatpush.msra.mxu0 %v2589
        %2728 = vmatpush.msra.mxu0 %v2645
        %2729 = vmatpush.msra.mxu0 %v2635
        %2730 = vmatpush.msra.mxu0 %v2616
        %2731 = vmatpush.msra.mxu0 %v2611
        %2732 = vmatmul.f32.gmra.mxu0 %v2694
        %v2733 = vpop.f32.mrf.mxu0
        %v2734 = vadd.f32 %v2691, %v2733
        %2735 = vdwg.mxu0
        %v2736 = vmul.f32 %v2714, 0.5
        %v2737 = vmul.f32 %v2734, 0.5
        %v2738 = vmul.f32 %v2714, 0.70710677
        %v2739 = vmul.f32 %v2734, 0.70710677
        %v2740 = vmul.f32 %v2738, %v2738
        %v2741 = vmin.f32 16.0, %v2740
        %v2742 = vmul.f32 %v2741, 2.1237322e-06
        %v2743 = vadd.f32 %v2742, 0.00028619796
        %v2744 = vmul.f32 %v2741, %v2743
        %v2745 = vadd.f32 %v2744, 0.0036580483
        %v2746 = vmul.f32 %v2741, %v2745
        %v2747 = vadd.f32 %v2746, 0.05243302
        %v2748 = vmul.f32 %v2741, %v2747
        %v2749 = vadd.f32 %v2748, 0.18741608
        %v2750 = vmul.f32 %v2741, %v2749
        %v2751 = vadd.f32 %v2750, 1.1283791
        %v2752 = vmul.f32 %v2738, %v2751
        %v2753 = vmul.f32 %v2741, 3.8918573e-05
        %v2754 = vadd.f32 %v2753, 0.001143296
        %v2755 = vmul.f32 %v2741, %v2754
        %v2756 = vadd.f32 %v2755, 0.014752088
        %v2757 = vmul.f32 %v2741, %v2756
        %v2758 = vadd.f32 %v2757, 0.112945676
        %v2759 = vmul.f32 %v2741, %v2758
        %v2760 = vadd.f32 %v2759, 0.4994258
        %v2761 = vmul.f32 %v2741, %v2760
        %v2762 = vadd.f32 %v2761, 1.0
        %v2763 = vrcp.pop %v2762
        %v2764 = vmul.f32 %v2762, %v2763
        %v2765 = vsub.f32 1.0, %v2764
        %v2766 = vmul.f32 %v2763, %v2765
        %v2767 = vadd.f32 %v2763, %v2766
        %vm2768 = vweird.f32 %v2762
        %vm2769 = vweird.f32 %v2763
        %vm2770 = vmor %vm2768, %vm2769
        %v2771 = vsel %vm2770, %v2763, %v2767
        %v2772 = vand.u32 2147483647, %v2762
        %vm2773 = vcmp.eq.f32.partialorder %v2772, 8.507059e+37
        %v2774 = vand.u32 %v2762, 2147483648
        %v2775 = vor.u32 1.1754944e-38, %v2774
        %v2776 = vsel %vm2773, %v2775, %v2771
        %v2777 = vmul.f32 %v2752, %v2776
        %v2778 = vmin.f32 %v2777, 1.0
        %v2779 = vmax.f32 %v2778, -1.0
        %v2780 = vmul.f32 %v2739, %v2739
        %v2781 = vmin.f32 16.0, %v2780
        %v2782 = vmul.f32 %v2781, 2.1237322e-06
        %v2783 = vadd.f32 %v2782, 0.00028619796
        %v2784 = vmul.f32 %v2781, %v2783
        %v2785 = vadd.f32 %v2784, 0.0036580483
        %v2786 = vmul.f32 %v2781, %v2785
        %v2787 = vadd.f32 %v2786, 0.05243302
        %v2788 = vmul.f32 %v2781, %v2787
        %v2789 = vadd.f32 %v2788, 0.18741608
        %v2790 = vmul.f32 %v2781, %v2789
        %v2791 = vadd.f32 %v2790, 1.1283791
        %v2792 = vmul.f32 %v2739, %v2791
        %v2793 = vmul.f32 %v2781, 3.8918573e-05
        %v2794 = vadd.f32 %v2793, 0.001143296
        %v2795 = vmul.f32 %v2781, %v2794
        %v2796 = vadd.f32 %v2795, 0.014752088
        %v2797 = vmul.f32 %v2781, %v2796
        %v2798 = vadd.f32 %v2797, 0.112945676
        %v2799 = vmul.f32 %v2781, %v2798
        %v2800 = vadd.f32 %v2799, 0.4994258
        %v2801 = vmul.f32 %v2781, %v2800
        %v2802 = vadd.f32 %v2801, 1.0
        %v2803 = vrcp.pop %v2802
        %v2804 = vmul.f32 %v2802, %v2803
        %v2805 = vsub.f32 1.0, %v2804
        %v2806 = vmul.f32 %v2803, %v2805
        %v2807 = vadd.f32 %v2803, %v2806
        %vm2808 = vweird.f32 %v2802
        %vm2809 = vweird.f32 %v2803
        %vm2810 = vmor %vm2808, %vm2809
        %v2811 = vsel %vm2810, %v2803, %v2807
        %v2812 = vand.u32 2147483647, %v2802
        %vm2813 = vcmp.eq.f32.partialorder %v2812, 8.507059e+37
        %v2814 = vand.u32 %v2802, 2147483648
        %v2815 = vor.u32 1.1754944e-38, %v2814
        %v2816 = vsel %vm2813, %v2815, %v2811
        %v2817 = vmul.f32 %v2792, %v2816
        %v2818 = vmin.f32 %v2817, 1.0
        %v2819 = vmax.f32 %v2818, -1.0
        %v2820 = vadd.f32 %v2779, 1.0
        %v2821 = vadd.f32 %v2819, 1.0
        %v2822 = vmul.f32 %v2736, %v2820
        %v2823 = vmul.f32 %v2737, %v2821
        %v2824 = vld [vmem:[%s55] sm:$0xff]
        %v2825 = vld [vmem:[%s57] sm:$0xff]
        %2828 = vrot.lane.b32.xlu0 %v2822, 17
        %v2829 = vpop.permute.xlu0 %2828
        %2830 = vrot.lane.b32.xlu0 %v2823, 17
        %v2831 = vpop.permute.xlu0 %2830
        %v2832 = vsel %vm2598, %v2829, %v2831
        %v2835 = vsel %vm2598, 0.0, %v2829
        %v2836 = vmul.f32 %v2835, %v2608
        %v2837 = vmul.f32 %v2832, %v2609
        %2838 = vrot.lane.b32.xlu0 %v2822, 16
        %v2839 = vpop.permute.xlu0 %2838
        %2840 = vrot.lane.b32.xlu0 %v2823, 16
        %v2841 = vpop.permute.xlu0 %2840
        %v2842 = vsel %vm1319, %v2839, %v2841
        %v2845 = vsel %vm1319, 0.0, %v2839
        %2846 = vrot.lane.b32.xlu0 %v2822, 15
        %v2847 = vpop.permute.xlu0 %2846
        %2848 = vrot.lane.b32.xlu0 %v2823, 15
        %v2849 = vpop.permute.xlu0 %2848
        %v2850 = vsel %vm1419, %v2847, %v2849
        %v2853 = vsel %vm1419, 0.0, %v2847
        %v2854 = vmul.f32 %v2853, %v2632
        %v2855 = vmul.f32 %v2850, %v2633
        %2856 = vrot.lane.b32.xlu0 %v2822, 1
        %v2857 = vpop.permute.xlu0 %2856
        %2858 = vrot.lane.b32.xlu0 %v2823, 1
        %v2859 = vpop.permute.xlu0 %2858
        %v2860 = vsel %vm1413, %v2857, %v2859
        %v2863 = vsel %vm1413, 0.0, %v2857
        %v2864 = vmul.f32 %v2863, %v2608
        %v2865 = vmul.f32 %v2860, %v2609
        %2866 = vrot.lane.b32.xlu0 %v2822, 127
        %v2867 = vpop.permute.xlu0 %2866
        %2868 = vrot.lane.b32.xlu0 %v2823, 127
        %v2869 = vpop.permute.xlu0 %2868
        %v2870 = vsel %vm2650, %v2867, %v2869
        %v2873 = vsel %vm2650, %v2869, 0.0
        %v2874 = vmul.f32 %v2870, %v2632
        %v2875 = vmul.f32 %v2873, %v2633
        %2876 = vrot.lane.b32.xlu0 %v2822, 113
        %v2877 = vpop.permute.xlu0 %2876
        %2878 = vrot.lane.b32.xlu0 %v2823, 113
        %v2879 = vpop.permute.xlu0 %2878
        %v2880 = vsel %vm2661, %v2877, %v2879
        %v2883 = vsel %vm2661, %v2879, 0.0
        %v2884 = vmul.f32 %v2880, %v2608
        %v2885 = vmul.f32 %v2883, %v2609
        %2886 = vrot.lane.b32.xlu0 %v2822, 112
        %v2887 = vpop.permute.xlu0 %2886
        %2888 = vrot.lane.b32.xlu0 %v2823, 112
        %v2889 = vpop.permute.xlu0 %2888
        %v2890 = vsel %vm2672, %v2887, %v2889
        %v2893 = vsel %vm2672, %v2889, 0.0
        %2894 = vrot.lane.b32.xlu0 %v2822, 111
        %v2895 = vpop.permute.xlu0 %2894
        %2896 = vrot.lane.b32.xlu0 %v2823, 111
        %v2897 = vpop.permute.xlu0 %2896
        %v2898 = vsel %vm2681, %v2895, %v2897
        %v2901 = vsel %vm2681, %v2897, 0.0
        %v2902 = vmul.f32 %v2898, %v2632
        %v2903 = vmul.f32 %v2901, %v2633
        %2905 = vset.pattern.permute.xlu0 0
        %2906 = vperm.xlu0 %2905, %v2825
        %v2907 = vpop.permute.xlu0 %2906
        %v2910 = vsel %vm1444, %v2824, 0
        %2912 = vmatpush.msra.mxu0 0.0
        %2913 = vmatpush.msra.mxu0 0.0
        %2914 = vmatpush.msra.mxu0 0.0
        %2915 = vmatpush.msra.mxu0 0.0
        %2916 = vmatpush.msra.mxu0 0.0
        %2917 = vmatpush.msra.mxu0 0.0
        %2918 = vmatpush.msra.mxu0 0.0
        %2919 = vmatpush.msra.mxu0 %v2902
        %2920 = vmatpush.msra.mxu0 %v2890
        %2921 = vmatpush.msra.mxu0 %v2884
        %2922 = vmatpush.msra.mxu0 %v2874
        %2923 = vmatpush.msra.mxu0 %v2822
        %2924 = vmatpush.msra.mxu0 %v2864
        %2925 = vmatpush.msra.mxu0 %v2854
        %2926 = vmatpush.msra.mxu0 %v2845
        %2927 = vmatpush.msra.mxu0 %v2836
        %2928 = vmatmul.f32.gmra.mxu0 %v2910
        %v2929 = vpop.f32.mrf.mxu0
        %v2930 = vadd.f32 %v2907, %v2929
        %2931 = vdwg.mxu0
        %2932 = vmatpush.msra.mxu0 0.0
        %2933 = vmatpush.msra.mxu0 0.0
        %2934 = vmatpush.msra.mxu0 0.0
        %2935 = vmatpush.msra.mxu0 0.0
        %2936 = vmatpush.msra.mxu0 0.0
        %2937 = vmatpush.msra.mxu0 0.0
        %2938 = vmatpush.msra.mxu0 0.0
        %2939 = vmatpush.msra.mxu0 %v2903
        %2940 = vmatpush.msra.mxu0 %v2893
        %2941 = vmatpush.msra.mxu0 %v2885
        %2942 = vmatpush.msra.mxu0 %v2875
        %2943 = vmatpush.msra.mxu0 %v2823
        %2944 = vmatpush.msra.mxu0 %v2865
        %2945 = vmatpush.msra.mxu0 %v2855
        %2946 = vmatpush.msra.mxu0 %v2842
        %2947 = vmatpush.msra.mxu0 %v2837
        %2948 = vmatmul.f32.gmra.mxu0 %v2910
        %v2949 = vpop.f32.mrf.mxu0
        %v2950 = vadd.f32 %v2907, %v2949
        %2951 = vdwg.mxu0
        %v2952 = vmul.f32 %v2930, 0.5
        %v2953 = vmul.f32 %v2950, 0.5
        %v2954 = vmul.f32 %v2930, 0.70710677
        %v2955 = vmul.f32 %v2950, 0.70710677
        %v2956 = vmul.f32 %v2954, %v2954
        %v2957 = vmin.f32 16.0, %v2956
        %v2958 = vmul.f32 %v2957, 2.1237322e-06
        %v2959 = vadd.f32 %v2958, 0.00028619796
        %v2960 = vmul.f32 %v2957, %v2959
        %v2961 = vadd.f32 %v2960, 0.0036580483
        %v2962 = vmul.f32 %v2957, %v2961
        %v2963 = vadd.f32 %v2962, 0.05243302
        %v2964 = vmul.f32 %v2957, %v2963
        %v2965 = vadd.f32 %v2964, 0.18741608
        %v2966 = vmul.f32 %v2957, %v2965
        %v2967 = vadd.f32 %v2966, 1.1283791
        %v2968 = vmul.f32 %v2954, %v2967
        %v2969 = vmul.f32 %v2957, 3.8918573e-05
        %v2970 = vadd.f32 %v2969, 0.001143296
        %v2971 = vmul.f32 %v2957, %v2970
        %v2972 = vadd.f32 %v2971, 0.014752088
        %v2973 = vmul.f32 %v2957, %v2972
        %v2974 = vadd.f32 %v2973, 0.112945676
        %v2975 = vmul.f32 %v2957, %v2974
        %v2976 = vadd.f32 %v2975, 0.4994258
        %v2977 = vmul.f32 %v2957, %v2976
        %v2978 = vadd.f32 %v2977, 1.0
        %v2979 = vrcp.pop %v2978
        %v2980 = vmul.f32 %v2978, %v2979
        %v2981 = vsub.f32 1.0, %v2980
        %v2982 = vmul.f32 %v2979, %v2981
        %v2983 = vadd.f32 %v2979, %v2982
        %vm2984 = vweird.f32 %v2978
        %vm2985 = vweird.f32 %v2979
        %vm2986 = vmor %vm2984, %vm2985
        %v2987 = vsel %vm2986, %v2979, %v2983
        %v2988 = vand.u32 2147483647, %v2978
        %vm2989 = vcmp.eq.f32.partialorder %v2988, 8.507059e+37
        %v2990 = vand.u32 %v2978, 2147483648
        %v2991 = vor.u32 1.1754944e-38, %v2990
        %v2992 = vsel %vm2989, %v2991, %v2987
        %v2993 = vmul.f32 %v2968, %v2992
        %v2994 = vmin.f32 %v2993, 1.0
        %v2995 = vmax.f32 %v2994, -1.0
        %v2996 = vmul.f32 %v2955, %v2955
        %v2997 = vmin.f32 16.0, %v2996
        %v2998 = vmul.f32 %v2997, 2.1237322e-06
        %v2999 = vadd.f32 %v2998, 0.00028619796
        %v3000 = vmul.f32 %v2997, %v2999
        %v3001 = vadd.f32 %v3000, 0.0036580483
        %v3002 = vmul.f32 %v2997, %v3001
        %v3003 = vadd.f32 %v3002, 0.05243302
        %v3004 = vmul.f32 %v2997, %v3003
        %v3005 = vadd.f32 %v3004, 0.18741608
        %v3006 = vmul.f32 %v2997, %v3005
        %v3007 = vadd.f32 %v3006, 1.1283791
        %v3008 = vmul.f32 %v2955, %v3007
        %v3009 = vmul.f32 %v2997, 3.8918573e-05
        %v3010 = vadd.f32 %v3009, 0.001143296
        %v3011 = vmul.f32 %v2997, %v3010
        %v3012 = vadd.f32 %v3011, 0.014752088
        %v3013 = vmul.f32 %v2997, %v3012
        %v3014 = vadd.f32 %v3013, 0.112945676
        %v3015 = vmul.f32 %v2997, %v3014
        %v3016 = vadd.f32 %v3015, 0.4994258
        %v3017 = vmul.f32 %v2997, %v3016
        %v3018 = vadd.f32 %v3017, 1.0
        %v3019 = vrcp.pop %v3018
        %v3020 = vmul.f32 %v3018, %v3019
        %v3021 = vsub.f32 1.0, %v3020
        %v3022 = vmul.f32 %v3019, %v3021
        %v3023 = vadd.f32 %v3019, %v3022
        %vm3024 = vweird.f32 %v3018
        %vm3025 = vweird.f32 %v3019
        %vm3026 = vmor %vm3024, %vm3025
        %v3027 = vsel %vm3026, %v3019, %v3023
        %v3028 = vand.u32 2147483647, %v3018
        %vm3029 = vcmp.eq.f32.partialorder %v3028, 8.507059e+37
        %v3030 = vand.u32 %v3018, 2147483648
        %v3031 = vor.u32 1.1754944e-38, %v3030
        %v3032 = vsel %vm3029, %v3031, %v3027
        %v3033 = vmul.f32 %v3008, %v3032
        %v3034 = vmin.f32 %v3033, 1.0
        %v3035 = vmax.f32 %v3034, -1.0
        %v3036 = vadd.f32 %v2995, 1.0
        %v3037 = vadd.f32 %v3035, 1.0
        %v3038 = vmul.f32 %v2952, %v3036
        %v3039 = vmul.f32 %v2953, %v3037
        %v3040 = vld [vmem:[%s59] sm:$0xff]
        %v3041 = vld [vmem:[%s59 + $0x8] sm:$0xff]
        %v3042 = vld [vmem:[%s61] sm:$0xff]
        %v3043 = vld [vmem:[%s61 + $0x8] sm:$0xff]
        %3045 = vset.pattern.permute.xlu0 0
        %3046 = vperm.xlu0 %3045, %v3042
        %v3047 = vpop.permute.xlu0 %3046
        %3050 = vset.pattern.permute.xlu0 0
        %3051 = vperm.xlu0 %3050, %v3043
        %v3052 = vpop.permute.xlu0 %3051
        %v3055 = vsel %vm1639, %v3040, 0
        %v3058 = vsel %vm1639, %v3041, 0
        %3060 = vmatpush.msra.mxu0 0.0
        %3061 = vmatpush.msra.mxu0 0.0
        %3062 = vmatpush.msra.mxu0 0.0
        %3063 = vmatpush.msra.mxu0 0.0
        %3064 = vmatpush.msra.mxu0 0.0
        %3065 = vmatpush.msra.mxu0 0.0
        %3066 = vmatpush.msra.mxu0 0.0
        %3067 = vmatpush.msra.mxu0 0.0
        %3068 = vmatpush.msra.mxu0 0.0
        %3069 = vmatpush.msra.mxu0 0.0
        %3070 = vmatpush.msra.mxu0 0.0
        %3071 = vmatpush.msra.mxu0 0.0
        %3072 = vmatpush.msra.mxu0 0.0
        %3073 = vmatpush.msra.mxu0 0.0
        %3074 = vmatpush.msra.mxu0 0.0
        %3075 = vmatpush.msra.mxu0 %v3038
        %3076 = vmatmul.f32.gmra.mxu0 %v3055
        %v3077 = vpop.f32.mrf.mxu0
        %v3078 = vadd.f32 %v3047, %v3077
        %3079 = vmatmul.f32.gmra.mxu0 %v3058
        %v3080 = vpop.f32.mrf.mxu0
        %v3081 = vadd.f32 %v3052, %v3080
        %3082 = vdwg.mxu0
        %3083 = vmatpush.msra.mxu0 0.0
        %3084 = vmatpush.msra.mxu0 0.0
        %3085 = vmatpush.msra.mxu0 0.0
        %3086 = vmatpush.msra.mxu0 0.0
        %3087 = vmatpush.msra.mxu0 0.0
        %3088 = vmatpush.msra.mxu0 0.0
        %3089 = vmatpush.msra.mxu0 0.0
        %3090 = vmatpush.msra.mxu0 0.0
        %3091 = vmatpush.msra.mxu0 0.0
        %3092 = vmatpush.msra.mxu0 0.0
        %3093 = vmatpush.msra.mxu0 0.0
        %3094 = vmatpush.msra.mxu0 0.0
        %3095 = vmatpush.msra.mxu0 0.0
        %3096 = vmatpush.msra.mxu0 0.0
        %3097 = vmatpush.msra.mxu0 0.0
        %3098 = vmatpush.msra.mxu0 %v3039
        %3099 = vmatmul.f32.gmra.mxu0 %v3055
        %v3100 = vpop.f32.mrf.mxu0
        %v3101 = vadd.f32 %v3047, %v3100
        %3102 = vmatmul.f32.gmra.mxu0 %v3058
        %v3103 = vpop.f32.mrf.mxu0
        %v3104 = vadd.f32 %v3052, %v3103
        %3105 = vdwg.mxu0
        %v3106 = vadd.f32 %v2247, %v3078
        %v3107 = vadd.f32 %v2270, %v3101
        %v3108 = vadd.f32 %v2250, %v3081
        %v3109 = vadd.f32 %v2273, %v3104
        %v3110 = vld [vmem:[%s65] sm:$0x77]
        %v3111 = vld [vmem:[%s67] sm:$0x7]
        %3116 = vrot.lane.b32.xlu0 %v3106, 17
        %v3117 = vpop.permute.xlu0 %3116
        %3118 = vrot.lane.b32.xlu0 %v3107, 17
        %v3119 = vpop.permute.xlu0 %3118
        %3120 = vrot.lane.b32.xlu0 %v3108, 17
        %v3121 = vpop.permute.xlu0 %3120
        %3122 = vrot.lane.b32.xlu0 %v3109, 17
        %v3123 = vpop.permute.xlu0 %3122
        %v3124 = vsel %vm2598, %v3117, %v3119
        %v3125 = vsel %vm2598, %v3121, %v3123
        %v3130 = vsel %vm2598, 0.0, %v3117
        %v3131 = vsel %vm2598, 0.0, %v3121
        %v3132 = vmul.f32 %v3130, %v2608
        %v3133 = vmul.f32 %v3124, %v2609
        %v3134 = vmul.f32 %v3131, %v2608
        %v3135 = vmul.f32 %v3125, %v2609
        %3136 = vrot.lane.b32.xlu0 %v3106, 16
        %v3137 = vpop.permute.xlu0 %3136
        %3138 = vrot.lane.b32.xlu0 %v3107, 16
        %v3139 = vpop.permute.xlu0 %3138
        %3140 = vrot.lane.b32.xlu0 %v3108, 16
        %v3141 = vpop.permute.xlu0 %3140
        %3142 = vrot.lane.b32.xlu0 %v3109, 16
        %v3143 = vpop.permute.xlu0 %3142
        %v3144 = vsel %vm1319, %v3137, %v3139
        %v3145 = vsel %vm1319, %v3141, %v3143
        %v3150 = vsel %vm1319, 0.0, %v3137
        %v3151 = vsel %vm1319, 0.0, %v3141
        %3152 = vrot.lane.b32.xlu0 %v3106, 15
        %v3153 = vpop.permute.xlu0 %3152
        %3154 = vrot.lane.b32.xlu0 %v3107, 15
        %v3155 = vpop.permute.xlu0 %3154
        %3156 = vrot.lane.b32.xlu0 %v3108, 15
        %v3157 = vpop.permute.xlu0 %3156
        %3158 = vrot.lane.b32.xlu0 %v3109, 15
        %v3159 = vpop.permute.xlu0 %3158
        %v3160 = vsel %vm1419, %v3153, %v3155
        %v3161 = vsel %vm1419, %v3157, %v3159
        %v3166 = vsel %vm1419, 0.0, %v3153
        %v3167 = vsel %vm1419, 0.0, %v3157
        %v3168 = vmul.f32 %v3166, %v2632
        %v3169 = vmul.f32 %v3160, %v2633
        %v3170 = vmul.f32 %v3167, %v2632
        %v3171 = vmul.f32 %v3161, %v2633
        %3172 = vrot.lane.b32.xlu0 %v3106, 1
        %v3173 = vpop.permute.xlu0 %3172
        %3174 = vrot.lane.b32.xlu0 %v3107, 1
        %v3175 = vpop.permute.xlu0 %3174
        %3176 = vrot.lane.b32.xlu0 %v3108, 1
        %v3177 = vpop.permute.xlu0 %3176
        %3178 = vrot.lane.b32.xlu0 %v3109, 1
        %v3179 = vpop.permute.xlu0 %3178
        %v3180 = vsel %vm1413, %v3173, %v3175
        %v3181 = vsel %vm1413, %v3177, %v3179
        %v3186 = vsel %vm1413, 0.0, %v3173
        %v3187 = vsel %vm1413, 0.0, %v3177
        %v3188 = vmul.f32 %v3186, %v2608
        %v3189 = vmul.f32 %v3180, %v2609
        %v3190 = vmul.f32 %v3187, %v2608
        %v3191 = vmul.f32 %v3181, %v2609
        %3192 = vrot.lane.b32.xlu0 %v3106, 127
        %v3193 = vpop.permute.xlu0 %3192
        %3194 = vrot.lane.b32.xlu0 %v3107, 127
        %v3195 = vpop.permute.xlu0 %3194
        %3196 = vrot.lane.b32.xlu0 %v3108, 127
        %v3197 = vpop.permute.xlu0 %3196
        %3198 = vrot.lane.b32.xlu0 %v3109, 127
        %v3199 = vpop.permute.xlu0 %3198
        %v3200 = vsel %vm2650, %v3193, %v3195
        %v3201 = vsel %vm2650, %v3197, %v3199
        %v3206 = vsel %vm2650, %v3195, 0.0
        %v3207 = vsel %vm2650, %v3199, 0.0
        %v3208 = vmul.f32 %v3200, %v2632
        %v3209 = vmul.f32 %v3206, %v2633
        %v3210 = vmul.f32 %v3201, %v2632
        %v3211 = vmul.f32 %v3207, %v2633
        %3212 = vrot.lane.b32.xlu0 %v3106, 113
        %v3213 = vpop.permute.xlu0 %3212
        %3214 = vrot.lane.b32.xlu0 %v3107, 113
        %v3215 = vpop.permute.xlu0 %3214
        %3216 = vrot.lane.b32.xlu0 %v3108, 113
        %v3217 = vpop.permute.xlu0 %3216
        %3218 = vrot.lane.b32.xlu0 %v3109, 113
        %v3219 = vpop.permute.xlu0 %3218
        %v3220 = vsel %vm2661, %v3213, %v3215
        %v3221 = vsel %vm2661, %v3217, %v3219
        %v3226 = vsel %vm2661, %v3215, 0.0
        %v3227 = vsel %vm2661, %v3219, 0.0
        %v3228 = vmul.f32 %v3220, %v2608
        %v3229 = vmul.f32 %v3226, %v2609
        %v3230 = vmul.f32 %v3221, %v2608
        %v3231 = vmul.f32 %v3227, %v2609
        %3232 = vrot.lane.b32.xlu0 %v3106, 112
        %v3233 = vpop.permute.xlu0 %3232
        %3234 = vrot.lane.b32.xlu0 %v3107, 112
        %v3235 = vpop.permute.xlu0 %3234
        %3236 = vrot.lane.b32.xlu0 %v3108, 112
        %v3237 = vpop.permute.xlu0 %3236
        %3238 = vrot.lane.b32.xlu0 %v3109, 112
        %v3239 = vpop.permute.xlu0 %3238
        %v3240 = vsel %vm2672, %v3233, %v3235
        %v3241 = vsel %vm2672, %v3237, %v3239
        %v3246 = vsel %vm2672, %v3235, 0.0
        %v3247 = vsel %vm2672, %v3239, 0.0
        %3248 = vrot.lane.b32.xlu0 %v3106, 111
        %v3249 = vpop.permute.xlu0 %3248
        %3250 = vrot.lane.b32.xlu0 %v3107, 111
        %v3251 = vpop.permute.xlu0 %3250
        %3252 = vrot.lane.b32.xlu0 %v3108, 111
        %v3253 = vpop.permute.xlu0 %3252
        %3254 = vrot.lane.b32.xlu0 %v3109, 111
        %v3255 = vpop.permute.xlu0 %3254
        %v3256 = vsel %vm2681, %v3249, %v3251
        %v3257 = vsel %vm2681, %v3253, %v3255
        %v3262 = vsel %vm2681, %v3251, 0.0
        %v3263 = vsel %vm2681, %v3255, 0.0
        %v3264 = vmul.f32 %v3256, %v2632
        %v3265 = vmul.f32 %v3262, %v2633
        %v3266 = vmul.f32 %v3257, %v2632
        %v3267 = vmul.f32 %v3263, %v2633
        %3269 = vset.pattern.permute.xlu0 0
        %3270 = vperm.xlu0 %3269, %v3111
        %v3271 = vpop.permute.xlu0 %3270
        %3274 = vst [vmem:[#allocation1] ss:$2 sm:$0xff] %v3110
        %v3275 = vld.sshfl [vmem:[#allocation1] sm:$0xff pattern:$0x75316420]
        %v3276 = vld.sshfl [vmem:[#allocation1 + $0x8] sm:$0xff pattern:$0x75316420]
        %v3278 = vsel %vm1319, %v3276, 0
        %3280 = vmatpush.msra.mxu0 %v3241
        %3281 = vmatpush.msra.mxu0 %v3240
        %3282 = vmatpush.msra.mxu0 %v3230
        %3283 = vmatpush.msra.mxu0 %v3228
        %3284 = vmatpush.msra.mxu0 %v3210
        %3285 = vmatpush.msra.mxu0 %v3208
        %3286 = vmatpush.msra.mxu0 %v3108
        %3287 = vmatpush.msra.mxu0 %v3106
        %3288 = vmatpush.msra.mxu0 %v3190
        %3289 = vmatpush.msra.mxu0 %v3188
        %3290 = vmatpush.msra.mxu0 %v3170
        %3291 = vmatpush.msra.mxu0 %v3168
        %3292 = vmatpush.msra.mxu0 %v3151
        %3293 = vmatpush.msra.mxu0 %v3150
        %3294 = vmatpush.msra.mxu0 %v3134
        %3295 = vmatpush.msra.mxu0 %v3132
        %3296 = vmatmul.f32.gmra.mxu0 %v3275
        %v3297 = vpop.f32.mrf.mxu0
        %v3298 = vadd.f32 %v3271, %v3297
        %3299 = vdwg.mxu0
        %3300 = vmatpush.msra.mxu0 0.0
        %3301 = vmatpush.msra.mxu0 0.0
        %3302 = vmatpush.msra.mxu0 0.0
        %3303 = vmatpush.msra.mxu0 0.0
        %3304 = vmatpush.msra.mxu0 0.0
        %3305 = vmatpush.msra.mxu0 0.0
        %3306 = vmatpush.msra.mxu0 0.0
        %3307 = vmatpush.msra.mxu0 0.0
        %3308 = vmatpush.msra.mxu0 0.0
        %3309 = vmatpush.msra.mxu0 0.0
        %3310 = vmatpush.msra.mxu0 0.0
        %3311 = vmatpush.msra.mxu0 0.0
        %3312 = vmatpush.msra.mxu0 0.0
        %3313 = vmatpush.msra.mxu0 0.0
        %3314 = vmatpush.msra.mxu0 %v3266
        %3315 = vmatpush.msra.mxu0 %v3264
        %3316 = vmatmul.f32.gmra.mxu0 %v3278
        %v3317 = vpop.f32.mrf.mxu0
        %v3318 = vadd.f32 %v3298, %v3317
        %3319 = vdwg.mxu0
        %3320 = vmatpush.msra.mxu0 %v3247
        %3321 = vmatpush.msra.mxu0 %v3246
        %3322 = vmatpush.msra.mxu0 %v3231
        %3323 = vmatpush.msra.mxu0 %v3229
        %3324 = vmatpush.msra.mxu0 %v3211
        %3325 = vmatpush.msra.mxu0 %v3209
        %3326 = vmatpush.msra.mxu0 %v3109
        %3327 = vmatpush.msra.mxu0 %v3107
        %3328 = vmatpush.msra.mxu0 %v3191
        %3329 = vmatpush.msra.mxu0 %v3189
        %3330 = vmatpush.msra.mxu0 %v3171
        %3331 = vmatpush.msra.mxu0 %v3169
        %3332 = vmatpush.msra.mxu0 %v3145
        %3333 = vmatpush.msra.mxu0 %v3144
        %3334 = vmatpush.msra.mxu0 %v3135
        %3335 = vmatpush.msra.mxu0 %v3133
        %3336 = vmatmul.f32.gmra.mxu0 %v3275
        %v3337 = vpop.f32.mrf.mxu0
        %v3338 = vadd.f32 %v3271, %v3337
        %3339 = vdwg.mxu0
        %3340 = vmatpush.msra.mxu0 0.0
        %3341 = vmatpush.msra.mxu0 0.0
        %3342 = vmatpush.msra.mxu0 0.0
        %3343 = vmatpush.msra.mxu0 0.0
        %3344 = vmatpush.msra.mxu0 0.0
        %3345 = vmatpush.msra.mxu0 0.0
        %3346 = vmatpush.msra.mxu0 0.0
        %3347 = vmatpush.msra.mxu0 0.0
        %3348 = vmatpush.msra.mxu0 0.0
        %3349 = vmatpush.msra.mxu0 0.0
        %3350 = vmatpush.msra.mxu0 0.0
        %3351 = vmatpush.msra.mxu0 0.0
        %3352 = vmatpush.msra.mxu0 0.0
        %3353 = vmatpush.msra.mxu0 0.0
        %3354 = vmatpush.msra.mxu0 %v3267
        %3355 = vmatpush.msra.mxu0 %v3265
        %3356 = vmatmul.f32.gmra.mxu0 %v3278
        %v3357 = vpop.f32.mrf.mxu0
        %v3358 = vadd.f32 %v3338, %v3357
        %3359 = vdwg.mxu0
        %v3360 = vxor.u32 %v3318, 2147483648
        %v3361 = vxor.u32 %v3358, 2147483648
        %v3362 = vmul.f32 %v3360, 1.442695
        %v3363 = vpow.pop %v3362
        %v3364 = vmul.f32 %v3361, 1.442695
        %v3365 = vpow.pop %v3364
        %v3366 = vadd.f32 %v3363, 1.0
        %v3367 = vadd.f32 %v3365, 1.0
        %v3368 = vrcp.pop %v3366
        %v3369 = vmul.f32 %v3366, %v3368
        %v3370 = vsub.f32 1.0, %v3369
        %v3371 = vmul.f32 %v3368, %v3370
        %v3372 = vadd.f32 %v3368, %v3371
        %vm3373 = vweird.f32 %v3366
        %vm3374 = vweird.f32 %v3368
        %vm3375 = vmor %vm3373, %vm3374
        %v3376 = vsel %vm3375, %v3368, %v3372
        %v3377 = vand.u32 2147483647, %v3366
        %vm3378 = vcmp.eq.f32.partialorder %v3377, 8.507059e+37
        %v3379 = vand.u32 %v3366, 2147483648
        %v3380 = vor.u32 1.1754944e-38, %v3379
        %v3381 = vsel %vm3378, %v3380, %v3376
        %v3382 = vmul.f32 1.0, %v3381
        %v3383 = vrcp.pop %v3367
        %v3384 = vmul.f32 %v3367, %v3383
        %v3385 = vsub.f32 1.0, %v3384
        %v3386 = vmul.f32 %v3383, %v3385
        %v3387 = vadd.f32 %v3383, %v3386
        %vm3388 = vweird.f32 %v3367
        %vm3389 = vweird.f32 %v3383
        %vm3390 = vmor %vm3388, %vm3389
        %v3391 = vsel %vm3390, %v3383, %v3387
        %v3392 = vand.u32 2147483647, %v3367
        %vm3393 = vcmp.eq.f32.partialorder %v3392, 8.507059e+37
        %v3394 = vand.u32 %v3367, 2147483648
        %v3395 = vor.u32 1.1754944e-38, %v3394
        %v3396 = vsel %vm3393, %v3395, %v3391
        %v3397 = vmul.f32 1.0, %v3396
        %v3400 = vrot.slane %v3397, 4
        %vm3401 = vcmask 1043456
        %v3402 = vsel %vm3401, %v3382, %v3400
        %3404 = vst [vmem:[%s1221] sm:$0x77] %v3402
        %p3405 = scmp.lt.s32.totalorder %s87, 1
        %s3406 = scalar_select %p3405, %s87, 1
        %s3407 = smul.addr %s3406, 2
        %s3408 = smul.addr %s3407, 4
        %s3409 = scalar_lea.vmem %s69, %s3408
        // Predicated region
        $region205: #{_lambda_.1} parent=155 // pred_check
          %p3410 = pneg %p824
        $region206: #{_lambda_.1} parent=155 // pred_check_branch
          %3412 = sbr.rel (%p3410) target = $region208
        $region207: #{_lambda_.1} parent=155 // pred_region
          _
        $region208: #{_lambda_.1} parent=155 // pred_fallthru
          _
      $region156: #{_lambda_.1} parent=5 // pred_fallthru
        _
      %p3413 = scmp.le.s32.totalorder 2, %s82
      // Predicated region
      $region209: #{_lambda_.1} parent=5 // pred_check
        %p3414 = pneg %p3413
      $region210: #{_lambda_.1} parent=5 // pred_check_branch
        %3416 = sbr.rel (%p3414) target = $region212
      $region211: #{_lambda_.1} parent=5 // pred_region
        %s3417 = ssub.s32 %s82, 2
        // Predicated region
        $region213: #{_lambda_.1} parent=211 // pred_check
          %p3418 = pneg %p830
        $region214: #{_lambda_.1} parent=211 // pred_check_branch
          %3420 = sbr.rel (%p3418) target = $region216
        $region215: #{_lambda_.1} parent=211 // pred_region
          %p3421 = scmp.lt.s32.totalorder %s88, 1
          %s3422 = scalar_select %p3421, %s88, 1
          %s3423 = smul.addr %s3422, 2
          %s3424 = smul.addr %s3423, 4
          %s3425 = scalar_lea.vmem %s69, %s3424
        $region216: #{_lambda_.1} parent=211 // pred_fallthru
          _
      $region212: #{_lambda_.1} parent=5 // pred_fallthru
        _
    $region6: #{_lambda_.1} parent=1 // loop_footer
      %s86 = sadd.s32 1, %s82
    $region7: #{_lambda_.1} parent=1 // loop_footer_branch
      %81 = sbr.rel target = $region3
    $region8: #{_lambda_.1} parent=1 // loop_exit
      _
    %3426 = vsyncpa [#allocation3], 1
    %s3427 = scalar_lea.sflag [#allocation3], 1
    %3428 = vsyncpa %s3427, 1
    %3429 = vsyncpa [#allocation5], 1
    %3430 = vsyncpa [#allocation8], 1
    %3431 = vsyncpa [#allocation11], 1
    %3432 = vsyncpa [#allocation14], 1
    %3433 = vsyncpa [#allocation17], 1
    %3434 = vsyncpa [#allocation20], 1

</llo_original>
